<compile_context>
chip_gen: v7x
topology: tpu7x:2x2x1
jax: 0.10.0
libtpu: 0.0.40
codegen_flags: <defaults>
</compile_context>

<pallas_src>
import functools

import jax
import jax.numpy as jnp
from jax.experimental import pallas as pl
from jax.experimental.pallas import tpu as pltpu

EPS = 1e-5   # nn.LayerNorm default
LANE = 128


def _round_up(n, m):
    return ((n + m - 1) // m) * m


def encoder_kernel(x_ref,
                   pre_g_ref, pre_b_ref,
                   n1g_ref, n1b_ref,
                   wqkv_ref, wo_ref,
                   n2g_ref, n2b_ref,
                   w1_ref, b1_ref, w2_ref, b2_ref,
                   o_ref,
                   *, num_layers, num_heads, d_model, unroll):
    Bb, T, Dp = x_ref.shape
    M = Bb * T
    H = num_heads
    D = d_model
    hd = D // H
    inv_d = 1.0 / D

    if Dp != D:
        lane_ids = jax.lax.broadcasted_iota(jnp.int32, (1, Dp), 1)
        valid = lane_ids < D          # real feature columns
    else:
        valid = None

    def layer_norm(x, gamma, beta):
        # x: (M, Dp) f32; padded feature columns are exactly zero and gamma/beta are
        # zero-padded, so pad columns stay zero through every layer.  Statistics are
        # computed over the real d_model only (pad columns masked out of the var sum).
        mu = jnp.sum(x, axis=-1, keepdims=True) * inv_d
        diff = x - mu
        if valid is not None:
            diff = jnp.where(valid, diff, 0.0)
        var = jnp.sum(diff * diff, axis=-1, keepdims=True) * inv_d
        return diff * jax.lax.rsqrt(var + EPS) * gamma + beta

    # Fold (Bb, T) into the matmul M dimension.
    x = x_ref[...].reshape(M, Dp).astype(jnp.float32)
    x = layer_norm(x, pre_g_ref[...], pre_b_ref[...])            # pre_norm

    def split_heads(slab):
        # (M, Dp) -> (Bb*H, T, hd): take the real D lanes, split heads, fold heads
        # into the leading batch dim (single-batch-dim einsums below).
        s3 = slab.reshape(Bb, T, Dp)
        if Dp != D:
            s3 = s3[:, :, :D]
        return (s3.reshape(Bb, T, H, hd)
                  .transpose(0, 2, 1, 3)
                  .reshape(Bb * H, T, hd)
                  .astype(jnp.bfloat16))

    def layer_body(l, x):
        # ---------------- self-attention sub-block (pre-LN) ----------------
        x2 = layer_norm(x, n1g_ref[l], n1b_ref[l]).astype(jnp.bfloat16)
        # Fused QKV: one (M, Dp) x (Dp, 3*Dp) matmul, then lane-aligned slices.
        qkv = jnp.dot(x2, wqkv_ref[l], preferred_element_type=jnp.float32)
        q = split_heads(qkv[:, :Dp])             # 1/sqrt(hd) already folded into wq
        k = split_heads(qkv[:, Dp:2 * Dp])
        v = split_heads(qkv[:, 2 * Dp:])

        s = jnp.einsum('bqd,bkd->bqk', q, k,
                       preferred_element_type=jnp.float32)          # (Bb*H, T, T)
        s = s - jnp.max(s, axis=-1, keepdims=True)
        p = jnp.exp(s)
        p = p * pl.reciprocal(jnp.sum(p, axis=-1, keepdims=True), approx=True)
        o = jnp.einsum('bqk,bkd->bqd', p.astype(jnp.bfloat16), v,
                       preferred_element_type=jnp.float32)          # (Bb*H, T, hd)
        # Head concat is just a reshape; single out-projection (M, D) x (D, Dp).
        o = (o.reshape(Bb, H, T, hd).transpose(0, 2, 1, 3)
               .reshape(M, D).astype(jnp.bfloat16))
        attn = jnp.dot(o, wo_ref[l], preferred_element_type=jnp.float32)  # (M, Dp)
        x = x + attn                              # dropout1 = identity (eval)

        # ---------------- feed-forward sub-block (pre-LN) ----------------
        x2 = layer_norm(x, n2g_ref[l], n2b_ref[l]).astype(jnp.bfloat16)
        h1 = jnp.dot(x2, w1_ref[l], preferred_element_type=jnp.float32) + b1_ref[l]
        h1 = jnp.maximum(h1, 0.0)                 # ReLU (dropout = identity)
        h2 = jnp.dot(h1.astype(jnp.bfloat16), w2_ref[l],
                     preferred_element_type=jnp.float32) + b2_ref[l]
        return x + h2                             # dropout2 = identity (eval)

    x = jax.lax.fori_loop(0, num_layers, layer_body, x, unroll=unroll)

    # Emit the real d_model directly (masked vst for D < 128 beats writing Dp lanes
    # plus a separate post-kernel slice pass through HBM).
    Do = o_ref.shape[-1]
    xo = x.reshape(Bb, T, Dp)
    o_ref[...] = (xo if Do == Dp else xo[:, :, :Do]).astype(o_ref.dtype)


def init_params(key, d_model, num_layers, dim_feedforward):
    """Xavier-uniform weights (stored (in, out); the Xavier bound is symmetric in
    fan_in/fan_out so the distribution matches PyTorch's (out, in)), zero biases,
    LayerNorm gamma=1 / beta=0 — matching the module's initialize_weight."""
    def xavier(k, fan_in, fan_out):
        bound = (6.0 / (fan_in + fan_out)) ** 0.5
        return jax.random.uniform(k, (fan_in, fan_out), jnp.float32, -bound, bound)

    D, F, L = d_model, dim_feedforward, num_layers
    keys = jax.random.split(key, 6 * L)
    wq, wk, wv, wo, w1, w2 = [], [], [], [], [], []
    for l in range(L):
        k0, k1, k2, k3, k4, k5 = keys[6 * l:6 * l + 6]
        wq.append(xavier(k0, D, D)); wk.append(xavier(k1, D, D))
        wv.append(xavier(k2, D, D)); wo.append(xavier(k3, D, D))
        w1.append(xavier(k4, D, F)); w2.append(xavier(k5, F, D))
    return dict(
        pre_g=jnp.ones((D,), jnp.float32), pre_b=jnp.zeros((D,), jnp.float32),
        n1g=jnp.ones((L, D), jnp.float32), n1b=jnp.zeros((L, D), jnp.float32),
        n2g=jnp.ones((L, D), jnp.float32), n2b=jnp.zeros((L, D), jnp.float32),
        wq=jnp.stack(wq), wk=jnp.stack(wk), wv=jnp.stack(wv), wo=jnp.stack(wo),
        w1=jnp.stack(w1), b1=jnp.zeros((L, F), jnp.float32),
        w2=jnp.stack(w2), b2=jnp.zeros((L, D), jnp.float32),
    )


def _pad_to(a, shape):
    pads = [(0, t - s) for s, t in zip(a.shape, shape)]
    if all(p == (0, 0) for p in pads):
        return a
    return jnp.pad(a, pads)


def _vmem_limit_bytes():
    """Per-generation VMEM budget: ~85% of physical per-core VMEM
    (v5e/v6e 128 MiB -> ~108 MiB, v7x 64 MiB -> ~54 MiB); conservative fallback."""
    try:
        cap = int(pltpu.get_tpu_info().vmem_capacity_bytes)
        return int(cap * 0.85)
    except Exception:
        return 48 * 1024 * 1024


def _max_rows(vmem_budget, weight_bytes, Dp, Fp, H, T, D):
    """Rows (Bb*T) of f32 working set that fit next to the resident weights, with
    headroom for double-buffered x/out blocks and compiler internal scratch."""
    headroom = 8 << 20
    avail = vmem_budget - weight_bytes - headroom
    per_row = 4 * (8 * Dp + Fp + 2 * H * T + D)   # rough f32 activation bytes / row
    if avail <= per_row * T:
        return T
    return int(min(avail // per_row, 4096))


def _pick_batch_block(B, T, max_rows):
    """Pick Bb dividing B.  Prefer Bb*T that is >=256 and a multiple of 256
    (v6e/v7x MXU width), then a multiple of 8 (sublane aligned), then larger row
    counts (amortize the ~0.35us/step overhead), then leaving >=2 grid steps."""
    divisors = [d for d in range(1, B + 1) if B % d == 0]
    feas = [d for d in divisors if d * T <= max_rows] or [1]

    def key(d):
        rows = d * T
        return ((rows % 256 == 0) and rows >= 256,
                rows % 8 == 0,
                min(rows, 2048),
                B // d >= 2)
    return max(feas, key=key)


def tabular_transformer_encoder(x, params, *, num_heads, num_layers, batch_block=None):
    B, T, D = x.shape
    L = num_layers
    F = params['w1'].shape[-1]
    assert D % num_heads == 0
    hd = D // num_heads

    Dp = _round_up(D, LANE)     # lane-pad d_model
    Fp = _round_up(F, LANE)     # lane-pad dim_feedforward

    # ---- Host-side layout ----
    # Zero-pad feature dims to lane width; fold the 1/sqrt(hd) attention scale into
    # wq; pack Q/K/V into one (L, Dp, 3*Dp) weight; cast matmul weights to bf16
    # (accumulation stays f32 in-kernel); LN params / biases stay f32.
    f32, bf16 = jnp.float32, jnp.bfloat16
    scale = float(hd) ** (-0.5)

    xp   = _pad_to(x, (B, T, Dp))
    preg = _pad_to(params['pre_g'].reshape(1, D), (1, Dp)).astype(f32)
    preb = _pad_to(params['pre_b'].reshape(1, D), (1, Dp)).astype(f32)
    n1g  = _pad_to(params['n1g'].reshape(L, 1, D), (L, 1, Dp)).astype(f32)
    n1b  = _pad_to(params['n1b'].reshape(L, 1, D), (L, 1, Dp)).astype(f32)
    n2g  = _pad_to(params['n2g'].reshape(L, 1, D), (L, 1, Dp)).astype(f32)
    n2b  = _pad_to(params['n2b'].reshape(L, 1, D), (L, 1, Dp)).astype(f32)
    wqkv = jnp.concatenate(
        [_pad_to(params['wq'] * scale, (L, Dp, Dp)),     # scale folded in (exact, f32)
         _pad_to(params['wk'], (L, Dp, Dp)),
         _pad_to(params['wv'], (L, Dp, Dp))], axis=-1).astype(bf16)   # (L, Dp, 3*Dp)
    wo   = _pad_to(params['wo'], (L, D, Dp)).astype(bf16)             # K = real D rows
    w1   = _pad_to(params['w1'], (L, Dp, Fp)).astype(bf16)
    b1   = _pad_to(params['b1'].reshape(L, 1, F), (L, 1, Fp)).astype(f32)
    w2   = _pad_to(params['w2'], (L, Fp, Dp)).astype(bf16)
    b2   = _pad_to(params['b2'].reshape(L, 1, D), (L, 1, Dp)).astype(f32)

    weight_arrays = (preg, preb, n1g, n1b, n2g, n2b, wqkv, wo, w1, b1, w2, b2)
    weight_bytes = sum(int(a.size) * a.dtype.itemsize for a in weight_arrays)

    vmem_limit = _vmem_limit_bytes()
    if weight_bytes > int(vmem_limit * 0.9):
        raise NotImplementedError(
            f"Resident bf16 weights ({weight_bytes >> 20} MiB) exceed the per-core "
            f"VMEM budget ({vmem_limit >> 20} MiB); layer-streaming grid axis not "
            "implemented yet (see TODO).")

    if batch_block is not None:
        Bb = batch_block
    else:
        Bb = _pick_batch_block(B, T, _max_rows(vmem_limit, weight_bytes,
                                               Dp, Fp, num_heads, T, D))
    assert B % Bb == 0

    # Unroll the layer loop only when the per-layer body is small (otherwise the
    # duplicated QKV/attention/FFN code inflates vreg live ranges -> spills).
    unroll = bool(num_layers <= 2 and Dp <= 256 and Fp <= 512)

    kernel = functools.partial(encoder_kernel, num_layers=num_layers,
                               num_heads=num_heads, d_model=D, unroll=unroll)

    def run(single_buffer_weights):
        def const_spec(shape):
            zeros = (0,) * len(shape)
            idx = lambda b, _z=zeros: _z
            if single_buffer_weights:
                # Constant block index + single buffer: the weight set is DMA'd from
                # HBM once and not double-buffered (halves resident weight VMEM).
                return pl.BlockSpec(shape, idx, pipeline_mode=pl.Buffered(1))
            return pl.BlockSpec(shape, idx)

        return pl.pallas_call(
            kernel,
            out_shape=jax.ShapeDtypeStruct((B, T, D), x.dtype),
            grid=(B // Bb,),
            in_specs=[
                pl.BlockSpec((Bb, T, Dp), lambda b: (b, 0, 0)),    # x: Bb*T rows / step
                const_spec((1, Dp)), const_spec((1, Dp)),          # pre_norm g / b
                const_spec((L, 1, Dp)), const_spec((L, 1, Dp)),    # norm1 g / b
                const_spec((L, Dp, 3 * Dp)),                       # packed Wq|Wk|Wv
                const_spec((L, D, Dp)),                            # Wo (K = real D)
                const_spec((L, 1, Dp)), const_spec((L, 1, Dp)),    # norm2 g / b
                const_spec((L, Dp, Fp)), const_spec((L, 1, Fp)),   # ffn layer1 w, b
                const_spec((L, Fp, Dp)), const_spec((L, 1, Dp)),   # ffn layer2 w, b
            ],
            out_specs=pl.BlockSpec((Bb, T, D), lambda b: (b, 0, 0)),
            compiler_params=pltpu.CompilerParams(
                dimension_semantics=("parallel",),
                vmem_limit_bytes=int(vmem_limit),
            ),
        )(xp, preg, preb, n1g, n1b, wqkv, wo, n2g, n2b, w1, b1, w2, b2)

    try:
        return run(True)
    except (TypeError, NotImplementedError, pltpu.LoweringException) as e:
        # Narrow fallback: only for builds where pipeline_mode=pl.Buffered(1) is
        # rejected.  Any other failure (VMEM overflow, shape bugs) surfaces.
        print(f"WARNING: single-buffered weight BlockSpecs rejected "
              f"({type(e).__name__}); falling back to default double-buffering.")
        return run(False)


if __name__ == "__main__":
    # Small shapes consistent with the module's forward: x is (B, T, d_model).
    B, T = 2, 8
    d_model, nhead, num_layers, dim_feedforward = 32, 4, 2, 128

    key = jax.random.PRNGKey(0)
    kx, kp = jax.random.split(key)
    x = jax.random.normal(kx, (B, T, d_model), jnp.float32)
    params = init_params(kp, d_model, num_layers, dim_feedforward)

    out = tabular_transformer_encoder(x, params, num_heads=nhead, num_layers=num_layers)
    out = jax.block_until_ready(out)
    assert out.shape == (B, T, d_model) and out.dtype == jnp.float32
    print("KERNEL_OK")
</pallas_src>

<mosaic_0001>
module attributes {stable_mosaic.version = 11 : i64} {
  func.func @encoder_kernel(%arg0: i32, %arg1: memref<2x8x128xf32, #tpu.memory_space<vmem>>, %arg2: memref<1x128xf32, #tpu.memory_space<vmem>>, %arg3: memref<1x128xf32, #tpu.memory_space<vmem>>, %arg4: memref<2x1x128xf32, #tpu.memory_space<vmem>>, %arg5: memref<2x1x128xf32, #tpu.memory_space<vmem>>, %arg6: memref<2x128x384xbf16, #tpu.memory_space<vmem>>, %arg7: memref<2x32x128xbf16, #tpu.memory_space<vmem>>, %arg8: memref<2x1x128xf32, #tpu.memory_space<vmem>>, %arg9: memref<2x1x128xf32, #tpu.memory_space<vmem>>, %arg10: memref<2x128x128xbf16, #tpu.memory_space<vmem>>, %arg11: memref<2x1x128xf32, #tpu.memory_space<vmem>>, %arg12: memref<2x128x128xbf16, #tpu.memory_space<vmem>>, %arg13: memref<2x1x128xf32, #tpu.memory_space<vmem>>, %arg14: memref<2x8x32xf32, #tpu.memory_space<vmem>>) attributes {dimension_semantics = [#tpu.dimension_semantics<parallel>], iteration_bounds = array<i64: 1>, scalar_prefetch = 0 : i64, scratch_operands = 0 : i64, tpu.core_type = #tpu.core_type<tc>, window_params = [{transform_indices = @transform_0, window_bounds = array<i64: 2, 8, 128>}, {pipeline_mode = #tpu.pipeline_mode<synchronous>, transform_indices = @transform_1, window_bounds = array<i64: 1, 128>}, {pipeline_mode = #tpu.pipeline_mode<synchronous>, transform_indices = @transform_2, window_bounds = array<i64: 1, 128>}, {pipeline_mode = #tpu.pipeline_mode<synchronous>, transform_indices = @transform_3, window_bounds = array<i64: 2, 1, 128>}, {pipeline_mode = #tpu.pipeline_mode<synchronous>, transform_indices = @transform_4, window_bounds = array<i64: 2, 1, 128>}, {pipeline_mode = #tpu.pipeline_mode<synchronous>, transform_indices = @transform_5, window_bounds = array<i64: 2, 128, 384>}, {pipeline_mode = #tpu.pipeline_mode<synchronous>, transform_indices = @transform_6, window_bounds = array<i64: 2, 32, 128>}, {pipeline_mode = #tpu.pipeline_mode<synchronous>, transform_indices = @transform_7, window_bounds = array<i64: 2, 1, 128>}, {pipeline_mode = #tpu.pipeline_mode<synchronous>, transform_indices = @transform_8, window_bounds = array<i64: 2, 1, 128>}, {pipeline_mode = #tpu.pipeline_mode<synchronous>, transform_indices = @transform_9, window_bounds = array<i64: 2, 128, 128>}, {pipeline_mode = #tpu.pipeline_mode<synchronous>, transform_indices = @transform_10, window_bounds = array<i64: 2, 1, 128>}, {pipeline_mode = #tpu.pipeline_mode<synchronous>, transform_indices = @transform_11, window_bounds = array<i64: 2, 128, 128>}, {pipeline_mode = #tpu.pipeline_mode<synchronous>, transform_indices = @transform_12, window_bounds = array<i64: 2, 1, 128>}, {transform_indices = @transform_13, window_bounds = array<i64: 2, 8, 32>}]} {
    %0 = tpu.iota {dimensions = array<i32: 1>} : vector<1x128xi32>
    %c32_i32 = arith.constant 32 : i32
    %1 = vector.broadcast %c32_i32 : i32 to vector<1x128xi32>
    %2 = arith.cmpi slt, %0, %1 : vector<1x128xi32>
    %c0 = arith.constant 0 : index
    %c0_0 = arith.constant 0 : index
    %c0_1 = arith.constant 0 : index
    %3 = vector.load %arg1[%c0, %c0_0, %c0_1] : memref<2x8x128xf32, #tpu.memory_space<vmem>>, vector<2x8x128xf32>
    %4 = vector.shape_cast %3 : vector<2x8x128xf32> to vector<16x128xf32>
    %c0_2 = arith.constant 0 : index
    %c0_3 = arith.constant 0 : index
    %5 = vector.load %arg2[%c0_2, %c0_3] : memref<1x128xf32, #tpu.memory_space<vmem>>, vector<1x128xf32>
    %c0_4 = arith.constant 0 : index
    %c0_5 = arith.constant 0 : index
    %6 = vector.load %arg3[%c0_4, %c0_5] : memref<1x128xf32, #tpu.memory_space<vmem>>, vector<1x128xf32>
    %cst = arith.constant dense<0.000000e+00> : vector<16xf32>
    %7 = vector.multi_reduction <add>, %4, %cst [1] : vector<16x128xf32> to vector<16xf32>
    %8 = vector.shape_cast %7 : vector<16xf32> to vector<16x1xf32>
    %cst_6 = arith.constant 3.125000e-02 : f32
    %9 = vector.broadcast %cst_6 : f32 to vector<16x1xf32>
    %10 = arith.mulf %8, %9 : vector<16x1xf32>
    %11 = vector.broadcast %10 : vector<16x1xf32> to vector<16x128xf32>
    %12 = arith.subf %4, %11 : vector<16x128xf32>
    %cst_7 = arith.constant 0.000000e+00 : f32
    %13 = vector.shape_cast %2 : vector<1x128xi1> to vector<1x128xi1>
    %14 = vector.broadcast %13 : vector<1x128xi1> to vector<16x128xi1>
    %15 = vector.broadcast %cst_7 : f32 to vector<16x128xf32>
    %16 = arith.select %14, %12, %15 : vector<16x128xi1>, vector<16x128xf32>
    %17 = arith.mulf %16, %16 : vector<16x128xf32>
    %cst_8 = arith.constant dense<0.000000e+00> : vector<16xf32>
    %18 = vector.multi_reduction <add>, %17, %cst_8 [1] : vector<16x128xf32> to vector<16xf32>
    %19 = vector.shape_cast %18 : vector<16xf32> to vector<16x1xf32>
    %cst_9 = arith.constant 3.125000e-02 : f32
    %20 = vector.broadcast %cst_9 : f32 to vector<16x1xf32>
    %21 = arith.mulf %19, %20 : vector<16x1xf32>
    %cst_10 = arith.constant 9.99999974E-6 : f32
    %22 = vector.broadcast %cst_10 : f32 to vector<16x1xf32>
    %23 = arith.addf %21, %22 : vector<16x1xf32>
    %24 = math.rsqrt %23 : vector<16x1xf32>
    %25 = vector.broadcast %24 : vector<16x1xf32> to vector<16x128xf32>
    %26 = arith.mulf %16, %25 : vector<16x128xf32>
    %27 = vector.broadcast %5 : vector<1x128xf32> to vector<16x128xf32>
    %28 = arith.mulf %26, %27 : vector<16x128xf32>
    %29 = vector.broadcast %6 : vector<1x128xf32> to vector<16x128xf32>
    %30 = arith.addf %28, %29 : vector<16x128xf32>
    %c0_i32 = arith.constant 0 : i32
    %31 = arith.index_cast %c0_i32 : i32 to index
    %c0_11 = arith.constant 0 : index
    %c0_12 = arith.constant 0 : index
    %32 = vector.load %arg4[%31, %c0_11, %c0_12] : memref<2x1x128xf32, #tpu.memory_space<vmem>>, vector<1x1x128xf32>
    %33 = vector.shape_cast %32 : vector<1x1x128xf32> to vector<1x128xf32>
    %34 = arith.index_cast %c0_i32 : i32 to index
    %c0_13 = arith.constant 0 : index
    %c0_14 = arith.constant 0 : index
    %35 = vector.load %arg5[%34, %c0_13, %c0_14] : memref<2x1x128xf32, #tpu.memory_space<vmem>>, vector<1x1x128xf32>
    %36 = vector.shape_cast %35 : vector<1x1x128xf32> to vector<1x128xf32>
    %cst_15 = arith.constant dense<0.000000e+00> : vector<16xf32>
    %37 = vector.multi_reduction <add>, %30, %cst_15 [1] : vector<16x128xf32> to vector<16xf32>
    %38 = vector.shape_cast %37 : vector<16xf32> to vector<16x1xf32>
    %cst_16 = arith.constant 3.125000e-02 : f32
    %39 = vector.broadcast %cst_16 : f32 to vector<16x1xf32>
    %40 = arith.mulf %38, %39 : vector<16x1xf32>
    %41 = vector.broadcast %40 : vector<16x1xf32> to vector<16x128xf32>
    %42 = arith.subf %30, %41 : vector<16x128xf32>
    %cst_17 = arith.constant 0.000000e+00 : f32
    %43 = vector.shape_cast %2 : vector<1x128xi1> to vector<1x128xi1>
    %44 = vector.broadcast %43 : vector<1x128xi1> to vector<16x128xi1>
    %45 = vector.broadcast %cst_17 : f32 to vector<16x128xf32>
    %46 = arith.select %44, %42, %45 : vector<16x128xi1>, vector<16x128xf32>
    %47 = arith.mulf %46, %46 : vector<16x128xf32>
    %cst_18 = arith.constant dense<0.000000e+00> : vector<16xf32>
    %48 = vector.multi_reduction <add>, %47, %cst_18 [1] : vector<16x128xf32> to vector<16xf32>
    %49 = vector.shape_cast %48 : vector<16xf32> to vector<16x1xf32>
    %cst_19 = arith.constant 3.125000e-02 : f32
    %50 = vector.broadcast %cst_19 : f32 to vector<16x1xf32>
    %51 = arith.mulf %49, %50 : vector<16x1xf32>
    %cst_20 = arith.constant 9.99999974E-6 : f32
    %52 = vector.broadcast %cst_20 : f32 to vector<16x1xf32>
    %53 = arith.addf %51, %52 : vector<16x1xf32>
    %54 = math.rsqrt %53 : vector<16x1xf32>
    %55 = vector.broadcast %54 : vector<16x1xf32> to vector<16x128xf32>
    %56 = arith.mulf %46, %55 : vector<16x128xf32>
    %57 = vector.broadcast %33 : vector<1x128xf32> to vector<16x128xf32>
    %58 = arith.mulf %56, %57 : vector<16x128xf32>
    %59 = vector.broadcast %36 : vector<1x128xf32> to vector<16x128xf32>
    %60 = arith.addf %58, %59 : vector<16x128xf32>
    %61 = arith.truncf %60 : vector<16x128xf32> to vector<16x128xbf16>
    %62 = arith.index_cast %c0_i32 : i32 to index
    %c0_21 = arith.constant 0 : index
    %c0_22 = arith.constant 0 : index
    %63 = vector.load %arg6[%62, %c0_21, %c0_22] : memref<2x128x384xbf16, #tpu.memory_space<vmem>>, vector<1x128x384xbf16>
    %64 = vector.shape_cast %63 : vector<1x128x384xbf16> to vector<128x384xbf16>
    %cst_23 = arith.constant dense<0.000000e+00> : vector<16x384xf32>
    %65 = tpu.matmul %61, %64, %cst_23 {dimension_numbers = #tpu.dot_dimension_numbers<[1], [0], [0], [1], [0, 0, 1, 1], [], []>} : vector<16x128xbf16>, vector<128x384xbf16>, vector<16x384xf32> -> vector<16x384xf32>
    %66 = vector.extract_strided_slice %65 {offsets = [0, 0], sizes = [16, 128], strides = [1, 1]} : vector<16x384xf32> to vector<16x128xf32>
    %67 = vector.shape_cast %66 : vector<16x128xf32> to vector<2x8x128xf32>
    %68 = vector.extract_strided_slice %67 {offsets = [0, 0, 0], sizes = [2, 8, 32], strides = [1, 1, 1]} : vector<2x8x128xf32> to vector<2x8x32xf32>
    %69 = vector.shape_cast %68 : vector<2x8x32xf32> to vector<2x8x4x8xf32>
    %70 = tpu.transpose %69, [0, 2, 1, 3] : vector<2x8x4x8xf32> -> vector<2x4x8x8xf32>
    %71 = vector.shape_cast %70 : vector<2x4x8x8xf32> to vector<8x8x8xf32>
    %72 = arith.truncf %71 : vector<8x8x8xf32> to vector<8x8x8xbf16>
    %73 = vector.extract_strided_slice %65 {offsets = [0, 128], sizes = [16, 128], strides = [1, 1]} : vector<16x384xf32> to vector<16x128xf32>
    %74 = vector.shape_cast %73 : vector<16x128xf32> to vector<2x8x128xf32>
    %75 = vector.extract_strided_slice %74 {offsets = [0, 0, 0], sizes = [2, 8, 32], strides = [1, 1, 1]} : vector<2x8x128xf32> to vector<2x8x32xf32>
    %76 = vector.shape_cast %75 : vector<2x8x32xf32> to vector<2x8x4x8xf32>
    %77 = tpu.transpose %76, [0, 2, 1, 3] : vector<2x8x4x8xf32> -> vector<2x4x8x8xf32>
    %78 = vector.shape_cast %77 : vector<2x4x8x8xf32> to vector<8x8x8xf32>
    %79 = arith.truncf %78 : vector<8x8x8xf32> to vector<8x8x8xbf16>
    %80 = vector.extract_strided_slice %65 {offsets = [0, 256], sizes = [16, 128], strides = [1, 1]} : vector<16x384xf32> to vector<16x128xf32>
    %81 = vector.shape_cast %80 : vector<16x128xf32> to vector<2x8x128xf32>
    %82 = vector.extract_strided_slice %81 {offsets = [0, 0, 0], sizes = [2, 8, 32], strides = [1, 1, 1]} : vector<2x8x128xf32> to vector<2x8x32xf32>
    %83 = vector.shape_cast %82 : vector<2x8x32xf32> to vector<2x8x4x8xf32>
    %84 = tpu.transpose %83, [0, 2, 1, 3] : vector<2x8x4x8xf32> -> vector<2x4x8x8xf32>
    %85 = vector.shape_cast %84 : vector<2x4x8x8xf32> to vector<8x8x8xf32>
    %86 = arith.truncf %85 : vector<8x8x8xf32> to vector<8x8x8xbf16>
    "tpu.trace_start"() <{level = 10 : i32, message = "bqd,bkd->bqk"}> : () -> ()
    %cst_24 = arith.constant dense<0.000000e+00> : vector<8x8x8xf32>
    %87 = tpu.matmul %72, %79, %cst_24 {dimension_numbers = #tpu.dot_dimension_numbers<[2], [2], [1], [1], [0, 0, 0, 1, 1, 1], [0], [0]>} : vector<8x8x8xbf16>, vector<8x8x8xbf16>, vector<8x8x8xf32> -> vector<8x8x8xf32>
    "tpu.trace_stop"() : () -> ()
    %cst_25 = arith.constant dense<0xFF800000> : vector<8x8xf32>
    %88 = vector.multi_reduction <maximumf>, %87, %cst_25 [2] : vector<8x8x8xf32> to vector<8x8xf32>
    %89 = vector.shape_cast %88 : vector<8x8xf32> to vector<8x8x1xf32>
    %90 = vector.broadcast %89 : vector<8x8x1xf32> to vector<8x8x8xf32>
    %91 = arith.subf %87, %90 : vector<8x8x8xf32>
    %92 = math.exp %91 : vector<8x8x8xf32>
    %cst_26 = arith.constant dense<0.000000e+00> : vector<8x8xf32>
    %93 = vector.multi_reduction <add>, %92, %cst_26 [2] : vector<8x8x8xf32> to vector<8x8xf32>
    %94 = vector.shape_cast %93 : vector<8x8xf32> to vector<8x8x1xf32>
    %95 = tpu.reciprocal %94 {approx = true} : vector<8x8x1xf32> -> vector<8x8x1xf32>
    %96 = vector.broadcast %95 : vector<8x8x1xf32> to vector<8x8x8xf32>
    %97 = arith.mulf %92, %96 : vector<8x8x8xf32>
    %98 = arith.truncf %97 : vector<8x8x8xf32> to vector<8x8x8xbf16>
    "tpu.trace_start"() <{level = 10 : i32, message = "bqk,bkd->bqd"}> : () -> ()
    %cst_27 = arith.constant dense<0.000000e+00> : vector<8x8x8xf32>
    %99 = tpu.matmul %98, %86, %cst_27 {dimension_numbers = #tpu.dot_dimension_numbers<[2], [1], [1], [2], [0, 0, 0, 1, 1, 2], [0], [0]>} : vector<8x8x8xbf16>, vector<8x8x8xbf16>, vector<8x8x8xf32> -> vector<8x8x8xf32>
    "tpu.trace_stop"() : () -> ()
    %100 = vector.shape_cast %99 : vector<8x8x8xf32> to vector<2x4x8x8xf32>
    %101 = tpu.transpose %100, [0, 2, 1, 3] : vector<2x4x8x8xf32> -> vector<2x8x4x8xf32>
    %102 = vector.shape_cast %101 : vector<2x8x4x8xf32> to vector<16x32xf32>
    %103 = arith.truncf %102 : vector<16x32xf32> to vector<16x32xbf16>
    %104 = arith.index_cast %c0_i32 : i32 to index
    %c0_28 = arith.constant 0 : index
    %c0_29 = arith.constant 0 : index
    %105 = vector.load %arg7[%104, %c0_28, %c0_29] : memref<2x32x128xbf16, #tpu.memory_space<vmem>>, vector<1x32x128xbf16>
    %106 = vector.shape_cast %105 : vector<1x32x128xbf16> to vector<32x128xbf16>
    %cst_30 = arith.constant dense<0.000000e+00> : vector<16x128xf32>
    %107 = tpu.matmul %103, %106, %cst_30 {dimension_numbers = #tpu.dot_dimension_numbers<[1], [0], [0], [1], [0, 0, 1, 1], [], []>} : vector<16x32xbf16>, vector<32x128xbf16>, vector<16x128xf32> -> vector<16x128xf32>
    %108 = arith.addf %30, %107 : vector<16x128xf32>
    %109 = arith.index_cast %c0_i32 : i32 to index
    %c0_31 = arith.constant 0 : index
    %c0_32 = arith.constant 0 : index
    %110 = vector.load %arg8[%109, %c0_31, %c0_32] : memref<2x1x128xf32, #tpu.memory_space<vmem>>, vector<1x1x128xf32>
    %111 = vector.shape_cast %110 : vector<1x1x128xf32> to vector<1x128xf32>
    %112 = arith.index_cast %c0_i32 : i32 to index
    %c0_33 = arith.constant 0 : index
    %c0_34 = arith.constant 0 : index
    %113 = vector.load %arg9[%112, %c0_33, %c0_34] : memref<2x1x128xf32, #tpu.memory_space<vmem>>, vector<1x1x128xf32>
    %114 = vector.shape_cast %113 : vector<1x1x128xf32> to vector<1x128xf32>
    %cst_35 = arith.constant dense<0.000000e+00> : vector<16xf32>
    %115 = vector.multi_reduction <add>, %108, %cst_35 [1] : vector<16x128xf32> to vector<16xf32>
    %116 = vector.shape_cast %115 : vector<16xf32> to vector<16x1xf32>
    %cst_36 = arith.constant 3.125000e-02 : f32
    %117 = vector.broadcast %cst_36 : f32 to vector<16x1xf32>
    %118 = arith.mulf %116, %117 : vector<16x1xf32>
    %119 = vector.broadcast %118 : vector<16x1xf32> to vector<16x128xf32>
    %120 = arith.subf %108, %119 : vector<16x128xf32>
    %cst_37 = arith.constant 0.000000e+00 : f32
    %121 = vector.shape_cast %2 : vector<1x128xi1> to vector<1x128xi1>
    %122 = vector.broadcast %121 : vector<1x128xi1> to vector<16x128xi1>
    %123 = vector.broadcast %cst_37 : f32 to vector<16x128xf32>
    %124 = arith.select %122, %120, %123 : vector<16x128xi1>, vector<16x128xf32>
    %125 = arith.mulf %124, %124 : vector<16x128xf32>
    %cst_38 = arith.constant dense<0.000000e+00> : vector<16xf32>
    %126 = vector.multi_reduction <add>, %125, %cst_38 [1] : vector<16x128xf32> to vector<16xf32>
    %127 = vector.shape_cast %126 : vector<16xf32> to vector<16x1xf32>
    %cst_39 = arith.constant 3.125000e-02 : f32
    %128 = vector.broadcast %cst_39 : f32 to vector<16x1xf32>
    %129 = arith.mulf %127, %128 : vector<16x1xf32>
    %cst_40 = arith.constant 9.99999974E-6 : f32
    %130 = vector.broadcast %cst_40 : f32 to vector<16x1xf32>
    %131 = arith.addf %129, %130 : vector<16x1xf32>
    %132 = math.rsqrt %131 : vector<16x1xf32>
    %133 = vector.broadcast %132 : vector<16x1xf32> to vector<16x128xf32>
    %134 = arith.mulf %124, %133 : vector<16x128xf32>
    %135 = vector.broadcast %111 : vector<1x128xf32> to vector<16x128xf32>
    %136 = arith.mulf %134, %135 : vector<16x128xf32>
    %137 = vector.broadcast %114 : vector<1x128xf32> to vector<16x128xf32>
    %138 = arith.addf %136, %137 : vector<16x128xf32>
    %139 = arith.truncf %138 : vector<16x128xf32> to vector<16x128xbf16>
    %140 = arith.index_cast %c0_i32 : i32 to index
    %c0_41 = arith.constant 0 : index
    %c0_42 = arith.constant 0 : index
    %141 = vector.load %arg10[%140, %c0_41, %c0_42] : memref<2x128x128xbf16, #tpu.memory_space<vmem>>, vector<1x128x128xbf16>
    %142 = vector.shape_cast %141 : vector<1x128x128xbf16> to vector<128x128xbf16>
    %cst_43 = arith.constant dense<0.000000e+00> : vector<16x128xf32>
    %143 = tpu.matmul %139, %142, %cst_43 {dimension_numbers = #tpu.dot_dimension_numbers<[1], [0], [0], [1], [0, 0, 1, 1], [], []>} : vector<16x128xbf16>, vector<128x128xbf16>, vector<16x128xf32> -> vector<16x128xf32>
    %144 = arith.index_cast %c0_i32 : i32 to index
    %c0_44 = arith.constant 0 : index
    %c0_45 = arith.constant 0 : index
    %145 = vector.load %arg11[%144, %c0_44, %c0_45] : memref<2x1x128xf32, #tpu.memory_space<vmem>>, vector<1x1x128xf32>
    %146 = vector.shape_cast %145 : vector<1x1x128xf32> to vector<1x128xf32>
    %147 = vector.broadcast %146 : vector<1x128xf32> to vector<16x128xf32>
    %148 = arith.addf %143, %147 : vector<16x128xf32>
    %cst_46 = arith.constant 0.000000e+00 : f32
    %149 = vector.broadcast %cst_46 : f32 to vector<16x128xf32>
    %150 = arith.maximumf %148, %149 : vector<16x128xf32>
    %151 = arith.truncf %150 : vector<16x128xf32> to vector<16x128xbf16>
    %152 = arith.index_cast %c0_i32 : i32 to index
    %c0_47 = arith.constant 0 : index
    %c0_48 = arith.constant 0 : index
    %153 = vector.load %arg12[%152, %c0_47, %c0_48] : memref<2x128x128xbf16, #tpu.memory_space<vmem>>, vector<1x128x128xbf16>
    %154 = vector.shape_cast %153 : vector<1x128x128xbf16> to vector<128x128xbf16>
    %cst_49 = arith.constant dense<0.000000e+00> : vector<16x128xf32>
    %155 = tpu.matmul %151, %154, %cst_49 {dimension_numbers = #tpu.dot_dimension_numbers<[1], [0], [0], [1], [0, 0, 1, 1], [], []>} : vector<16x128xbf16>, vector<128x128xbf16>, vector<16x128xf32> -> vector<16x128xf32>
    %156 = arith.index_cast %c0_i32 : i32 to index
    %c0_50 = arith.constant 0 : index
    %c0_51 = arith.constant 0 : index
    %157 = vector.load %arg13[%156, %c0_50, %c0_51] : memref<2x1x128xf32, #tpu.memory_space<vmem>>, vector<1x1x128xf32>
    %158 = vector.shape_cast %157 : vector<1x1x128xf32> to vector<1x128xf32>
    %159 = vector.broadcast %158 : vector<1x128xf32> to vector<16x128xf32>
    %160 = arith.addf %155, %159 : vector<16x128xf32>
    %161 = arith.addf %108, %160 : vector<16x128xf32>
    %c1_i32 = arith.constant 1 : i32
    %162 = arith.index_cast %c1_i32 : i32 to index
    %c0_52 = arith.constant 0 : index
    %c0_53 = arith.constant 0 : index
    %163 = vector.load %arg4[%162, %c0_52, %c0_53] : memref<2x1x128xf32, #tpu.memory_space<vmem>>, vector<1x1x128xf32>
    %164 = vector.shape_cast %163 : vector<1x1x128xf32> to vector<1x128xf32>
    %165 = arith.index_cast %c1_i32 : i32 to index
    %c0_54 = arith.constant 0 : index
    %c0_55 = arith.constant 0 : index
    %166 = vector.load %arg5[%165, %c0_54, %c0_55] : memref<2x1x128xf32, #tpu.memory_space<vmem>>, vector<1x1x128xf32>
    %167 = vector.shape_cast %166 : vector<1x1x128xf32> to vector<1x128xf32>
    %cst_56 = arith.constant dense<0.000000e+00> : vector<16xf32>
    %168 = vector.multi_reduction <add>, %161, %cst_56 [1] : vector<16x128xf32> to vector<16xf32>
    %169 = vector.shape_cast %168 : vector<16xf32> to vector<16x1xf32>
    %cst_57 = arith.constant 3.125000e-02 : f32
    %170 = vector.broadcast %cst_57 : f32 to vector<16x1xf32>
    %171 = arith.mulf %169, %170 : vector<16x1xf32>
    %172 = vector.broadcast %171 : vector<16x1xf32> to vector<16x128xf32>
    %173 = arith.subf %161, %172 : vector<16x128xf32>
    %cst_58 = arith.constant 0.000000e+00 : f32
    %174 = vector.shape_cast %2 : vector<1x128xi1> to vector<1x128xi1>
    %175 = vector.broadcast %174 : vector<1x128xi1> to vector<16x128xi1>
    %176 = vector.broadcast %cst_58 : f32 to vector<16x128xf32>
    %177 = arith.select %175, %173, %176 : vector<16x128xi1>, vector<16x128xf32>
    %178 = arith.mulf %177, %177 : vector<16x128xf32>
    %cst_59 = arith.constant dense<0.000000e+00> : vector<16xf32>
    %179 = vector.multi_reduction <add>, %178, %cst_59 [1] : vector<16x128xf32> to vector<16xf32>
    %180 = vector.shape_cast %179 : vector<16xf32> to vector<16x1xf32>
    %cst_60 = arith.constant 3.125000e-02 : f32
    %181 = vector.broadcast %cst_60 : f32 to vector<16x1xf32>
    %182 = arith.mulf %180, %181 : vector<16x1xf32>
    %cst_61 = arith.constant 9.99999974E-6 : f32
    %183 = vector.broadcast %cst_61 : f32 to vector<16x1xf32>
    %184 = arith.addf %182, %183 : vector<16x1xf32>
    %185 = math.rsqrt %184 : vector<16x1xf32>
    %186 = vector.broadcast %185 : vector<16x1xf32> to vector<16x128xf32>
    %187 = arith.mulf %177, %186 : vector<16x128xf32>
    %188 = vector.broadcast %164 : vector<1x128xf32> to vector<16x128xf32>
    %189 = arith.mulf %187, %188 : vector<16x128xf32>
    %190 = vector.broadcast %167 : vector<1x128xf32> to vector<16x128xf32>
    %191 = arith.addf %189, %190 : vector<16x128xf32>
    %192 = arith.truncf %191 : vector<16x128xf32> to vector<16x128xbf16>
    %193 = arith.index_cast %c1_i32 : i32 to index
    %c0_62 = arith.constant 0 : index
    %c0_63 = arith.constant 0 : index
    %194 = vector.load %arg6[%193, %c0_62, %c0_63] : memref<2x128x384xbf16, #tpu.memory_space<vmem>>, vector<1x128x384xbf16>
    %195 = vector.shape_cast %194 : vector<1x128x384xbf16> to vector<128x384xbf16>
    %cst_64 = arith.constant dense<0.000000e+00> : vector<16x384xf32>
    %196 = tpu.matmul %192, %195, %cst_64 {dimension_numbers = #tpu.dot_dimension_numbers<[1], [0], [0], [1], [0, 0, 1, 1], [], []>} : vector<16x128xbf16>, vector<128x384xbf16>, vector<16x384xf32> -> vector<16x384xf32>
    %197 = vector.extract_strided_slice %196 {offsets = [0, 0], sizes = [16, 128], strides = [1, 1]} : vector<16x384xf32> to vector<16x128xf32>
    %198 = vector.shape_cast %197 : vector<16x128xf32> to vector<2x8x128xf32>
    %199 = vector.extract_strided_slice %198 {offsets = [0, 0, 0], sizes = [2, 8, 32], strides = [1, 1, 1]} : vector<2x8x128xf32> to vector<2x8x32xf32>
    %200 = vector.shape_cast %199 : vector<2x8x32xf32> to vector<2x8x4x8xf32>
    %201 = tpu.transpose %200, [0, 2, 1, 3] : vector<2x8x4x8xf32> -> vector<2x4x8x8xf32>
    %202 = vector.shape_cast %201 : vector<2x4x8x8xf32> to vector<8x8x8xf32>
    %203 = arith.truncf %202 : vector<8x8x8xf32> to vector<8x8x8xbf16>
    %204 = vector.extract_strided_slice %196 {offsets = [0, 128], sizes = [16, 128], strides = [1, 1]} : vector<16x384xf32> to vector<16x128xf32>
    %205 = vector.shape_cast %204 : vector<16x128xf32> to vector<2x8x128xf32>
    %206 = vector.extract_strided_slice %205 {offsets = [0, 0, 0], sizes = [2, 8, 32], strides = [1, 1, 1]} : vector<2x8x128xf32> to vector<2x8x32xf32>
    %207 = vector.shape_cast %206 : vector<2x8x32xf32> to vector<2x8x4x8xf32>
    %208 = tpu.transpose %207, [0, 2, 1, 3] : vector<2x8x4x8xf32> -> vector<2x4x8x8xf32>
    %209 = vector.shape_cast %208 : vector<2x4x8x8xf32> to vector<8x8x8xf32>
    %210 = arith.truncf %209 : vector<8x8x8xf32> to vector<8x8x8xbf16>
    %211 = vector.extract_strided_slice %196 {offsets = [0, 256], sizes = [16, 128], strides = [1, 1]} : vector<16x384xf32> to vector<16x128xf32>
    %212 = vector.shape_cast %211 : vector<16x128xf32> to vector<2x8x128xf32>
    %213 = vector.extract_strided_slice %212 {offsets = [0, 0, 0], sizes = [2, 8, 32], strides = [1, 1, 1]} : vector<2x8x128xf32> to vector<2x8x32xf32>
    %214 = vector.shape_cast %213 : vector<2x8x32xf32> to vector<2x8x4x8xf32>
    %215 = tpu.transpose %214, [0, 2, 1, 3] : vector<2x8x4x8xf32> -> vector<2x4x8x8xf32>
    %216 = vector.shape_cast %215 : vector<2x4x8x8xf32> to vector<8x8x8xf32>
    %217 = arith.truncf %216 : vector<8x8x8xf32> to vector<8x8x8xbf16>
    "tpu.trace_start"() <{level = 10 : i32, message = "bqd,bkd->bqk"}> : () -> ()
    %cst_65 = arith.constant dense<0.000000e+00> : vector<8x8x8xf32>
    %218 = tpu.matmul %203, %210, %cst_65 {dimension_numbers = #tpu.dot_dimension_numbers<[2], [2], [1], [1], [0, 0, 0, 1, 1, 1], [0], [0]>} : vector<8x8x8xbf16>, vector<8x8x8xbf16>, vector<8x8x8xf32> -> vector<8x8x8xf32>
    "tpu.trace_stop"() : () -> ()
    %cst_66 = arith.constant dense<0xFF800000> : vector<8x8xf32>
    %219 = vector.multi_reduction <maximumf>, %218, %cst_66 [2] : vector<8x8x8xf32> to vector<8x8xf32>
    %220 = vector.shape_cast %219 : vector<8x8xf32> to vector<8x8x1xf32>
    %221 = vector.broadcast %220 : vector<8x8x1xf32> to vector<8x8x8xf32>
    %222 = arith.subf %218, %221 : vector<8x8x8xf32>
    %223 = math.exp %222 : vector<8x8x8xf32>
    %cst_67 = arith.constant dense<0.000000e+00> : vector<8x8xf32>
    %224 = vector.multi_reduction <add>, %223, %cst_67 [2] : vector<8x8x8xf32> to vector<8x8xf32>
    %225 = vector.shape_cast %224 : vector<8x8xf32> to vector<8x8x1xf32>
    %226 = tpu.reciprocal %225 {approx = true} : vector<8x8x1xf32> -> vector<8x8x1xf32>
    %227 = vector.broadcast %226 : vector<8x8x1xf32> to vector<8x8x8xf32>
    %228 = arith.mulf %223, %227 : vector<8x8x8xf32>
    %229 = arith.truncf %228 : vector<8x8x8xf32> to vector<8x8x8xbf16>
    "tpu.trace_start"() <{level = 10 : i32, message = "bqk,bkd->bqd"}> : () -> ()
    %cst_68 = arith.constant dense<0.000000e+00> : vector<8x8x8xf32>
    %230 = tpu.matmul %229, %217, %cst_68 {dimension_numbers = #tpu.dot_dimension_numbers<[2], [1], [1], [2], [0, 0, 0, 1, 1, 2], [0], [0]>} : vector<8x8x8xbf16>, vector<8x8x8xbf16>, vector<8x8x8xf32> -> vector<8x8x8xf32>
    "tpu.trace_stop"() : () -> ()
    %231 = vector.shape_cast %230 : vector<8x8x8xf32> to vector<2x4x8x8xf32>
    %232 = tpu.transpose %231, [0, 2, 1, 3] : vector<2x4x8x8xf32> -> vector<2x8x4x8xf32>
    %233 = vector.shape_cast %232 : vector<2x8x4x8xf32> to vector<16x32xf32>
    %234 = arith.truncf %233 : vector<16x32xf32> to vector<16x32xbf16>
    %235 = arith.index_cast %c1_i32 : i32 to index
    %c0_69 = arith.constant 0 : index
    %c0_70 = arith.constant 0 : index
    %236 = vector.load %arg7[%235, %c0_69, %c0_70] : memref<2x32x128xbf16, #tpu.memory_space<vmem>>, vector<1x32x128xbf16>
    %237 = vector.shape_cast %236 : vector<1x32x128xbf16> to vector<32x128xbf16>
    %cst_71 = arith.constant dense<0.000000e+00> : vector<16x128xf32>
    %238 = tpu.matmul %234, %237, %cst_71 {dimension_numbers = #tpu.dot_dimension_numbers<[1], [0], [0], [1], [0, 0, 1, 1], [], []>} : vector<16x32xbf16>, vector<32x128xbf16>, vector<16x128xf32> -> vector<16x128xf32>
    %239 = arith.addf %161, %238 : vector<16x128xf32>
    %240 = arith.index_cast %c1_i32 : i32 to index
    %c0_72 = arith.constant 0 : index
    %c0_73 = arith.constant 0 : index
    %241 = vector.load %arg8[%240, %c0_72, %c0_73] : memref<2x1x128xf32, #tpu.memory_space<vmem>>, vector<1x1x128xf32>
    %242 = vector.shape_cast %241 : vector<1x1x128xf32> to vector<1x128xf32>
    %243 = arith.index_cast %c1_i32 : i32 to index
    %c0_74 = arith.constant 0 : index
    %c0_75 = arith.constant 0 : index
    %244 = vector.load %arg9[%243, %c0_74, %c0_75] : memref<2x1x128xf32, #tpu.memory_space<vmem>>, vector<1x1x128xf32>
    %245 = vector.shape_cast %244 : vector<1x1x128xf32> to vector<1x128xf32>
    %cst_76 = arith.constant dense<0.000000e+00> : vector<16xf32>
    %246 = vector.multi_reduction <add>, %239, %cst_76 [1] : vector<16x128xf32> to vector<16xf32>
    %247 = vector.shape_cast %246 : vector<16xf32> to vector<16x1xf32>
    %cst_77 = arith.constant 3.125000e-02 : f32
    %248 = vector.broadcast %cst_77 : f32 to vector<16x1xf32>
    %249 = arith.mulf %247, %248 : vector<16x1xf32>
    %250 = vector.broadcast %249 : vector<16x1xf32> to vector<16x128xf32>
    %251 = arith.subf %239, %250 : vector<16x128xf32>
    %cst_78 = arith.constant 0.000000e+00 : f32
    %252 = vector.shape_cast %2 : vector<1x128xi1> to vector<1x128xi1>
    %253 = vector.broadcast %252 : vector<1x128xi1> to vector<16x128xi1>
    %254 = vector.broadcast %cst_78 : f32 to vector<16x128xf32>
    %255 = arith.select %253, %251, %254 : vector<16x128xi1>, vector<16x128xf32>
    %256 = arith.mulf %255, %255 : vector<16x128xf32>
    %cst_79 = arith.constant dense<0.000000e+00> : vector<16xf32>
    %257 = vector.multi_reduction <add>, %256, %cst_79 [1] : vector<16x128xf32> to vector<16xf32>
    %258 = vector.shape_cast %257 : vector<16xf32> to vector<16x1xf32>
    %cst_80 = arith.constant 3.125000e-02 : f32
    %259 = vector.broadcast %cst_80 : f32 to vector<16x1xf32>
    %260 = arith.mulf %258, %259 : vector<16x1xf32>
    %cst_81 = arith.constant 9.99999974E-6 : f32
    %261 = vector.broadcast %cst_81 : f32 to vector<16x1xf32>
    %262 = arith.addf %260, %261 : vector<16x1xf32>
    %263 = math.rsqrt %262 : vector<16x1xf32>
    %264 = vector.broadcast %263 : vector<16x1xf32> to vector<16x128xf32>
    %265 = arith.mulf %255, %264 : vector<16x128xf32>
    %266 = vector.broadcast %242 : vector<1x128xf32> to vector<16x128xf32>
    %267 = arith.mulf %265, %266 : vector<16x128xf32>
    %268 = vector.broadcast %245 : vector<1x128xf32> to vector<16x128xf32>
    %269 = arith.addf %267, %268 : vector<16x128xf32>
    %270 = arith.truncf %269 : vector<16x128xf32> to vector<16x128xbf16>
    %271 = arith.index_cast %c1_i32 : i32 to index
    %c0_82 = arith.constant 0 : index
    %c0_83 = arith.constant 0 : index
    %272 = vector.load %arg10[%271, %c0_82, %c0_83] : memref<2x128x128xbf16, #tpu.memory_space<vmem>>, vector<1x128x128xbf16>
    %273 = vector.shape_cast %272 : vector<1x128x128xbf16> to vector<128x128xbf16>
    %cst_84 = arith.constant dense<0.000000e+00> : vector<16x128xf32>
    %274 = tpu.matmul %270, %273, %cst_84 {dimension_numbers = #tpu.dot_dimension_numbers<[1], [0], [0], [1], [0, 0, 1, 1], [], []>} : vector<16x128xbf16>, vector<128x128xbf16>, vector<16x128xf32> -> vector<16x128xf32>
    %275 = arith.index_cast %c1_i32 : i32 to index
    %c0_85 = arith.constant 0 : index
    %c0_86 = arith.constant 0 : index
    %276 = vector.load %arg11[%275, %c0_85, %c0_86] : memref<2x1x128xf32, #tpu.memory_space<vmem>>, vector<1x1x128xf32>
    %277 = vector.shape_cast %276 : vector<1x1x128xf32> to vector<1x128xf32>
    %278 = vector.broadcast %277 : vector<1x128xf32> to vector<16x128xf32>
    %279 = arith.addf %274, %278 : vector<16x128xf32>
    %cst_87 = arith.constant 0.000000e+00 : f32
    %280 = vector.broadcast %cst_87 : f32 to vector<16x128xf32>
    %281 = arith.maximumf %279, %280 : vector<16x128xf32>
    %282 = arith.truncf %281 : vector<16x128xf32> to vector<16x128xbf16>
    %283 = arith.index_cast %c1_i32 : i32 to index
    %c0_88 = arith.constant 0 : index
    %c0_89 = arith.constant 0 : index
    %284 = vector.load %arg12[%283, %c0_88, %c0_89] : memref<2x128x128xbf16, #tpu.memory_space<vmem>>, vector<1x128x128xbf16>
    %285 = vector.shape_cast %284 : vector<1x128x128xbf16> to vector<128x128xbf16>
    %cst_90 = arith.constant dense<0.000000e+00> : vector<16x128xf32>
    %286 = tpu.matmul %282, %285, %cst_90 {dimension_numbers = #tpu.dot_dimension_numbers<[1], [0], [0], [1], [0, 0, 1, 1], [], []>} : vector<16x128xbf16>, vector<128x128xbf16>, vector<16x128xf32> -> vector<16x128xf32>
    %287 = arith.index_cast %c1_i32 : i32 to index
    %c0_91 = arith.constant 0 : index
    %c0_92 = arith.constant 0 : index
    %288 = vector.load %arg13[%287, %c0_91, %c0_92] : memref<2x1x128xf32, #tpu.memory_space<vmem>>, vector<1x1x128xf32>
    %289 = vector.shape_cast %288 : vector<1x1x128xf32> to vector<1x128xf32>
    %290 = vector.broadcast %289 : vector<1x128xf32> to vector<16x128xf32>
    %291 = arith.addf %286, %290 : vector<16x128xf32>
    %292 = arith.addf %239, %291 : vector<16x128xf32>
    %c2_i32 = arith.constant 2 : i32
    %293 = vector.shape_cast %292 : vector<16x128xf32> to vector<2x8x128xf32>
    %294 = vector.extract_strided_slice %293 {offsets = [0, 0, 0], sizes = [2, 8, 32], strides = [1, 1, 1]} : vector<2x8x128xf32> to vector<2x8x32xf32>
    %c0_93 = arith.constant 0 : index
    %c0_94 = arith.constant 0 : index
    %c0_95 = arith.constant 0 : index
    %295 = vector.load %arg14[%c0_93, %c0_94, %c0_95] : memref<2x8x32xf32, #tpu.memory_space<vmem>>, vector<2x8x32xf32>
    tpu.vector_store %arg14[%c0_93, %c0_94, %c0_95], %294 {strides = array<i32>} : memref<2x8x32xf32, #tpu.memory_space<vmem>>, vector<2x8x32xf32>,
    return
  }
  func.func @transform_0(%arg0: i32) -> (i32, i32, i32) {
    %c0_i32 = arith.constant 0 : i32
    %c0_i32_0 = arith.constant 0 : i32
    %c0_i32_1 = arith.constant 0 : i32
    return %arg0, %c0_i32, %c0_i32_0 : i32, i32, i32
  }
  func.func @transform_1(%arg0: i32) -> (i32, i32) {
    %c0_i32 = arith.constant 0 : i32
    %c0_i32_0 = arith.constant 0 : i32
    %c0_i32_1 = arith.constant 0 : i32
    return %c0_i32, %c0_i32_0 : i32, i32
  }
  func.func @transform_2(%arg0: i32) -> (i32, i32) {
    %c0_i32 = arith.constant 0 : i32
    %c0_i32_0 = arith.constant 0 : i32
    %c0_i32_1 = arith.constant 0 : i32
    return %c0_i32, %c0_i32_0 : i32, i32
  }
  func.func @transform_3(%arg0: i32) -> (i32, i32, i32) {
    %c0_i32 = arith.constant 0 : i32
    %c0_i32_0 = arith.constant 0 : i32
    %c0_i32_1 = arith.constant 0 : i32
    %c0_i32_2 = arith.constant 0 : i32
    return %c0_i32, %c0_i32_0, %c0_i32_1 : i32, i32, i32
  }
  func.func @transform_4(%arg0: i32) -> (i32, i32, i32) {
    %c0_i32 = arith.constant 0 : i32
    %c0_i32_0 = arith.constant 0 : i32
    %c0_i32_1 = arith.constant 0 : i32
    %c0_i32_2 = arith.constant 0 : i32
    return %c0_i32, %c0_i32_0, %c0_i32_1 : i32, i32, i32
  }
  func.func @transform_5(%arg0: i32) -> (i32, i32, i32) {
    %c0_i32 = arith.constant 0 : i32
    %c0_i32_0 = arith.constant 0 : i32
    %c0_i32_1 = arith.constant 0 : i32
    %c0_i32_2 = arith.constant 0 : i32
    return %c0_i32, %c0_i32_0, %c0_i32_1 : i32, i32, i32
  }
  func.func @transform_6(%arg0: i32) -> (i32, i32, i32) {
    %c0_i32 = arith.constant 0 : i32
    %c0_i32_0 = arith.constant 0 : i32
    %c0_i32_1 = arith.constant 0 : i32
    %c0_i32_2 = arith.constant 0 : i32
    return %c0_i32, %c0_i32_0, %c0_i32_1 : i32, i32, i32
  }
  func.func @transform_7(%arg0: i32) -> (i32, i32, i32) {
    %c0_i32 = arith.constant 0 : i32
    %c0_i32_0 = arith.constant 0 : i32
    %c0_i32_1 = arith.constant 0 : i32
    %c0_i32_2 = arith.constant 0 : i32
    return %c0_i32, %c0_i32_0, %c0_i32_1 : i32, i32, i32
  }
  func.func @transform_8(%arg0: i32) -> (i32, i32, i32) {
    %c0_i32 = arith.constant 0 : i32
    %c0_i32_0 = arith.constant 0 : i32
    %c0_i32_1 = arith.constant 0 : i32
    %c0_i32_2 = arith.constant 0 : i32
    return %c0_i32, %c0_i32_0, %c0_i32_1 : i32, i32, i32
  }
  func.func @transform_9(%arg0: i32) -> (i32, i32, i32) {
    %c0_i32 = arith.constant 0 : i32
    %c0_i32_0 = arith.constant 0 : i32
    %c0_i32_1 = arith.constant 0 : i32
    %c0_i32_2 = arith.constant 0 : i32
    return %c0_i32, %c0_i32_0, %c0_i32_1 : i32, i32, i32
  }
  func.func @transform_10(%arg0: i32) -> (i32, i32, i32) {
    %c0_i32 = arith.constant 0 : i32
    %c0_i32_0 = arith.constant 0 : i32
    %c0_i32_1 = arith.constant 0 : i32
    %c0_i32_2 = arith.constant 0 : i32
    return %c0_i32, %c0_i32_0, %c0_i32_1 : i32, i32, i32
  }
  func.func @transform_11(%arg0: i32) -> (i32, i32, i32) {
    %c0_i32 = arith.constant 0 : i32
    %c0_i32_0 = arith.constant 0 : i32
    %c0_i32_1 = arith.constant 0 : i32
    %c0_i32_2 = arith.constant 0 : i32
    return %c0_i32, %c0_i32_0, %c0_i32_1 : i32, i32, i32
  }
  func.func @transform_12(%arg0: i32) -> (i32, i32, i32) {
    %c0_i32 = arith.constant 0 : i32
    %c0_i32_0 = arith.constant 0 : i32
    %c0_i32_1 = arith.constant 0 : i32
    %c0_i32_2 = arith.constant 0 : i32
    return %c0_i32, %c0_i32_0, %c0_i32_1 : i32, i32, i32
  }
  func.func @transform_13(%arg0: i32) -> (i32, i32, i32) {
    %c0_i32 = arith.constant 0 : i32
    %c0_i32_0 = arith.constant 0 : i32
    %c0_i32_1 = arith.constant 0 : i32
    return %arg0, %c0_i32, %c0_i32_0 : i32, i32, i32
  }
}

</mosaic_0001>

<llo_original>
// kernel: tpu_custom_call.1
$region0: #{tpu_custom_call.1}
  #allocation0 [shape = 'u32[]', space=smem, size = 0x4, offset = 0x4, fixed_abs, tag = 'smem constant byte address 0x4 - core index']
  #allocation1 [shape = 'u32[144,128]{1,0:T(1,128)}', space=vmem, size = 0x12000, scoped, tag = 'internal scratch']
  %s0 = inlined_call_operand.hbm [shape: f32[2,8,128], index: 0, kind: input, shape index: {}]
  %s1 = inlined_call_operand.vmem [shape: f32[1,128], index: 1, kind: input, shape index: {}]
  %s2 = inlined_call_operand.hbm [shape: f32[1,128], index: 2, kind: input, shape index: {}]
  %s3 = inlined_call_operand.vmem [shape: f32[2,1,128], index: 3, kind: input, shape index: {}]
  %s4 = inlined_call_operand.vmem [shape: f32[2,1,128], index: 4, kind: input, shape index: {}]
  %s5 = inlined_call_operand.hbm [shape: bf16[2,128,384], index: 5, kind: input, shape index: {}]
  %s6 = inlined_call_operand.hbm [shape: bf16[2,32,128], index: 6, kind: input, shape index: {}]
  %s7 = inlined_call_operand.vmem [shape: f32[2,1,128], index: 7, kind: input, shape index: {}]
  %s8 = inlined_call_operand.vmem [shape: f32[2,1,128], index: 8, kind: input, shape index: {}]
  %s9 = inlined_call_operand.hbm [shape: bf16[2,128,128], index: 9, kind: input, shape index: {}]
  %s10 = inlined_call_operand.vmem [shape: f32[2,1,128], index: 10, kind: input, shape index: {}]
  %s11 = inlined_call_operand.hbm [shape: bf16[2,128,128], index: 11, kind: input, shape index: {}]
  %s12 = inlined_call_operand.vmem [shape: f32[2,1,128], index: 12, kind: input, shape index: {}]
  %s13 = inlined_call_operand.hbm [shape: f32[2,8,32], index: 13, kind: output, shape index: {}]
  %s14 = sld [smem:[#allocation0]]
  $region86: #{tpu_custom_call.1} parent=0
    _
  %s16 = ssub.s32 1, %s14
  %s17 = scalar_select 0, %s16, %s14
  $region1: #{tpu_custom_call.1} parent=0
    #allocation2 [shape = 'u8[8192]{0}', space=vmem, size = 0x2000, scoped, tag = 'input window, operand 0, single buffered']
    #allocation3 [shape = 's32[1]{0}', space=sflag, size = 0x4, scoped, tag = 'scoped memory for tpu_custom_call.1']
    #allocation4 [shape = 's32[1]{0}', space=sflag, size = 0x4, scoped, tag = 'scoped memory for tpu_custom_call.1']
    #allocation5 [shape = 'u8[512]{0}', space=vmem, size = 0x400, scoped, tag = 'input window, operand 2, single buffered']
    #allocation6 [shape = 's32[1]{0}', space=sflag, size = 0x4, scoped, tag = 'scoped memory for tpu_custom_call.1']
    #allocation7 [shape = 'u8[196608]{0}', space=vmem, size = 0x30000, scoped, tag = 'input window, operand 5, single buffered']
    #allocation8 [shape = 'u8[16384]{0}', space=vmem, size = 0x4000, scoped, tag = 'input window, operand 6, single buffered']
    #allocation9 [shape = 's32[1]{0}', space=sflag, size = 0x4, scoped, tag = 'scoped memory for tpu_custom_call.1']
    #allocation10 [shape = 'u8[65536]{0}', space=vmem, size = 0x10000, scoped, tag = 'input window, operand 9, single buffered']
    #allocation11 [shape = 'u8[65536]{0}', space=vmem, size = 0x10000, scoped, tag = 'input window, operand 11, single buffered']
    #allocation12 [shape = 's32[1]{0}', space=sflag, size = 0x4, scoped, tag = 'scoped memory for tpu_custom_call.1']
    #allocation13 [shape = 'u8[8192]{0}', space=vmem, size = 0x2000, scoped, tag = 'output window, operand 0, single buffered']
    %18 = vsyncpa [#allocation3], 0
    %19 = vsyncpa [#allocation6], 0
    %20 = vsyncpa [#allocation9], 0
    %21 = vsyncpa [#allocation12], 0
    %22 = vsyncpa [#allocation4], 0
    // Predicated region
    $region2: #{tpu_custom_call.1} parent=1 // pred_check
      _
    $region3: #{tpu_custom_call.1} parent=1 // pred_check_branch
      %24 = sbr.rel (0) target = $region5
    $region4: #{tpu_custom_call.1} parent=1 // pred_region
      %s26 = ssub.s32 256, 256
      %27 = vsyncadd [#allocation3], %s26
      %s28 = sshll.u32 [#allocation2], 4
      %s29 = int_to_ptr.vmem [resolvable:$true] %s28
      %34 = dma.hbm_to_vmem [thread:$0]  %s0, 256, %s29, [#allocation3], 128, 128, 8
    $region5: #{tpu_custom_call.1} parent=1 // pred_fallthru
      _
    // Predicated region
    $region6: #{tpu_custom_call.1} parent=1 // pred_check
      _
    $region7: #{tpu_custom_call.1} parent=1 // pred_check_branch
      %36 = sbr.rel (0) target = $region9
    $region8: #{tpu_custom_call.1} parent=1 // pred_region
      _
    $region9: #{tpu_custom_call.1} parent=1 // pred_fallthru
      _
    // Predicated region
    $region10: #{tpu_custom_call.1} parent=1 // pred_check
      _
    $region11: #{tpu_custom_call.1} parent=1 // pred_check_branch
      %38 = sbr.rel (0) target = $region13
    $region12: #{tpu_custom_call.1} parent=1 // pred_region
      %s40 = ssub.s32 16, 16
      %41 = vsyncadd [#allocation6], %s40
      %s43 = sshll.u32 [#allocation5], 4
      %s44 = int_to_ptr.vmem [resolvable:$true] %s43
      %46 = dma.hbm_to_vmem [thread:$0]  %s2, 16, %s44, [#allocation6]
    $region13: #{tpu_custom_call.1} parent=1 // pred_fallthru
      _
    // Predicated region
    $region14: #{tpu_custom_call.1} parent=1 // pred_check
      _
    $region15: #{tpu_custom_call.1} parent=1 // pred_check_branch
      %48 = sbr.rel (0) target = $region17
    $region16: #{tpu_custom_call.1} parent=1 // pred_region
      _
    $region17: #{tpu_custom_call.1} parent=1 // pred_fallthru
      _
    // Predicated region
    $region18: #{tpu_custom_call.1} parent=1 // pred_check
      _
    $region19: #{tpu_custom_call.1} parent=1 // pred_check_branch
      %50 = sbr.rel (0) target = $region21
    $region20: #{tpu_custom_call.1} parent=1 // pred_region
      _
    $region21: #{tpu_custom_call.1} parent=1 // pred_fallthru
      _
    // Predicated region
    $region22: #{tpu_custom_call.1} parent=1 // pred_check
      _
    $region23: #{tpu_custom_call.1} parent=1 // pred_check_branch
      %52 = sbr.rel (0) target = $region25
    $region24: #{tpu_custom_call.1} parent=1 // pred_region
      %s54 = ssub.s32 6144, 6144
      %55 = vsyncadd [#allocation6], %s54
      %s56 = sshll.u32 [#allocation7], 4
      %s57 = int_to_ptr.vmem [resolvable:$true] %s56
      %62 = dma.hbm_to_vmem [thread:$0]  %s5, 6144, %s57, [#allocation6], 192, 192, 12
    $region25: #{tpu_custom_call.1} parent=1 // pred_fallthru
      _
    // Predicated region
    $region26: #{tpu_custom_call.1} parent=1 // pred_check
      _
    $region27: #{tpu_custom_call.1} parent=1 // pred_check_branch
      %64 = sbr.rel (0) target = $region29
    $region28: #{tpu_custom_call.1} parent=1 // pred_region
      %s66 = ssub.s32 512, 512
      %67 = vsyncadd [#allocation9], %s66
      %s68 = sshll.u32 [#allocation8], 4
      %s69 = int_to_ptr.vmem [resolvable:$true] %s68
      %74 = dma.hbm_to_vmem [thread:$0]  %s6, 512, %s69, [#allocation9], 64, 64, 4
    $region29: #{tpu_custom_call.1} parent=1 // pred_fallthru
      _
    // Predicated region
    $region30: #{tpu_custom_call.1} parent=1 // pred_check
      _
    $region31: #{tpu_custom_call.1} parent=1 // pred_check_branch
      %76 = sbr.rel (0) target = $region33
    $region32: #{tpu_custom_call.1} parent=1 // pred_region
      _
    $region33: #{tpu_custom_call.1} parent=1 // pred_fallthru
      _
    // Predicated region
    $region34: #{tpu_custom_call.1} parent=1 // pred_check
      _
    $region35: #{tpu_custom_call.1} parent=1 // pred_check_branch
      %78 = sbr.rel (0) target = $region37
    $region36: #{tpu_custom_call.1} parent=1 // pred_region
      _
    $region37: #{tpu_custom_call.1} parent=1 // pred_fallthru
      _
    // Predicated region
    $region38: #{tpu_custom_call.1} parent=1 // pred_check
      _
    $region39: #{tpu_custom_call.1} parent=1 // pred_check_branch
      %80 = sbr.rel (0) target = $region41
    $region40: #{tpu_custom_call.1} parent=1 // pred_region
      %s82 = ssub.s32 2048, 2048
      %83 = vsyncadd [#allocation9], %s82
      %s84 = sshll.u32 [#allocation10], 4
      %s85 = int_to_ptr.vmem [resolvable:$true] %s84
      %90 = dma.hbm_to_vmem [thread:$0]  %s9, 2048, %s85, [#allocation9], 64, 64, 4
    $region41: #{tpu_custom_call.1} parent=1 // pred_fallthru
      _
    // Predicated region
    $region42: #{tpu_custom_call.1} parent=1 // pred_check
      _
    $region43: #{tpu_custom_call.1} parent=1 // pred_check_branch
      %92 = sbr.rel (0) target = $region45
    $region44: #{tpu_custom_call.1} parent=1 // pred_region
      _
    $region45: #{tpu_custom_call.1} parent=1 // pred_fallthru
      _
    // Predicated region
    $region46: #{tpu_custom_call.1} parent=1 // pred_check
      _
    $region47: #{tpu_custom_call.1} parent=1 // pred_check_branch
      %94 = sbr.rel (0) target = $region49
    $region48: #{tpu_custom_call.1} parent=1 // pred_region
      %s96 = ssub.s32 2048, 2048
      %97 = vsyncadd [#allocation12], %s96
      %s98 = sshll.u32 [#allocation11], 4
      %s99 = int_to_ptr.vmem [resolvable:$true] %s98
      %104 = dma.hbm_to_vmem [thread:$0]  %s11, 2048, %s99, [#allocation12], 64, 64, 4
    $region49: #{tpu_custom_call.1} parent=1 // pred_fallthru
      _
    // Predicated region
    $region50: #{tpu_custom_call.1} parent=1 // pred_check
      _
    $region51: #{tpu_custom_call.1} parent=1 // pred_check_branch
      %106 = sbr.rel (0) target = $region53
    $region52: #{tpu_custom_call.1} parent=1 // pred_region
      _
    $region53: #{tpu_custom_call.1} parent=1 // pred_fallthru
      _
    // Predicated region
    $region54: #{tpu_custom_call.1} parent=1 // pred_check
      _
    $region55: #{tpu_custom_call.1} parent=1 // pred_check_branch
      %108 = sbr.rel (0) target = $region57
    $region56: #{tpu_custom_call.1} parent=1 // pred_region
      %109 = dma.done [#allocation3], 256
    $region57: #{tpu_custom_call.1} parent=1 // pred_fallthru
      _
    // Predicated region
    $region58: #{tpu_custom_call.1} parent=1 // pred_check
      _
    $region59: #{tpu_custom_call.1} parent=1 // pred_check_branch
      %111 = sbr.rel (0) target = $region61
    $region60: #{tpu_custom_call.1} parent=1 // pred_region
      %112 = dma.done [#allocation6], 16
    $region61: #{tpu_custom_call.1} parent=1 // pred_fallthru
      _
    // Predicated region
    $region62: #{tpu_custom_call.1} parent=1 // pred_check
      _
    $region63: #{tpu_custom_call.1} parent=1 // pred_check_branch
      %114 = sbr.rel (0) target = $region65
    $region64: #{tpu_custom_call.1} parent=1 // pred_region
      %115 = dma.done [#allocation6], 6144
    $region65: #{tpu_custom_call.1} parent=1 // pred_fallthru
      _
    // Predicated region
    $region66: #{tpu_custom_call.1} parent=1 // pred_check
      _
    $region67: #{tpu_custom_call.1} parent=1 // pred_check_branch
      %117 = sbr.rel (0) target = $region69
    $region68: #{tpu_custom_call.1} parent=1 // pred_region
      %118 = dma.done [#allocation9], 512
    $region69: #{tpu_custom_call.1} parent=1 // pred_fallthru
      _
    // Predicated region
    $region70: #{tpu_custom_call.1} parent=1 // pred_check
      _
    $region71: #{tpu_custom_call.1} parent=1 // pred_check_branch
      %120 = sbr.rel (0) target = $region73
    $region72: #{tpu_custom_call.1} parent=1 // pred_region
      %121 = dma.done [#allocation9], 2048
    $region73: #{tpu_custom_call.1} parent=1 // pred_fallthru
      _
    // Predicated region
    $region74: #{tpu_custom_call.1} parent=1 // pred_check
      _
    $region75: #{tpu_custom_call.1} parent=1 // pred_check_branch
      %123 = sbr.rel (0) target = $region77
    $region76: #{tpu_custom_call.1} parent=1 // pred_region
      %124 = dma.done [#allocation12], 2048
    $region77: #{tpu_custom_call.1} parent=1 // pred_fallthru
      _
    %v126 = vlaneseq
    %v127 = vand.u32 %v126, 127
    %vm128 = vcmp.lt.s32.totalorder %v127, 32
    %v129 = vld [vmem:[#allocation2] sm:$0xff]
    %v130 = vld [vmem:[#allocation2 + $0x8] sm:$0xff]
    %v131 = vld [vmem:[%s1] sm:$0x1]
    %v132 = vld [vmem:[#allocation5] sm:$0x1]
    %133 = vadd.xlane.f32.xlu0 %v129
    %v134 = vpop.xlane.xlu0 %133
    %135 = vadd.xlane.f32.xlu0 %v130
    %v136 = vpop.xlane.xlu0 %135
    %v137 = vmul.f32 %v134, 0.03125
    %v138 = vmul.f32 %v136, 0.03125
    %v139 = vsub.f32 %v129, %v137
    %v140 = vsub.f32 %v130, %v138
    %v141 = vsel %vm128, 1, 0
    %vm142 = vcmp.eq.s32.totalorder %v141, 1
    %v143 = vsel %vm142, %v139, 0.0
    %v144 = vsel %vm142, %v140, 0.0
    %v145 = vmul.f32 %v143, %v143
    %v146 = vmul.f32 %v144, %v144
    %147 = vadd.xlane.f32.xlu0 %v145
    %v148 = vpop.xlane.xlu0 %147
    %149 = vadd.xlane.f32.xlu0 %v146
    %v150 = vpop.xlane.xlu0 %149
    %v151 = vmul.f32 %v148, 0.03125
    %v152 = vmul.f32 %v150, 0.03125
    %v153 = vadd.f32 %v151, 1e-05
    %v154 = vadd.f32 %v152, 1e-05
    %v155 = vrsqrt.pop %v153
    %v156 = vrsqrt.pop %v154
    %v157 = vmul.f32 %v143, %v155
    %v158 = vmul.f32 %v144, %v156
    %v160 = vlaneseq
    %v161 = vshrl.u32 %v160, 7
    %v162 = vsub.s32 0, %v161
    %v163 = vrot.slane %v131, %v162
    %v165 = vmul.f32 %v157, %v163
    %v166 = vmul.f32 %v158, %v163
    %v168 = vlaneseq
    %v169 = vshrl.u32 %v168, 7
    %v170 = vsub.s32 0, %v169
    %v171 = vrot.slane %v132, %v170
    %v173 = vadd.f32 %v165, %v171
    %v174 = vadd.f32 %v166, %v171
    %v175 = vld [vmem:[%s3] sm:$0x1]
    %v176 = vld [vmem:[%s4] sm:$0x1]
    %177 = vadd.xlane.f32.xlu0 %v173
    %v178 = vpop.xlane.xlu0 %177
    %179 = vadd.xlane.f32.xlu0 %v174
    %v180 = vpop.xlane.xlu0 %179
    %v181 = vmul.f32 %v178, 0.03125
    %v182 = vmul.f32 %v180, 0.03125
    %v183 = vsub.f32 %v173, %v181
    %v184 = vsub.f32 %v174, %v182
    %v185 = vsel %vm142, %v183, 0.0
    %v186 = vsel %vm142, %v184, 0.0
    %v187 = vmul.f32 %v185, %v185
    %v188 = vmul.f32 %v186, %v186
    %189 = vadd.xlane.f32.xlu0 %v187
    %v190 = vpop.xlane.xlu0 %189
    %191 = vadd.xlane.f32.xlu0 %v188
    %v192 = vpop.xlane.xlu0 %191
    %v193 = vmul.f32 %v190, 0.03125
    %v194 = vmul.f32 %v192, 0.03125
    %v195 = vadd.f32 %v193, 1e-05
    %v196 = vadd.f32 %v194, 1e-05
    %v197 = vrsqrt.pop %v195
    %v198 = vrsqrt.pop %v196
    %v199 = vmul.f32 %v185, %v197
    %v200 = vmul.f32 %v186, %v198
    %v202 = vlaneseq
    %v203 = vshrl.u32 %v202, 7
    %v204 = vsub.s32 0, %v203
    %v205 = vrot.slane %v175, %v204
    %v207 = vmul.f32 %v199, %v205
    %v208 = vmul.f32 %v200, %v205
    %v210 = vlaneseq
    %v211 = vshrl.u32 %v210, 7
    %v212 = vsub.s32 0, %v211
    %v213 = vrot.slane %v176, %v212
    %v215 = vadd.f32 %v207, %v213
    %v216 = vadd.f32 %v208, %v213
    %v217 = vpack.c.bf16 %v216, %v215
    %v218 = vld [vmem:[#allocation7] sm:$0xff]
    %v219 = vld [vmem:[#allocation7 + $0x8] sm:$0xf]
    %v220 = vld [vmem:[#allocation7 + $0xc] sm:$0xff]
    %v221 = vld [vmem:[#allocation7 + $0x14] sm:$0xf]
    %v222 = vld [vmem:[#allocation7 + $0x18] sm:$0xff]
    %v223 = vld [vmem:[#allocation7 + $0x20] sm:$0xf]
    %v224 = vld [vmem:[#allocation7 + $0x24] sm:$0xff]
    %v225 = vld [vmem:[#allocation7 + $0x2c] sm:$0xf]
    %v226 = vld [vmem:[#allocation7 + $0x30] sm:$0xff]
    %v227 = vld [vmem:[#allocation7 + $0x38] sm:$0xf]
    %v228 = vld [vmem:[#allocation7 + $0x3c] sm:$0xff]
    %v229 = vld [vmem:[#allocation7 + $0x44] sm:$0xf]
    %v230 = vld [vmem:[#allocation7 + $0x48] sm:$0xff]
    %v231 = vld [vmem:[#allocation7 + $0x50] sm:$0xf]
    %v232 = vld [vmem:[#allocation7 + $0x54] sm:$0xff]
    %v233 = vld [vmem:[#allocation7 + $0x5c] sm:$0xf]
    %v234 = vld [vmem:[#allocation7 + $0x60] sm:$0xff]
    %v235 = vld [vmem:[#allocation7 + $0x68] sm:$0xf]
    %v236 = vld [vmem:[#allocation7 + $0x6c] sm:$0xff]
    %v237 = vld [vmem:[#allocation7 + $0x74] sm:$0xf]
    %v238 = vld [vmem:[#allocation7 + $0x78] sm:$0xff]
    %v239 = vld [vmem:[#allocation7 + $0x80] sm:$0xf]
    %v240 = vld [vmem:[#allocation7 + $0x84] sm:$0xff]
    %v241 = vld [vmem:[#allocation7 + $0x8c] sm:$0xf]
    %v242 = vld [vmem:[#allocation7 + $0x90] sm:$0xff]
    %v243 = vld [vmem:[#allocation7 + $0x98] sm:$0xf]
    %v244 = vld [vmem:[#allocation7 + $0x9c] sm:$0xff]
    %v245 = vld [vmem:[#allocation7 + $0xa4] sm:$0xf]
    %v246 = vld [vmem:[#allocation7 + $0xa8] sm:$0xff]
    %v247 = vld [vmem:[#allocation7 + $0xb0] sm:$0xf]
    %v248 = vld [vmem:[#allocation7 + $0xb4] sm:$0xff]
    %v249 = vld [vmem:[#allocation7 + $0xbc] sm:$0xf]
    %v282 = vunpack.c.l.b16 %v218
    %v283 = vunpack.c.h.b16 %v218
    %v284 = vunpack.c.l.b16 %v219
    %v285 = vunpack.c.l.b16 %v220
    %v286 = vunpack.c.h.b16 %v220
    %v287 = vunpack.c.l.b16 %v221
    %v288 = vunpack.c.l.b16 %v222
    %v289 = vunpack.c.h.b16 %v222
    %v290 = vunpack.c.l.b16 %v223
    %v291 = vunpack.c.l.b16 %v224
    %v292 = vunpack.c.h.b16 %v224
    %v293 = vunpack.c.l.b16 %v225
    %v294 = vunpack.c.l.b16 %v226
    %v295 = vunpack.c.h.b16 %v226
    %v296 = vunpack.c.l.b16 %v227
    %v297 = vunpack.c.l.b16 %v228
    %v298 = vunpack.c.h.b16 %v228
    %v299 = vunpack.c.l.b16 %v229
    %v300 = vunpack.c.l.b16 %v230
    %v301 = vunpack.c.h.b16 %v230
    %v302 = vunpack.c.l.b16 %v231
    %v303 = vunpack.c.l.b16 %v232
    %v304 = vunpack.c.h.b16 %v232
    %v305 = vunpack.c.l.b16 %v233
    %v306 = vunpack.c.l.b16 %v234
    %v307 = vunpack.c.h.b16 %v234
    %v308 = vunpack.c.l.b16 %v235
    %v309 = vunpack.c.l.b16 %v236
    %v310 = vunpack.c.h.b16 %v236
    %v311 = vunpack.c.l.b16 %v237
    %v312 = vunpack.c.l.b16 %v238
    %v313 = vunpack.c.h.b16 %v238
    %v314 = vunpack.c.l.b16 %v239
    %v315 = vunpack.c.l.b16 %v240
    %v316 = vunpack.c.h.b16 %v240
    %v317 = vunpack.c.l.b16 %v241
    %v318 = vunpack.c.l.b16 %v242
    %v319 = vunpack.c.h.b16 %v242
    %v320 = vunpack.c.l.b16 %v243
    %v321 = vunpack.c.l.b16 %v244
    %v322 = vunpack.c.h.b16 %v244
    %v323 = vunpack.c.l.b16 %v245
    %v324 = vunpack.c.l.b16 %v246
    %v325 = vunpack.c.h.b16 %v246
    %v326 = vunpack.c.l.b16 %v247
    %v327 = vunpack.c.l.b16 %v248
    %v328 = vunpack.c.h.b16 %v248
    %v329 = vunpack.c.l.b16 %v249
    %v330 = vpack.c.b16 %v285, %v282
    %v331 = vpack.c.b16 %v286, %v283
    %v332 = vpack.c.b16 %v287, %v284
    %v333 = vpack.c.b16 %v291, %v288
    %v334 = vpack.c.b16 %v292, %v289
    %v335 = vpack.c.b16 %v293, %v290
    %v336 = vpack.c.b16 %v297, %v294
    %v337 = vpack.c.b16 %v298, %v295
    %v338 = vpack.c.b16 %v299, %v296
    %v339 = vpack.c.b16 %v303, %v300
    %v340 = vpack.c.b16 %v304, %v301
    %v341 = vpack.c.b16 %v305, %v302
    %v342 = vpack.c.b16 %v309, %v306
    %v343 = vpack.c.b16 %v310, %v307
    %v344 = vpack.c.b16 %v311, %v308
    %v345 = vpack.c.b16 %v315, %v312
    %v346 = vpack.c.b16 %v316, %v313
    %v347 = vpack.c.b16 %v317, %v314
    %v348 = vpack.c.b16 %v321, %v318
    %v349 = vpack.c.b16 %v322, %v319
    %v350 = vpack.c.b16 %v323, %v320
    %v351 = vpack.c.b16 %v327, %v324
    %v352 = vpack.c.b16 %v328, %v325
    %v353 = vpack.c.b16 %v329, %v326
    %378 = vmatprep.subr.bf16.mxu0 %v331
    %379 = vmatpush1.bf16.msra.mxu0 %v330
    %380 = vmatprep.subr.bf16.mxu0 %v334
    %381 = vmatpush1.bf16.msra.mxu0 %v333
    %382 = vmatprep.subr.bf16.mxu0 %v337
    %383 = vmatpush1.bf16.msra.mxu0 %v336
    %384 = vmatprep.subr.bf16.mxu0 %v340
    %385 = vmatpush1.bf16.msra.mxu0 %v339
    %386 = vmatprep.subr.bf16.mxu0 %v343
    %387 = vmatpush1.bf16.msra.mxu0 %v342
    %388 = vmatprep.subr.bf16.mxu0 %v346
    %389 = vmatpush1.bf16.msra.mxu0 %v345
    %390 = vmatprep.subr.bf16.mxu0 %v349
    %391 = vmatpush1.bf16.msra.mxu0 %v348
    %392 = vmatprep.subr.bf16.mxu0 %v352
    %393 = vmatpush1.bf16.msra.mxu0 %v351
    %394 = vmatprep.subr.bf16.mxu0 0
    %395 = vmatpush1.bf16.msra.mxu0 0
    %396 = vmatprep.subr.bf16.mxu0 0
    %397 = vmatpush1.bf16.msra.mxu0 0
    %398 = vmatprep.subr.bf16.mxu0 0
    %399 = vmatpush1.bf16.msra.mxu0 0
    %400 = vmatprep.subr.bf16.mxu0 0
    %401 = vmatpush1.bf16.msra.mxu0 0
    %402 = vmatprep.subr.bf16.mxu0 0
    %403 = vmatpush1.bf16.msra.mxu0 0
    %404 = vmatprep.subr.bf16.mxu0 0
    %405 = vmatpush1.bf16.msra.mxu0 0
    %406 = vmatprep.subr.bf16.mxu0 0
    %407 = vmatpush1.bf16.msra.mxu0 0
    %408 = vmatprep.subr.bf16.mxu0 0
    %409 = vmatpush1.bf16.msra.mxu0 0
    %410 = vmatprep.mubr.bf16.mxu0 0
    %411 = vmatmul.mubr.bf16.gmra.mrb[0].mxu0 %v217
    %v412 = vpop.f32.mrb[0].mxu0
    %v413 = vadd.f32 0.0, %v412
    %v414 = vpop.f32.mrb[0].mxu0
    %v415 = vadd.f32 0.0, %v414
    %v416 = vpop.f32.mrb[0].mxu0
    %v417 = vadd.f32 0.0, %v416
    %v418 = vpop.f32.mrb[0].mxu0
    %v419 = vadd.f32 0.0, %v418
    %420 = vdwg.mxu0
    %421 = vmatprep.subr.bf16.mxu0 0
    %422 = vmatpush1.bf16.msra.mxu0 %v332
    %423 = vmatprep.subr.bf16.mxu0 0
    %424 = vmatpush1.bf16.msra.mxu0 %v335
    %425 = vmatprep.subr.bf16.mxu0 0
    %426 = vmatpush1.bf16.msra.mxu0 %v338
    %427 = vmatprep.subr.bf16.mxu0 0
    %428 = vmatpush1.bf16.msra.mxu0 %v341
    %429 = vmatprep.subr.bf16.mxu0 0
    %430 = vmatpush1.bf16.msra.mxu0 %v344
    %431 = vmatprep.subr.bf16.mxu0 0
    %432 = vmatpush1.bf16.msra.mxu0 %v347
    %433 = vmatprep.subr.bf16.mxu0 0
    %434 = vmatpush1.bf16.msra.mxu0 %v350
    %435 = vmatprep.subr.bf16.mxu0 0
    %436 = vmatpush1.bf16.msra.mxu0 %v353
    %437 = vmatprep.subr.bf16.mxu0 0
    %438 = vmatpush1.bf16.msra.mxu0 0
    %439 = vmatprep.subr.bf16.mxu0 0
    %440 = vmatpush1.bf16.msra.mxu0 0
    %441 = vmatprep.subr.bf16.mxu0 0
    %442 = vmatpush1.bf16.msra.mxu0 0
    %443 = vmatprep.subr.bf16.mxu0 0
    %444 = vmatpush1.bf16.msra.mxu0 0
    %445 = vmatprep.subr.bf16.mxu0 0
    %446 = vmatpush1.bf16.msra.mxu0 0
    %447 = vmatprep.subr.bf16.mxu0 0
    %448 = vmatpush1.bf16.msra.mxu0 0
    %449 = vmatprep.subr.bf16.mxu0 0
    %450 = vmatpush1.bf16.msra.mxu0 0
    %451 = vmatprep.subr.bf16.mxu0 0
    %452 = vmatpush1.bf16.msra.mxu0 0
    %453 = vmatprep.mubr.bf16.mxu0 0
    %454 = vmatmul.mubr.bf16.gmra.mrb[0].mxu0 %v217
    %v455 = vpop.f32.mrb[0].mxu0
    %v456 = vadd.f32 0.0, %v455
    %v457 = vpop.f32.mrb[0].mxu0
    %v458 = vpop.f32.mrb[0].mxu0
    %v459 = vadd.f32 0.0, %v458
    %v460 = vpop.f32.mrb[0].mxu0
    %461 = vdwg.mxu0
    %464 = vrot.lane.b32.xlu0 %v413, 120
    %v465 = vpop.permute.xlu0 %464
    %466 = vrot.lane.b32.xlu0 %v417, 120
    %v467 = vpop.permute.xlu0 %466
    %470 = vrot.lane.b32.xlu0 %v413, 112
    %v471 = vpop.permute.xlu0 %470
    %472 = vrot.lane.b32.xlu0 %v417, 112
    %v473 = vpop.permute.xlu0 %472
    %476 = vrot.lane.b32.xlu0 %v413, 104
    %v477 = vpop.permute.xlu0 %476
    %478 = vrot.lane.b32.xlu0 %v417, 104
    %v479 = vpop.permute.xlu0 %478
    %v482 = vcombine.low %v413, %v471
    %v483 = vcombine.high %v413, %v471
    %v485 = vunpack.c.l.s4 1983009808
    %v486 = vunpack.c.0.s8 %v485
    %v487 = vlaneseq
    %v488 = vshrl.u32 %v487, 7
    %v489 = vsub.s32 %v486, %v488
    %v490 = vrot.slane %v482, %v489
    %v492 = vunpack.c.l.s4 1983009808
    %v493 = vunpack.c.0.s8 %v492
    %v494 = vlaneseq
    %v495 = vshrl.u32 %v494, 7
    %v496 = vsub.s32 %v493, %v495
    %v497 = vrot.slane %v483, %v496
    %v498 = vcombine.low %v465, %v477
    %v499 = vcombine.high %v465, %v477
    %v501 = vunpack.c.l.s4 1983009808
    %v502 = vunpack.c.0.s8 %v501
    %v503 = vlaneseq
    %v504 = vshrl.u32 %v503, 7
    %v505 = vsub.s32 %v502, %v504
    %v506 = vrot.slane %v498, %v505
    %v508 = vunpack.c.l.s4 1983009808
    %v509 = vunpack.c.0.s8 %v508
    %v510 = vlaneseq
    %v511 = vshrl.u32 %v510, 7
    %v512 = vsub.s32 %v509, %v511
    %v513 = vrot.slane %v499, %v512
    %v514 = vcombine.low %v490, %v506
    %v515 = vcombine.high %v490, %v506
    %v517 = vunpack.c.l.s4 1934713408
    %v518 = vunpack.c.0.s8 %v517
    %v519 = vlaneseq
    %v520 = vshrl.u32 %v519, 7
    %v521 = vsub.s32 %v518, %v520
    %v522 = vrot.slane %v514, %v521
    %v524 = vunpack.c.l.s4 1934713408
    %v525 = vunpack.c.0.s8 %v524
    %v526 = vlaneseq
    %v527 = vshrl.u32 %v526, 7
    %v528 = vsub.s32 %v525, %v527
    %v529 = vrot.slane %v515, %v528
    %v530 = vcombine.low %v497, %v513
    %v531 = vcombine.high %v497, %v513
    %v533 = vunpack.c.l.s4 1934713408
    %v534 = vunpack.c.0.s8 %v533
    %v535 = vlaneseq
    %v536 = vshrl.u32 %v535, 7
    %v537 = vsub.s32 %v534, %v536
    %v538 = vrot.slane %v530, %v537
    %v540 = vunpack.c.l.s4 1934713408
    %v541 = vunpack.c.0.s8 %v540
    %v542 = vlaneseq
    %v543 = vshrl.u32 %v542, 7
    %v544 = vsub.s32 %v541, %v543
    %v545 = vrot.slane %v531, %v544
    %v546 = vcombine.high %v522, 0.0
    %v547 = vcombine.high %v529, 0.0
    %v548 = vcombine.high %v538, 0.0
    %v549 = vcombine.high %v545, 0.0
    %v550 = vcombine.low %v417, %v473
    %v551 = vcombine.high %v417, %v473
    %v553 = vunpack.c.l.s4 1983009808
    %v554 = vunpack.c.0.s8 %v553
    %v555 = vlaneseq
    %v556 = vshrl.u32 %v555, 7
    %v557 = vsub.s32 %v554, %v556
    %v558 = vrot.slane %v550, %v557
    %v560 = vunpack.c.l.s4 1983009808
    %v561 = vunpack.c.0.s8 %v560
    %v562 = vlaneseq
    %v563 = vshrl.u32 %v562, 7
    %v564 = vsub.s32 %v561, %v563
    %v565 = vrot.slane %v551, %v564
    %v566 = vcombine.low %v467, %v479
    %v567 = vcombine.high %v467, %v479
    %v569 = vunpack.c.l.s4 1983009808
    %v570 = vunpack.c.0.s8 %v569
    %v571 = vlaneseq
    %v572 = vshrl.u32 %v571, 7
    %v573 = vsub.s32 %v570, %v572
    %v574 = vrot.slane %v566, %v573
    %v576 = vunpack.c.l.s4 1983009808
    %v577 = vunpack.c.0.s8 %v576
    %v578 = vlaneseq
    %v579 = vshrl.u32 %v578, 7
    %v580 = vsub.s32 %v577, %v579
    %v581 = vrot.slane %v567, %v580
    %v582 = vcombine.low %v558, %v574
    %v583 = vcombine.high %v558, %v574
    %v585 = vunpack.c.l.s4 1934713408
    %v586 = vunpack.c.0.s8 %v585
    %v587 = vlaneseq
    %v588 = vshrl.u32 %v587, 7
    %v589 = vsub.s32 %v586, %v588
    %v590 = vrot.slane %v582, %v589
    %v592 = vunpack.c.l.s4 1934713408
    %v593 = vunpack.c.0.s8 %v592
    %v594 = vlaneseq
    %v595 = vshrl.u32 %v594, 7
    %v596 = vsub.s32 %v593, %v595
    %v597 = vrot.slane %v583, %v596
    %v598 = vcombine.low %v565, %v581
    %v599 = vcombine.high %v565, %v581
    %v601 = vunpack.c.l.s4 1934713408
    %v602 = vunpack.c.0.s8 %v601
    %v603 = vlaneseq
    %v604 = vshrl.u32 %v603, 7
    %v605 = vsub.s32 %v602, %v604
    %v606 = vrot.slane %v598, %v605
    %v608 = vunpack.c.l.s4 1934713408
    %v609 = vunpack.c.0.s8 %v608
    %v610 = vlaneseq
    %v611 = vshrl.u32 %v610, 7
    %v612 = vsub.s32 %v609, %v611
    %v613 = vrot.slane %v599, %v612
    %v614 = vcombine.high %v590, 0.0
    %v615 = vcombine.high %v597, 0.0
    %v616 = vcombine.high %v606, 0.0
    %v617 = vcombine.high %v613, 0.0
    %v618 = vcombine.low %v522, %v529
    %v620 = vunpack.c.l.s4 1983009808
    %v621 = vunpack.c.0.s8 %v620
    %v622 = vlaneseq
    %v623 = vshrl.u32 %v622, 7
    %v624 = vsub.s32 %v621, %v623
    %v625 = vrot.slane %v618, %v624
    %v626 = vcombine.low %v546, %v547
    %v628 = vunpack.c.l.s4 1983009808
    %v629 = vunpack.c.0.s8 %v628
    %v630 = vlaneseq
    %v631 = vshrl.u32 %v630, 7
    %v632 = vsub.s32 %v629, %v631
    %v633 = vrot.slane %v626, %v632
    %v634 = vcombine.low %v538, %v545
    %v636 = vunpack.c.l.s4 1983009808
    %v637 = vunpack.c.0.s8 %v636
    %v638 = vlaneseq
    %v639 = vshrl.u32 %v638, 7
    %v640 = vsub.s32 %v637, %v639
    %v641 = vrot.slane %v634, %v640
    %v642 = vcombine.low %v548, %v549
    %v644 = vunpack.c.l.s4 1983009808
    %v645 = vunpack.c.0.s8 %v644
    %v646 = vlaneseq
    %v647 = vshrl.u32 %v646, 7
    %v648 = vsub.s32 %v645, %v647
    %v649 = vrot.slane %v642, %v648
    %v650 = vcombine.low %v625, %v633
    %v651 = vcombine.high %v625, %v633
    %v653 = vunpack.c.l.s4 1934713408
    %v654 = vunpack.c.0.s8 %v653
    %v655 = vlaneseq
    %v656 = vshrl.u32 %v655, 7
    %v657 = vsub.s32 %v654, %v656
    %v658 = vrot.slane %v650, %v657
    %v660 = vunpack.c.l.s4 1934713408
    %v661 = vunpack.c.0.s8 %v660
    %v662 = vlaneseq
    %v663 = vshrl.u32 %v662, 7
    %v664 = vsub.s32 %v661, %v663
    %v665 = vrot.slane %v651, %v664
    %v666 = vcombine.low %v641, %v649
    %v667 = vcombine.high %v641, %v649
    %v669 = vunpack.c.l.s4 1934713408
    %v670 = vunpack.c.0.s8 %v669
    %v671 = vlaneseq
    %v672 = vshrl.u32 %v671, 7
    %v673 = vsub.s32 %v670, %v672
    %v674 = vrot.slane %v666, %v673
    %v676 = vunpack.c.l.s4 1934713408
    %v677 = vunpack.c.0.s8 %v676
    %v678 = vlaneseq
    %v679 = vshrl.u32 %v678, 7
    %v680 = vsub.s32 %v677, %v679
    %v681 = vrot.slane %v667, %v680
    %v682 = vcombine.low %v658, %v674
    %v683 = vcombine.high %v658, %v674
    %v684 = vcombine.low %v665, %v681
    %v685 = vcombine.high %v665, %v681
    %v686 = vcombine.low %v590, %v597
    %v688 = vunpack.c.l.s4 1983009808
    %v689 = vunpack.c.0.s8 %v688
    %v690 = vlaneseq
    %v691 = vshrl.u32 %v690, 7
    %v692 = vsub.s32 %v689, %v691
    %v693 = vrot.slane %v686, %v692
    %v694 = vcombine.low %v614, %v615
    %v696 = vunpack.c.l.s4 1983009808
    %v697 = vunpack.c.0.s8 %v696
    %v698 = vlaneseq
    %v699 = vshrl.u32 %v698, 7
    %v700 = vsub.s32 %v697, %v699
    %v701 = vrot.slane %v694, %v700
    %v702 = vcombine.low %v606, %v613
    %v704 = vunpack.c.l.s4 1983009808
    %v705 = vunpack.c.0.s8 %v704
    %v706 = vlaneseq
    %v707 = vshrl.u32 %v706, 7
    %v708 = vsub.s32 %v705, %v707
    %v709 = vrot.slane %v702, %v708
    %v710 = vcombine.low %v616, %v617
    %v712 = vunpack.c.l.s4 1983009808
    %v713 = vunpack.c.0.s8 %v712
    %v714 = vlaneseq
    %v715 = vshrl.u32 %v714, 7
    %v716 = vsub.s32 %v713, %v715
    %v717 = vrot.slane %v710, %v716
    %v718 = vcombine.low %v693, %v701
    %v719 = vcombine.high %v693, %v701
    %v721 = vunpack.c.l.s4 1934713408
    %v722 = vunpack.c.0.s8 %v721
    %v723 = vlaneseq
    %v724 = vshrl.u32 %v723, 7
    %v725 = vsub.s32 %v722, %v724
    %v726 = vrot.slane %v718, %v725
    %v728 = vunpack.c.l.s4 1934713408
    %v729 = vunpack.c.0.s8 %v728
    %v730 = vlaneseq
    %v731 = vshrl.u32 %v730, 7
    %v732 = vsub.s32 %v729, %v731
    %v733 = vrot.slane %v719, %v732
    %v734 = vcombine.low %v709, %v717
    %v735 = vcombine.high %v709, %v717
    %v737 = vunpack.c.l.s4 1934713408
    %v738 = vunpack.c.0.s8 %v737
    %v739 = vlaneseq
    %v740 = vshrl.u32 %v739, 7
    %v741 = vsub.s32 %v738, %v740
    %v742 = vrot.slane %v734, %v741
    %v744 = vunpack.c.l.s4 1934713408
    %v745 = vunpack.c.0.s8 %v744
    %v746 = vlaneseq
    %v747 = vshrl.u32 %v746, 7
    %v748 = vsub.s32 %v745, %v747
    %v749 = vrot.slane %v735, %v748
    %v750 = vcombine.low %v726, %v742
    %v751 = vcombine.high %v726, %v742
    %v752 = vcombine.low %v733, %v749
    %v753 = vcombine.high %v733, %v749
    %v754 = vpack.c.bf16 %v682, %v682
    %v755 = vpack.c.bf16 %v683, %v683
    %v756 = vpack.c.bf16 %v684, %v684
    %v757 = vpack.c.bf16 %v685, %v685
    %v758 = vpack.c.bf16 %v750, %v750
    %v759 = vpack.c.bf16 %v751, %v751
    %v760 = vpack.c.bf16 %v752, %v752
    %v761 = vpack.c.bf16 %v753, %v753
    %764 = vrot.lane.b32.xlu0 %v415, 120
    %v765 = vpop.permute.xlu0 %764
    %766 = vrot.lane.b32.xlu0 %v419, 120
    %v767 = vpop.permute.xlu0 %766
    %770 = vrot.lane.b32.xlu0 %v415, 112
    %v771 = vpop.permute.xlu0 %770
    %772 = vrot.lane.b32.xlu0 %v419, 112
    %v773 = vpop.permute.xlu0 %772
    %776 = vrot.lane.b32.xlu0 %v415, 104
    %v777 = vpop.permute.xlu0 %776
    %778 = vrot.lane.b32.xlu0 %v419, 104
    %v779 = vpop.permute.xlu0 %778
    %v782 = vcombine.low %v415, %v771
    %v783 = vcombine.high %v415, %v771
    %v785 = vunpack.c.l.s4 1983009808
    %v786 = vunpack.c.0.s8 %v785
    %v787 = vlaneseq
    %v788 = vshrl.u32 %v787, 7
    %v789 = vsub.s32 %v786, %v788
    %v790 = vrot.slane %v782, %v789
    %v792 = vunpack.c.l.s4 1983009808
    %v793 = vunpack.c.0.s8 %v792
    %v794 = vlaneseq
    %v795 = vshrl.u32 %v794, 7
    %v796 = vsub.s32 %v793, %v795
    %v797 = vrot.slane %v783, %v796
    %v798 = vcombine.low %v765, %v777
    %v799 = vcombine.high %v765, %v777
    %v801 = vunpack.c.l.s4 1983009808
    %v802 = vunpack.c.0.s8 %v801
    %v803 = vlaneseq
    %v804 = vshrl.u32 %v803, 7
    %v805 = vsub.s32 %v802, %v804
    %v806 = vrot.slane %v798, %v805
    %v808 = vunpack.c.l.s4 1983009808
    %v809 = vunpack.c.0.s8 %v808
    %v810 = vlaneseq
    %v811 = vshrl.u32 %v810, 7
    %v812 = vsub.s32 %v809, %v811
    %v813 = vrot.slane %v799, %v812
    %v814 = vcombine.low %v790, %v806
    %v815 = vcombine.high %v790, %v806
    %v817 = vunpack.c.l.s4 1934713408
    %v818 = vunpack.c.0.s8 %v817
    %v819 = vlaneseq
    %v820 = vshrl.u32 %v819, 7
    %v821 = vsub.s32 %v818, %v820
    %v822 = vrot.slane %v814, %v821
    %v824 = vunpack.c.l.s4 1934713408
    %v825 = vunpack.c.0.s8 %v824
    %v826 = vlaneseq
    %v827 = vshrl.u32 %v826, 7
    %v828 = vsub.s32 %v825, %v827
    %v829 = vrot.slane %v815, %v828
    %v830 = vcombine.low %v797, %v813
    %v831 = vcombine.high %v797, %v813
    %v833 = vunpack.c.l.s4 1934713408
    %v834 = vunpack.c.0.s8 %v833
    %v835 = vlaneseq
    %v836 = vshrl.u32 %v835, 7
    %v837 = vsub.s32 %v834, %v836
    %v838 = vrot.slane %v830, %v837
    %v840 = vunpack.c.l.s4 1934713408
    %v841 = vunpack.c.0.s8 %v840
    %v842 = vlaneseq
    %v843 = vshrl.u32 %v842, 7
    %v844 = vsub.s32 %v841, %v843
    %v845 = vrot.slane %v831, %v844
    %v846 = vcombine.high %v822, 0.0
    %v847 = vcombine.high %v829, 0.0
    %v848 = vcombine.high %v838, 0.0
    %v849 = vcombine.high %v845, 0.0
    %v850 = vcombine.low %v419, %v773
    %v851 = vcombine.high %v419, %v773
    %v853 = vunpack.c.l.s4 1983009808
    %v854 = vunpack.c.0.s8 %v853
    %v855 = vlaneseq
    %v856 = vshrl.u32 %v855, 7
    %v857 = vsub.s32 %v854, %v856
    %v858 = vrot.slane %v850, %v857
    %v860 = vunpack.c.l.s4 1983009808
    %v861 = vunpack.c.0.s8 %v860
    %v862 = vlaneseq
    %v863 = vshrl.u32 %v862, 7
    %v864 = vsub.s32 %v861, %v863
    %v865 = vrot.slane %v851, %v864
    %v866 = vcombine.low %v767, %v779
    %v867 = vcombine.high %v767, %v779
    %v869 = vunpack.c.l.s4 1983009808
    %v870 = vunpack.c.0.s8 %v869
    %v871 = vlaneseq
    %v872 = vshrl.u32 %v871, 7
    %v873 = vsub.s32 %v870, %v872
    %v874 = vrot.slane %v866, %v873
    %v876 = vunpack.c.l.s4 1983009808
    %v877 = vunpack.c.0.s8 %v876
    %v878 = vlaneseq
    %v879 = vshrl.u32 %v878, 7
    %v880 = vsub.s32 %v877, %v879
    %v881 = vrot.slane %v867, %v880
    %v882 = vcombine.low %v858, %v874
    %v883 = vcombine.high %v858, %v874
    %v885 = vunpack.c.l.s4 1934713408
    %v886 = vunpack.c.0.s8 %v885
    %v887 = vlaneseq
    %v888 = vshrl.u32 %v887, 7
    %v889 = vsub.s32 %v886, %v888
    %v890 = vrot.slane %v882, %v889
    %v892 = vunpack.c.l.s4 1934713408
    %v893 = vunpack.c.0.s8 %v892
    %v894 = vlaneseq
    %v895 = vshrl.u32 %v894, 7
    %v896 = vsub.s32 %v893, %v895
    %v897 = vrot.slane %v883, %v896
    %v898 = vcombine.low %v865, %v881
    %v899 = vcombine.high %v865, %v881
    %v901 = vunpack.c.l.s4 1934713408
    %v902 = vunpack.c.0.s8 %v901
    %v903 = vlaneseq
    %v904 = vshrl.u32 %v903, 7
    %v905 = vsub.s32 %v902, %v904
    %v906 = vrot.slane %v898, %v905
    %v908 = vunpack.c.l.s4 1934713408
    %v909 = vunpack.c.0.s8 %v908
    %v910 = vlaneseq
    %v911 = vshrl.u32 %v910, 7
    %v912 = vsub.s32 %v909, %v911
    %v913 = vrot.slane %v899, %v912
    %v914 = vcombine.high %v890, 0.0
    %v915 = vcombine.high %v897, 0.0
    %v916 = vcombine.high %v906, 0.0
    %v917 = vcombine.high %v913, 0.0
    %v918 = vcombine.low %v822, %v829
    %v920 = vunpack.c.l.s4 1983009808
    %v921 = vunpack.c.0.s8 %v920
    %v922 = vlaneseq
    %v923 = vshrl.u32 %v922, 7
    %v924 = vsub.s32 %v921, %v923
    %v925 = vrot.slane %v918, %v924
    %v926 = vcombine.low %v846, %v847
    %v928 = vunpack.c.l.s4 1983009808
    %v929 = vunpack.c.0.s8 %v928
    %v930 = vlaneseq
    %v931 = vshrl.u32 %v930, 7
    %v932 = vsub.s32 %v929, %v931
    %v933 = vrot.slane %v926, %v932
    %v934 = vcombine.low %v838, %v845
    %v936 = vunpack.c.l.s4 1983009808
    %v937 = vunpack.c.0.s8 %v936
    %v938 = vlaneseq
    %v939 = vshrl.u32 %v938, 7
    %v940 = vsub.s32 %v937, %v939
    %v941 = vrot.slane %v934, %v940
    %v942 = vcombine.low %v848, %v849
    %v944 = vunpack.c.l.s4 1983009808
    %v945 = vunpack.c.0.s8 %v944
    %v946 = vlaneseq
    %v947 = vshrl.u32 %v946, 7
    %v948 = vsub.s32 %v945, %v947
    %v949 = vrot.slane %v942, %v948
    %v950 = vcombine.low %v925, %v933
    %v951 = vcombine.high %v925, %v933
    %v953 = vunpack.c.l.s4 1934713408
    %v954 = vunpack.c.0.s8 %v953
    %v955 = vlaneseq
    %v956 = vshrl.u32 %v955, 7
    %v957 = vsub.s32 %v954, %v956
    %v958 = vrot.slane %v950, %v957
    %v960 = vunpack.c.l.s4 1934713408
    %v961 = vunpack.c.0.s8 %v960
    %v962 = vlaneseq
    %v963 = vshrl.u32 %v962, 7
    %v964 = vsub.s32 %v961, %v963
    %v965 = vrot.slane %v951, %v964
    %v966 = vcombine.low %v941, %v949
    %v967 = vcombine.high %v941, %v949
    %v969 = vunpack.c.l.s4 1934713408
    %v970 = vunpack.c.0.s8 %v969
    %v971 = vlaneseq
    %v972 = vshrl.u32 %v971, 7
    %v973 = vsub.s32 %v970, %v972
    %v974 = vrot.slane %v966, %v973
    %v976 = vunpack.c.l.s4 1934713408
    %v977 = vunpack.c.0.s8 %v976
    %v978 = vlaneseq
    %v979 = vshrl.u32 %v978, 7
    %v980 = vsub.s32 %v977, %v979
    %v981 = vrot.slane %v967, %v980
    %v982 = vcombine.low %v958, %v974
    %v983 = vcombine.high %v958, %v974
    %v984 = vcombine.low %v965, %v981
    %v985 = vcombine.high %v965, %v981
    %v986 = vcombine.low %v890, %v897
    %v988 = vunpack.c.l.s4 1983009808
    %v989 = vunpack.c.0.s8 %v988
    %v990 = vlaneseq
    %v991 = vshrl.u32 %v990, 7
    %v992 = vsub.s32 %v989, %v991
    %v993 = vrot.slane %v986, %v992
    %v994 = vcombine.low %v914, %v915
    %v996 = vunpack.c.l.s4 1983009808
    %v997 = vunpack.c.0.s8 %v996
    %v998 = vlaneseq
    %v999 = vshrl.u32 %v998, 7
    %v1000 = vsub.s32 %v997, %v999
    %v1001 = vrot.slane %v994, %v1000
    %v1002 = vcombine.low %v906, %v913
    %v1004 = vunpack.c.l.s4 1983009808
    %v1005 = vunpack.c.0.s8 %v1004
    %v1006 = vlaneseq
    %v1007 = vshrl.u32 %v1006, 7
    %v1008 = vsub.s32 %v1005, %v1007
    %v1009 = vrot.slane %v1002, %v1008
    %v1010 = vcombine.low %v916, %v917
    %v1012 = vunpack.c.l.s4 1983009808
    %v1013 = vunpack.c.0.s8 %v1012
    %v1014 = vlaneseq
    %v1015 = vshrl.u32 %v1014, 7
    %v1016 = vsub.s32 %v1013, %v1015
    %v1017 = vrot.slane %v1010, %v1016
    %v1018 = vcombine.low %v993, %v1001
    %v1019 = vcombine.high %v993, %v1001
    %v1021 = vunpack.c.l.s4 1934713408
    %v1022 = vunpack.c.0.s8 %v1021
    %v1023 = vlaneseq
    %v1024 = vshrl.u32 %v1023, 7
    %v1025 = vsub.s32 %v1022, %v1024
    %v1026 = vrot.slane %v1018, %v1025
    %v1028 = vunpack.c.l.s4 1934713408
    %v1029 = vunpack.c.0.s8 %v1028
    %v1030 = vlaneseq
    %v1031 = vshrl.u32 %v1030, 7
    %v1032 = vsub.s32 %v1029, %v1031
    %v1033 = vrot.slane %v1019, %v1032
    %v1034 = vcombine.low %v1009, %v1017
    %v1035 = vcombine.high %v1009, %v1017
    %v1037 = vunpack.c.l.s4 1934713408
    %v1038 = vunpack.c.0.s8 %v1037
    %v1039 = vlaneseq
    %v1040 = vshrl.u32 %v1039, 7
    %v1041 = vsub.s32 %v1038, %v1040
    %v1042 = vrot.slane %v1034, %v1041
    %v1044 = vunpack.c.l.s4 1934713408
    %v1045 = vunpack.c.0.s8 %v1044
    %v1046 = vlaneseq
    %v1047 = vshrl.u32 %v1046, 7
    %v1048 = vsub.s32 %v1045, %v1047
    %v1049 = vrot.slane %v1035, %v1048
    %v1050 = vcombine.low %v1026, %v1042
    %v1051 = vcombine.high %v1026, %v1042
    %v1052 = vcombine.low %v1033, %v1049
    %v1053 = vcombine.high %v1033, %v1049
    %v1054 = vpack.c.bf16 %v982, %v982
    %v1055 = vpack.c.bf16 %v983, %v983
    %v1056 = vpack.c.bf16 %v984, %v984
    %v1057 = vpack.c.bf16 %v985, %v985
    %v1058 = vpack.c.bf16 %v1050, %v1050
    %v1059 = vpack.c.bf16 %v1051, %v1051
    %v1060 = vpack.c.bf16 %v1052, %v1052
    %v1061 = vpack.c.bf16 %v1053, %v1053
    %1064 = vrot.lane.b32.xlu0 %v456, 120
    %v1065 = vpop.permute.xlu0 %1064
    %1066 = vrot.lane.b32.xlu0 %v459, 120
    %v1067 = vpop.permute.xlu0 %1066
    %1070 = vrot.lane.b32.xlu0 %v456, 112
    %v1071 = vpop.permute.xlu0 %1070
    %1072 = vrot.lane.b32.xlu0 %v459, 112
    %v1073 = vpop.permute.xlu0 %1072
    %1076 = vrot.lane.b32.xlu0 %v456, 104
    %v1077 = vpop.permute.xlu0 %1076
    %1078 = vrot.lane.b32.xlu0 %v459, 104
    %v1079 = vpop.permute.xlu0 %1078
    %v1082 = vcombine.low %v456, %v1071
    %v1083 = vcombine.high %v456, %v1071
    %v1085 = vunpack.c.l.s4 1983009808
    %v1086 = vunpack.c.0.s8 %v1085
    %v1087 = vlaneseq
    %v1088 = vshrl.u32 %v1087, 7
    %v1089 = vsub.s32 %v1086, %v1088
    %v1090 = vrot.slane %v1082, %v1089
    %v1092 = vunpack.c.l.s4 1983009808
    %v1093 = vunpack.c.0.s8 %v1092
    %v1094 = vlaneseq
    %v1095 = vshrl.u32 %v1094, 7
    %v1096 = vsub.s32 %v1093, %v1095
    %v1097 = vrot.slane %v1083, %v1096
    %v1098 = vcombine.low %v1065, %v1077
    %v1099 = vcombine.high %v1065, %v1077
    %v1101 = vunpack.c.l.s4 1983009808
    %v1102 = vunpack.c.0.s8 %v1101
    %v1103 = vlaneseq
    %v1104 = vshrl.u32 %v1103, 7
    %v1105 = vsub.s32 %v1102, %v1104
    %v1106 = vrot.slane %v1098, %v1105
    %v1108 = vunpack.c.l.s4 1983009808
    %v1109 = vunpack.c.0.s8 %v1108
    %v1110 = vlaneseq
    %v1111 = vshrl.u32 %v1110, 7
    %v1112 = vsub.s32 %v1109, %v1111
    %v1113 = vrot.slane %v1099, %v1112
    %v1114 = vcombine.low %v1090, %v1106
    %v1115 = vcombine.high %v1090, %v1106
    %v1117 = vunpack.c.l.s4 1934713408
    %v1118 = vunpack.c.0.s8 %v1117
    %v1119 = vlaneseq
    %v1120 = vshrl.u32 %v1119, 7
    %v1121 = vsub.s32 %v1118, %v1120
    %v1122 = vrot.slane %v1114, %v1121
    %v1124 = vunpack.c.l.s4 1934713408
    %v1125 = vunpack.c.0.s8 %v1124
    %v1126 = vlaneseq
    %v1127 = vshrl.u32 %v1126, 7
    %v1128 = vsub.s32 %v1125, %v1127
    %v1129 = vrot.slane %v1115, %v1128
    %v1130 = vcombine.low %v1097, %v1113
    %v1131 = vcombine.high %v1097, %v1113
    %v1133 = vunpack.c.l.s4 1934713408
    %v1134 = vunpack.c.0.s8 %v1133
    %v1135 = vlaneseq
    %v1136 = vshrl.u32 %v1135, 7
    %v1137 = vsub.s32 %v1134, %v1136
    %v1138 = vrot.slane %v1130, %v1137
    %v1140 = vunpack.c.l.s4 1934713408
    %v1141 = vunpack.c.0.s8 %v1140
    %v1142 = vlaneseq
    %v1143 = vshrl.u32 %v1142, 7
    %v1144 = vsub.s32 %v1141, %v1143
    %v1145 = vrot.slane %v1131, %v1144
    %v1146 = vcombine.high %v1122, 0.0
    %v1147 = vcombine.high %v1129, 0.0
    %v1148 = vcombine.high %v1138, 0.0
    %v1149 = vcombine.high %v1145, 0.0
    %v1150 = vcombine.low %v459, %v1073
    %v1151 = vcombine.high %v459, %v1073
    %v1153 = vunpack.c.l.s4 1983009808
    %v1154 = vunpack.c.0.s8 %v1153
    %v1155 = vlaneseq
    %v1156 = vshrl.u32 %v1155, 7
    %v1157 = vsub.s32 %v1154, %v1156
    %v1158 = vrot.slane %v1150, %v1157
    %v1160 = vunpack.c.l.s4 1983009808
    %v1161 = vunpack.c.0.s8 %v1160
    %v1162 = vlaneseq
    %v1163 = vshrl.u32 %v1162, 7
    %v1164 = vsub.s32 %v1161, %v1163
    %v1165 = vrot.slane %v1151, %v1164
    %v1166 = vcombine.low %v1067, %v1079
    %v1167 = vcombine.high %v1067, %v1079
    %v1169 = vunpack.c.l.s4 1983009808
    %v1170 = vunpack.c.0.s8 %v1169
    %v1171 = vlaneseq
    %v1172 = vshrl.u32 %v1171, 7
    %v1173 = vsub.s32 %v1170, %v1172
    %v1174 = vrot.slane %v1166, %v1173
    %v1176 = vunpack.c.l.s4 1983009808
    %v1177 = vunpack.c.0.s8 %v1176
    %v1178 = vlaneseq
    %v1179 = vshrl.u32 %v1178, 7
    %v1180 = vsub.s32 %v1177, %v1179
    %v1181 = vrot.slane %v1167, %v1180
    %v1182 = vcombine.low %v1158, %v1174
    %v1183 = vcombine.high %v1158, %v1174
    %v1185 = vunpack.c.l.s4 1934713408
    %v1186 = vunpack.c.0.s8 %v1185
    %v1187 = vlaneseq
    %v1188 = vshrl.u32 %v1187, 7
    %v1189 = vsub.s32 %v1186, %v1188
    %v1190 = vrot.slane %v1182, %v1189
    %v1192 = vunpack.c.l.s4 1934713408
    %v1193 = vunpack.c.0.s8 %v1192
    %v1194 = vlaneseq
    %v1195 = vshrl.u32 %v1194, 7
    %v1196 = vsub.s32 %v1193, %v1195
    %v1197 = vrot.slane %v1183, %v1196
    %v1198 = vcombine.low %v1165, %v1181
    %v1199 = vcombine.high %v1165, %v1181
    %v1201 = vunpack.c.l.s4 1934713408
    %v1202 = vunpack.c.0.s8 %v1201
    %v1203 = vlaneseq
    %v1204 = vshrl.u32 %v1203, 7
    %v1205 = vsub.s32 %v1202, %v1204
    %v1206 = vrot.slane %v1198, %v1205
    %v1208 = vunpack.c.l.s4 1934713408
    %v1209 = vunpack.c.0.s8 %v1208
    %v1210 = vlaneseq
    %v1211 = vshrl.u32 %v1210, 7
    %v1212 = vsub.s32 %v1209, %v1211
    %v1213 = vrot.slane %v1199, %v1212
    %v1214 = vcombine.high %v1190, 0.0
    %v1215 = vcombine.high %v1197, 0.0
    %v1216 = vcombine.high %v1206, 0.0
    %v1217 = vcombine.high %v1213, 0.0
    %v1218 = vcombine.low %v1122, %v1129
    %v1220 = vunpack.c.l.s4 1983009808
    %v1221 = vunpack.c.0.s8 %v1220
    %v1222 = vlaneseq
    %v1223 = vshrl.u32 %v1222, 7
    %v1224 = vsub.s32 %v1221, %v1223
    %v1225 = vrot.slane %v1218, %v1224
    %v1226 = vcombine.low %v1146, %v1147
    %v1228 = vunpack.c.l.s4 1983009808
    %v1229 = vunpack.c.0.s8 %v1228
    %v1230 = vlaneseq
    %v1231 = vshrl.u32 %v1230, 7
    %v1232 = vsub.s32 %v1229, %v1231
    %v1233 = vrot.slane %v1226, %v1232
    %v1234 = vcombine.low %v1138, %v1145
    %v1236 = vunpack.c.l.s4 1983009808
    %v1237 = vunpack.c.0.s8 %v1236
    %v1238 = vlaneseq
    %v1239 = vshrl.u32 %v1238, 7
    %v1240 = vsub.s32 %v1237, %v1239
    %v1241 = vrot.slane %v1234, %v1240
    %v1242 = vcombine.low %v1148, %v1149
    %v1244 = vunpack.c.l.s4 1983009808
    %v1245 = vunpack.c.0.s8 %v1244
    %v1246 = vlaneseq
    %v1247 = vshrl.u32 %v1246, 7
    %v1248 = vsub.s32 %v1245, %v1247
    %v1249 = vrot.slane %v1242, %v1248
    %v1250 = vcombine.low %v1225, %v1233
    %v1251 = vcombine.high %v1225, %v1233
    %v1253 = vunpack.c.l.s4 1934713408
    %v1254 = vunpack.c.0.s8 %v1253
    %v1255 = vlaneseq
    %v1256 = vshrl.u32 %v1255, 7
    %v1257 = vsub.s32 %v1254, %v1256
    %v1258 = vrot.slane %v1250, %v1257
    %v1260 = vunpack.c.l.s4 1934713408
    %v1261 = vunpack.c.0.s8 %v1260
    %v1262 = vlaneseq
    %v1263 = vshrl.u32 %v1262, 7
    %v1264 = vsub.s32 %v1261, %v1263
    %v1265 = vrot.slane %v1251, %v1264
    %v1266 = vcombine.low %v1241, %v1249
    %v1267 = vcombine.high %v1241, %v1249
    %v1269 = vunpack.c.l.s4 1934713408
    %v1270 = vunpack.c.0.s8 %v1269
    %v1271 = vlaneseq
    %v1272 = vshrl.u32 %v1271, 7
    %v1273 = vsub.s32 %v1270, %v1272
    %v1274 = vrot.slane %v1266, %v1273
    %v1276 = vunpack.c.l.s4 1934713408
    %v1277 = vunpack.c.0.s8 %v1276
    %v1278 = vlaneseq
    %v1279 = vshrl.u32 %v1278, 7
    %v1280 = vsub.s32 %v1277, %v1279
    %v1281 = vrot.slane %v1267, %v1280
    %v1282 = vcombine.low %v1258, %v1274
    %v1283 = vcombine.high %v1258, %v1274
    %v1284 = vcombine.low %v1265, %v1281
    %v1285 = vcombine.high %v1265, %v1281
    %v1286 = vcombine.low %v1190, %v1197
    %v1288 = vunpack.c.l.s4 1983009808
    %v1289 = vunpack.c.0.s8 %v1288
    %v1290 = vlaneseq
    %v1291 = vshrl.u32 %v1290, 7
    %v1292 = vsub.s32 %v1289, %v1291
    %v1293 = vrot.slane %v1286, %v1292
    %v1294 = vcombine.low %v1214, %v1215
    %v1296 = vunpack.c.l.s4 1983009808
    %v1297 = vunpack.c.0.s8 %v1296
    %v1298 = vlaneseq
    %v1299 = vshrl.u32 %v1298, 7
    %v1300 = vsub.s32 %v1297, %v1299
    %v1301 = vrot.slane %v1294, %v1300
    %v1302 = vcombine.low %v1206, %v1213
    %v1304 = vunpack.c.l.s4 1983009808
    %v1305 = vunpack.c.0.s8 %v1304
    %v1306 = vlaneseq
    %v1307 = vshrl.u32 %v1306, 7
    %v1308 = vsub.s32 %v1305, %v1307
    %v1309 = vrot.slane %v1302, %v1308
    %v1310 = vcombine.low %v1216, %v1217
    %v1312 = vunpack.c.l.s4 1983009808
    %v1313 = vunpack.c.0.s8 %v1312
    %v1314 = vlaneseq
    %v1315 = vshrl.u32 %v1314, 7
    %v1316 = vsub.s32 %v1313, %v1315
    %v1317 = vrot.slane %v1310, %v1316
    %v1318 = vcombine.low %v1293, %v1301
    %v1319 = vcombine.high %v1293, %v1301
    %v1321 = vunpack.c.l.s4 1934713408
    %v1322 = vunpack.c.0.s8 %v1321
    %v1323 = vlaneseq
    %v1324 = vshrl.u32 %v1323, 7
    %v1325 = vsub.s32 %v1322, %v1324
    %v1326 = vrot.slane %v1318, %v1325
    %v1328 = vunpack.c.l.s4 1934713408
    %v1329 = vunpack.c.0.s8 %v1328
    %v1330 = vlaneseq
    %v1331 = vshrl.u32 %v1330, 7
    %v1332 = vsub.s32 %v1329, %v1331
    %v1333 = vrot.slane %v1319, %v1332
    %v1334 = vcombine.low %v1309, %v1317
    %v1335 = vcombine.high %v1309, %v1317
    %v1337 = vunpack.c.l.s4 1934713408
    %v1338 = vunpack.c.0.s8 %v1337
    %v1339 = vlaneseq
    %v1340 = vshrl.u32 %v1339, 7
    %v1341 = vsub.s32 %v1338, %v1340
    %v1342 = vrot.slane %v1334, %v1341
    %v1344 = vunpack.c.l.s4 1934713408
    %v1345 = vunpack.c.0.s8 %v1344
    %v1346 = vlaneseq
    %v1347 = vshrl.u32 %v1346, 7
    %v1348 = vsub.s32 %v1345, %v1347
    %v1349 = vrot.slane %v1335, %v1348
    %v1350 = vcombine.low %v1326, %v1342
    %v1351 = vcombine.high %v1326, %v1342
    %v1352 = vcombine.low %v1333, %v1349
    %v1353 = vcombine.high %v1333, %v1349
    %v1354 = vpack.c.bf16 %v1282, %v1282
    %v1355 = vpack.c.bf16 %v1283, %v1283
    %v1356 = vpack.c.bf16 %v1284, %v1284
    %v1357 = vpack.c.bf16 %v1285, %v1285
    %v1358 = vpack.c.bf16 %v1350, %v1350
    %v1359 = vpack.c.bf16 %v1351, %v1351
    %v1360 = vpack.c.bf16 %v1352, %v1352
    %v1361 = vpack.c.bf16 %v1353, %v1353
    %vm1362 = vcmask 64512
    %v1364 = vsel %vm1362, %v754, 0
    %v1367 = vsel %vm1362, %v1054, 0
    %1369 = vmatprep.subr.bf16.mxu0 0
    %1370 = vmatpush1.bf16.xpose.msra.mxu0 %v1367
    %1371 = vmatprep.subr.bf16.mxu0 0
    %1372 = vmatpush1.bf16.xpose.msra.mxu0 0
    %1373 = vmatprep.subr.bf16.mxu0 0
    %1374 = vmatpush1.bf16.xpose.msra.mxu0 0
    %1375 = vmatprep.subr.bf16.mxu0 0
    %1376 = vmatpush1.bf16.xpose.msra.mxu0 0
    %1377 = vmatprep.subr.bf16.mxu0 0
    %1378 = vmatpush1.bf16.xpose.msra.mxu0 0
    %1379 = vmatprep.subr.bf16.mxu0 0
    %1380 = vmatpush1.bf16.xpose.msra.mxu0 0
    %1381 = vmatprep.subr.bf16.mxu0 0
    %1382 = vmatpush1.bf16.xpose.msra.mxu0 0
    %1383 = vmatprep.subr.bf16.mxu0 0
    %1384 = vmatpush1.bf16.xpose.msra.mxu0 0
    %1385 = vmatprep.subr.bf16.mxu0 0
    %1386 = vmatpush1.bf16.xpose.msra.mxu0 0
    %1387 = vmatprep.subr.bf16.mxu0 0
    %1388 = vmatpush1.bf16.xpose.msra.mxu0 0
    %1389 = vmatprep.subr.bf16.mxu0 0
    %1390 = vmatpush1.bf16.xpose.msra.mxu0 0
    %1391 = vmatprep.subr.bf16.mxu0 0
    %1392 = vmatpush1.bf16.xpose.msra.mxu0 0
    %1393 = vmatprep.subr.bf16.mxu0 0
    %1394 = vmatpush1.bf16.xpose.msra.mxu0 0
    %1395 = vmatprep.subr.bf16.mxu0 0
    %1396 = vmatpush1.bf16.xpose.msra.mxu0 0
    %1397 = vmatprep.subr.bf16.mxu0 0
    %1398 = vmatpush1.bf16.xpose.msra.mxu0 0
    %1399 = vmatprep.subr.bf16.mxu0 0
    %1400 = vmatpush1.bf16.xpose.msra.mxu0 0
    %1401 = vmatprep.mubr.bf16.mxu0 0
    %1402 = vmatmul.mubr.bf16.gmra.mrb[0].mxu0 %v1364
    %v1403 = vpop.f32.mrb[0].mxu0
    %v1404 = vadd.f32 0.0, %v1403
    %v1405 = vpop.f32.mrb[0].mxu0
    %v1406 = vpop.f32.mrb[0].mxu0
    %v1407 = vpop.f32.mrb[0].mxu0
    %1408 = vdwg.mxu0
    %v1410 = vsel %vm1362, %v755, 0
    %v1413 = vsel %vm1362, %v1055, 0
    %1415 = vmatprep.subr.bf16.mxu0 0
    %1416 = vmatpush1.bf16.xpose.msra.mxu0 %v1413
    %1417 = vmatprep.subr.bf16.mxu0 0
    %1418 = vmatpush1.bf16.xpose.msra.mxu0 0
    %1419 = vmatprep.subr.bf16.mxu0 0
    %1420 = vmatpush1.bf16.xpose.msra.mxu0 0
    %1421 = vmatprep.subr.bf16.mxu0 0
    %1422 = vmatpush1.bf16.xpose.msra.mxu0 0
    %1423 = vmatprep.subr.bf16.mxu0 0
    %1424 = vmatpush1.bf16.xpose.msra.mxu0 0
    %1425 = vmatprep.subr.bf16.mxu0 0
    %1426 = vmatpush1.bf16.xpose.msra.mxu0 0
    %1427 = vmatprep.subr.bf16.mxu0 0
    %1428 = vmatpush1.bf16.xpose.msra.mxu0 0
    %1429 = vmatprep.subr.bf16.mxu0 0
    %1430 = vmatpush1.bf16.xpose.msra.mxu0 0
    %1431 = vmatprep.subr.bf16.mxu0 0
    %1432 = vmatpush1.bf16.xpose.msra.mxu0 0
    %1433 = vmatprep.subr.bf16.mxu0 0
    %1434 = vmatpush1.bf16.xpose.msra.mxu0 0
    %1435 = vmatprep.subr.bf16.mxu0 0
    %1436 = vmatpush1.bf16.xpose.msra.mxu0 0
    %1437 = vmatprep.subr.bf16.mxu0 0
    %1438 = vmatpush1.bf16.xpose.msra.mxu0 0
    %1439 = vmatprep.subr.bf16.mxu0 0
    %1440 = vmatpush1.bf16.xpose.msra.mxu0 0
    %1441 = vmatprep.subr.bf16.mxu0 0
    %1442 = vmatpush1.bf16.xpose.msra.mxu0 0
    %1443 = vmatprep.subr.bf16.mxu0 0
    %1444 = vmatpush1.bf16.xpose.msra.mxu0 0
    %1445 = vmatprep.subr.bf16.mxu0 0
    %1446 = vmatpush1.bf16.xpose.msra.mxu0 0
    %1447 = vmatprep.mubr.bf16.mxu0 0
    %1448 = vmatmul.mubr.bf16.gmra.mrb[0].mxu0 %v1410
    %v1449 = vpop.f32.mrb[0].mxu0
    %v1450 = vadd.f32 0.0, %v1449
    %v1451 = vpop.f32.mrb[0].mxu0
    %v1452 = vpop.f32.mrb[0].mxu0
    %v1453 = vpop.f32.mrb[0].mxu0
    %1454 = vdwg.mxu0
    %v1456 = vsel %vm1362, %v756, 0
    %v1459 = vsel %vm1362, %v1056, 0
    %1461 = vmatprep.subr.bf16.mxu0 0
    %1462 = vmatpush1.bf16.xpose.msra.mxu0 %v1459
    %1463 = vmatprep.subr.bf16.mxu0 0
    %1464 = vmatpush1.bf16.xpose.msra.mxu0 0
    %1465 = vmatprep.subr.bf16.mxu0 0
    %1466 = vmatpush1.bf16.xpose.msra.mxu0 0
    %1467 = vmatprep.subr.bf16.mxu0 0
    %1468 = vmatpush1.bf16.xpose.msra.mxu0 0
    %1469 = vmatprep.subr.bf16.mxu0 0
    %1470 = vmatpush1.bf16.xpose.msra.mxu0 0
    %1471 = vmatprep.subr.bf16.mxu0 0
    %1472 = vmatpush1.bf16.xpose.msra.mxu0 0
    %1473 = vmatprep.subr.bf16.mxu0 0
    %1474 = vmatpush1.bf16.xpose.msra.mxu0 0
    %1475 = vmatprep.subr.bf16.mxu0 0
    %1476 = vmatpush1.bf16.xpose.msra.mxu0 0
    %1477 = vmatprep.subr.bf16.mxu0 0
    %1478 = vmatpush1.bf16.xpose.msra.mxu0 0
    %1479 = vmatprep.subr.bf16.mxu0 0
    %1480 = vmatpush1.bf16.xpose.msra.mxu0 0
    %1481 = vmatprep.subr.bf16.mxu0 0
    %1482 = vmatpush1.bf16.xpose.msra.mxu0 0
    %1483 = vmatprep.subr.bf16.mxu0 0
    %1484 = vmatpush1.bf16.xpose.msra.mxu0 0
    %1485 = vmatprep.subr.bf16.mxu0 0
    %1486 = vmatpush1.bf16.xpose.msra.mxu0 0
    %1487 = vmatprep.subr.bf16.mxu0 0
    %1488 = vmatpush1.bf16.xpose.msra.mxu0 0
    %1489 = vmatprep.subr.bf16.mxu0 0
    %1490 = vmatpush1.bf16.xpose.msra.mxu0 0
    %1491 = vmatprep.subr.bf16.mxu0 0
    %1492 = vmatpush1.bf16.xpose.msra.mxu0 0
    %1493 = vmatprep.mubr.bf16.mxu0 0
    %1494 = vmatmul.mubr.bf16.gmra.mrb[0].mxu0 %v1456
    %v1495 = vpop.f32.mrb[0].mxu0
    %v1496 = vadd.f32 0.0, %v1495
    %v1497 = vpop.f32.mrb[0].mxu0
    %v1498 = vpop.f32.mrb[0].mxu0
    %v1499 = vpop.f32.mrb[0].mxu0
    %1500 = vdwg.mxu0
    %v1502 = vsel %vm1362, %v757, 0
    %v1505 = vsel %vm1362, %v1057, 0
    %1507 = vmatprep.subr.bf16.mxu0 0
    %1508 = vmatpush1.bf16.xpose.msra.mxu0 %v1505
    %1509 = vmatprep.subr.bf16.mxu0 0
    %1510 = vmatpush1.bf16.xpose.msra.mxu0 0
    %1511 = vmatprep.subr.bf16.mxu0 0
    %1512 = vmatpush1.bf16.xpose.msra.mxu0 0
    %1513 = vmatprep.subr.bf16.mxu0 0
    %1514 = vmatpush1.bf16.xpose.msra.mxu0 0
    %1515 = vmatprep.subr.bf16.mxu0 0
    %1516 = vmatpush1.bf16.xpose.msra.mxu0 0
    %1517 = vmatprep.subr.bf16.mxu0 0
    %1518 = vmatpush1.bf16.xpose.msra.mxu0 0
    %1519 = vmatprep.subr.bf16.mxu0 0
    %1520 = vmatpush1.bf16.xpose.msra.mxu0 0
    %1521 = vmatprep.subr.bf16.mxu0 0
    %1522 = vmatpush1.bf16.xpose.msra.mxu0 0
    %1523 = vmatprep.subr.bf16.mxu0 0
    %1524 = vmatpush1.bf16.xpose.msra.mxu0 0
    %1525 = vmatprep.subr.bf16.mxu0 0
    %1526 = vmatpush1.bf16.xpose.msra.mxu0 0
    %1527 = vmatprep.subr.bf16.mxu0 0
    %1528 = vmatpush1.bf16.xpose.msra.mxu0 0
    %1529 = vmatprep.subr.bf16.mxu0 0
    %1530 = vmatpush1.bf16.xpose.msra.mxu0 0
    %1531 = vmatprep.subr.bf16.mxu0 0
    %1532 = vmatpush1.bf16.xpose.msra.mxu0 0
    %1533 = vmatprep.subr.bf16.mxu0 0
    %1534 = vmatpush1.bf16.xpose.msra.mxu0 0
    %1535 = vmatprep.subr.bf16.mxu0 0
    %1536 = vmatpush1.bf16.xpose.msra.mxu0 0
    %1537 = vmatprep.subr.bf16.mxu0 0
    %1538 = vmatpush1.bf16.xpose.msra.mxu0 0
    %1539 = vmatprep.mubr.bf16.mxu0 0
    %1540 = vmatmul.mubr.bf16.gmra.mrb[0].mxu0 %v1502
    %v1541 = vpop.f32.mrb[0].mxu0
    %v1542 = vadd.f32 0.0, %v1541
    %v1543 = vpop.f32.mrb[0].mxu0
    %v1544 = vpop.f32.mrb[0].mxu0
    %v1545 = vpop.f32.mrb[0].mxu0
    %1546 = vdwg.mxu0
    %v1548 = vsel %vm1362, %v758, 0
    %v1551 = vsel %vm1362, %v1058, 0
    %1553 = vmatprep.subr.bf16.mxu0 0
    %1554 = vmatpush1.bf16.xpose.msra.mxu0 %v1551
    %1555 = vmatprep.subr.bf16.mxu0 0
    %1556 = vmatpush1.bf16.xpose.msra.mxu0 0
    %1557 = vmatprep.subr.bf16.mxu0 0
    %1558 = vmatpush1.bf16.xpose.msra.mxu0 0
    %1559 = vmatprep.subr.bf16.mxu0 0
    %1560 = vmatpush1.bf16.xpose.msra.mxu0 0
    %1561 = vmatprep.subr.bf16.mxu0 0
    %1562 = vmatpush1.bf16.xpose.msra.mxu0 0
    %1563 = vmatprep.subr.bf16.mxu0 0
    %1564 = vmatpush1.bf16.xpose.msra.mxu0 0
    %1565 = vmatprep.subr.bf16.mxu0 0
    %1566 = vmatpush1.bf16.xpose.msra.mxu0 0
    %1567 = vmatprep.subr.bf16.mxu0 0
    %1568 = vmatpush1.bf16.xpose.msra.mxu0 0
    %1569 = vmatprep.subr.bf16.mxu0 0
    %1570 = vmatpush1.bf16.xpose.msra.mxu0 0
    %1571 = vmatprep.subr.bf16.mxu0 0
    %1572 = vmatpush1.bf16.xpose.msra.mxu0 0
    %1573 = vmatprep.subr.bf16.mxu0 0
    %1574 = vmatpush1.bf16.xpose.msra.mxu0 0
    %1575 = vmatprep.subr.bf16.mxu0 0
    %1576 = vmatpush1.bf16.xpose.msra.mxu0 0
    %1577 = vmatprep.subr.bf16.mxu0 0
    %1578 = vmatpush1.bf16.xpose.msra.mxu0 0
    %1579 = vmatprep.subr.bf16.mxu0 0
    %1580 = vmatpush1.bf16.xpose.msra.mxu0 0
    %1581 = vmatprep.subr.bf16.mxu0 0
    %1582 = vmatpush1.bf16.xpose.msra.mxu0 0
    %1583 = vmatprep.subr.bf16.mxu0 0
    %1584 = vmatpush1.bf16.xpose.msra.mxu0 0
    %1585 = vmatprep.mubr.bf16.mxu0 0
    %1586 = vmatmul.mubr.bf16.gmra.mrb[0].mxu0 %v1548
    %v1587 = vpop.f32.mrb[0].mxu0
    %v1588 = vadd.f32 0.0, %v1587
    %v1589 = vpop.f32.mrb[0].mxu0
    %v1590 = vpop.f32.mrb[0].mxu0
    %v1591 = vpop.f32.mrb[0].mxu0
    %1592 = vdwg.mxu0
    %v1594 = vsel %vm1362, %v759, 0
    %v1597 = vsel %vm1362, %v1059, 0
    %1599 = vmatprep.subr.bf16.mxu0 0
    %1600 = vmatpush1.bf16.xpose.msra.mxu0 %v1597
    %1601 = vmatprep.subr.bf16.mxu0 0
    %1602 = vmatpush1.bf16.xpose.msra.mxu0 0
    %1603 = vmatprep.subr.bf16.mxu0 0
    %1604 = vmatpush1.bf16.xpose.msra.mxu0 0
    %1605 = vmatprep.subr.bf16.mxu0 0
    %1606 = vmatpush1.bf16.xpose.msra.mxu0 0
    %1607 = vmatprep.subr.bf16.mxu0 0
    %1608 = vmatpush1.bf16.xpose.msra.mxu0 0
    %1609 = vmatprep.subr.bf16.mxu0 0
    %1610 = vmatpush1.bf16.xpose.msra.mxu0 0
    %1611 = vmatprep.subr.bf16.mxu0 0
    %1612 = vmatpush1.bf16.xpose.msra.mxu0 0
    %1613 = vmatprep.subr.bf16.mxu0 0
    %1614 = vmatpush1.bf16.xpose.msra.mxu0 0
    %1615 = vmatprep.subr.bf16.mxu0 0
    %1616 = vmatpush1.bf16.xpose.msra.mxu0 0
    %1617 = vmatprep.subr.bf16.mxu0 0
    %1618 = vmatpush1.bf16.xpose.msra.mxu0 0
    %1619 = vmatprep.subr.bf16.mxu0 0
    %1620 = vmatpush1.bf16.xpose.msra.mxu0 0
    %1621 = vmatprep.subr.bf16.mxu0 0
    %1622 = vmatpush1.bf16.xpose.msra.mxu0 0
    %1623 = vmatprep.subr.bf16.mxu0 0
    %1624 = vmatpush1.bf16.xpose.msra.mxu0 0
    %1625 = vmatprep.subr.bf16.mxu0 0
    %1626 = vmatpush1.bf16.xpose.msra.mxu0 0
    %1627 = vmatprep.subr.bf16.mxu0 0
    %1628 = vmatpush1.bf16.xpose.msra.mxu0 0
    %1629 = vmatprep.subr.bf16.mxu0 0
    %1630 = vmatpush1.bf16.xpose.msra.mxu0 0
    %1631 = vmatprep.mubr.bf16.mxu0 0
    %1632 = vmatmul.mubr.bf16.gmra.mrb[0].mxu0 %v1594
    %v1633 = vpop.f32.mrb[0].mxu0
    %v1634 = vadd.f32 0.0, %v1633
    %v1635 = vpop.f32.mrb[0].mxu0
    %v1636 = vpop.f32.mrb[0].mxu0
    %v1637 = vpop.f32.mrb[0].mxu0
    %1638 = vdwg.mxu0
    %v1640 = vsel %vm1362, %v760, 0
    %v1643 = vsel %vm1362, %v1060, 0
    %1645 = vmatprep.subr.bf16.mxu0 0
    %1646 = vmatpush1.bf16.xpose.msra.mxu0 %v1643
    %1647 = vmatprep.subr.bf16.mxu0 0
    %1648 = vmatpush1.bf16.xpose.msra.mxu0 0
    %1649 = vmatprep.subr.bf16.mxu0 0
    %1650 = vmatpush1.bf16.xpose.msra.mxu0 0
    %1651 = vmatprep.subr.bf16.mxu0 0
    %1652 = vmatpush1.bf16.xpose.msra.mxu0 0
    %1653 = vmatprep.subr.bf16.mxu0 0
    %1654 = vmatpush1.bf16.xpose.msra.mxu0 0
    %1655 = vmatprep.subr.bf16.mxu0 0
    %1656 = vmatpush1.bf16.xpose.msra.mxu0 0
    %1657 = vmatprep.subr.bf16.mxu0 0
    %1658 = vmatpush1.bf16.xpose.msra.mxu0 0
    %1659 = vmatprep.subr.bf16.mxu0 0
    %1660 = vmatpush1.bf16.xpose.msra.mxu0 0
    %1661 = vmatprep.subr.bf16.mxu0 0
    %1662 = vmatpush1.bf16.xpose.msra.mxu0 0
    %1663 = vmatprep.subr.bf16.mxu0 0
    %1664 = vmatpush1.bf16.xpose.msra.mxu0 0
    %1665 = vmatprep.subr.bf16.mxu0 0
    %1666 = vmatpush1.bf16.xpose.msra.mxu0 0
    %1667 = vmatprep.subr.bf16.mxu0 0
    %1668 = vmatpush1.bf16.xpose.msra.mxu0 0
    %1669 = vmatprep.subr.bf16.mxu0 0
    %1670 = vmatpush1.bf16.xpose.msra.mxu0 0
    %1671 = vmatprep.subr.bf16.mxu0 0
    %1672 = vmatpush1.bf16.xpose.msra.mxu0 0
    %1673 = vmatprep.subr.bf16.mxu0 0
    %1674 = vmatpush1.bf16.xpose.msra.mxu0 0
    %1675 = vmatprep.subr.bf16.mxu0 0
    %1676 = vmatpush1.bf16.xpose.msra.mxu0 0
    %1677 = vmatprep.mubr.bf16.mxu0 0
    %1678 = vmatmul.mubr.bf16.gmra.mrb[0].mxu0 %v1640
    %v1679 = vpop.f32.mrb[0].mxu0
    %v1680 = vadd.f32 0.0, %v1679
    %v1681 = vpop.f32.mrb[0].mxu0
    %v1682 = vpop.f32.mrb[0].mxu0
    %v1683 = vpop.f32.mrb[0].mxu0
    %1684 = vdwg.mxu0
    %v1686 = vsel %vm1362, %v761, 0
    %v1689 = vsel %vm1362, %v1061, 0
    %1691 = vmatprep.subr.bf16.mxu0 0
    %1692 = vmatpush1.bf16.xpose.msra.mxu0 %v1689
    %1693 = vmatprep.subr.bf16.mxu0 0
    %1694 = vmatpush1.bf16.xpose.msra.mxu0 0
    %1695 = vmatprep.subr.bf16.mxu0 0
    %1696 = vmatpush1.bf16.xpose.msra.mxu0 0
    %1697 = vmatprep.subr.bf16.mxu0 0
    %1698 = vmatpush1.bf16.xpose.msra.mxu0 0
    %1699 = vmatprep.subr.bf16.mxu0 0
    %1700 = vmatpush1.bf16.xpose.msra.mxu0 0
    %1701 = vmatprep.subr.bf16.mxu0 0
    %1702 = vmatpush1.bf16.xpose.msra.mxu0 0
    %1703 = vmatprep.subr.bf16.mxu0 0
    %1704 = vmatpush1.bf16.xpose.msra.mxu0 0
    %1705 = vmatprep.subr.bf16.mxu0 0
    %1706 = vmatpush1.bf16.xpose.msra.mxu0 0
    %1707 = vmatprep.subr.bf16.mxu0 0
    %1708 = vmatpush1.bf16.xpose.msra.mxu0 0
    %1709 = vmatprep.subr.bf16.mxu0 0
    %1710 = vmatpush1.bf16.xpose.msra.mxu0 0
    %1711 = vmatprep.subr.bf16.mxu0 0
    %1712 = vmatpush1.bf16.xpose.msra.mxu0 0
    %1713 = vmatprep.subr.bf16.mxu0 0
    %1714 = vmatpush1.bf16.xpose.msra.mxu0 0
    %1715 = vmatprep.subr.bf16.mxu0 0
    %1716 = vmatpush1.bf16.xpose.msra.mxu0 0
    %1717 = vmatprep.subr.bf16.mxu0 0
    %1718 = vmatpush1.bf16.xpose.msra.mxu0 0
    %1719 = vmatprep.subr.bf16.mxu0 0
    %1720 = vmatpush1.bf16.xpose.msra.mxu0 0
    %1721 = vmatprep.subr.bf16.mxu0 0
    %1722 = vmatpush1.bf16.xpose.msra.mxu0 0
    %1723 = vmatprep.mubr.bf16.mxu0 0
    %1724 = vmatmul.mubr.bf16.gmra.mrb[0].mxu0 %v1686
    %v1725 = vpop.f32.mrb[0].mxu0
    %v1726 = vadd.f32 0.0, %v1725
    %v1727 = vpop.f32.mrb[0].mxu0
    %v1728 = vpop.f32.mrb[0].mxu0
    %v1729 = vpop.f32.mrb[0].mxu0
    %1730 = vdwg.mxu0
    %v1731 = vsel %vm1362, %v1404, -inf
    %1732 = vmax.xlane.f32.xlu0 %v1731
    %v1733 = vpop.xlane.xlu0 %1732
    %v1734 = vsel %vm1362, %v1450, -inf
    %1735 = vmax.xlane.f32.xlu0 %v1734
    %v1736 = vpop.xlane.xlu0 %1735
    %v1737 = vsel %vm1362, %v1496, -inf
    %1738 = vmax.xlane.f32.xlu0 %v1737
    %v1739 = vpop.xlane.xlu0 %1738
    %v1740 = vsel %vm1362, %v1542, -inf
    %1741 = vmax.xlane.f32.xlu0 %v1740
    %v1742 = vpop.xlane.xlu0 %1741
    %v1743 = vsel %vm1362, %v1588, -inf
    %1744 = vmax.xlane.f32.xlu0 %v1743
    %v1745 = vpop.xlane.xlu0 %1744
    %v1746 = vsel %vm1362, %v1634, -inf
    %1747 = vmax.xlane.f32.xlu0 %v1746
    %v1748 = vpop.xlane.xlu0 %1747
    %v1749 = vsel %vm1362, %v1680, -inf
    %1750 = vmax.xlane.f32.xlu0 %v1749
    %v1751 = vpop.xlane.xlu0 %1750
    %v1752 = vsel %vm1362, %v1726, -inf
    %1753 = vmax.xlane.f32.xlu0 %v1752
    %v1754 = vpop.xlane.xlu0 %1753
    %v1755 = vsub.f32 %v1404, %v1733
    %v1756 = vsub.f32 %v1450, %v1736
    %v1757 = vsub.f32 %v1496, %v1739
    %v1758 = vsub.f32 %v1542, %v1742
    %v1759 = vsub.f32 %v1588, %v1745
    %v1760 = vsub.f32 %v1634, %v1748
    %v1761 = vsub.f32 %v1680, %v1751
    %v1762 = vsub.f32 %v1726, %v1754
    %v1763 = vmul.f32 %v1755, 1.442695
    %v1764 = vpow.pop %v1763
    %v1765 = vmul.f32 %v1756, 1.442695
    %v1766 = vpow.pop %v1765
    %v1767 = vmul.f32 %v1757, 1.442695
    %v1768 = vpow.pop %v1767
    %v1769 = vmul.f32 %v1758, 1.442695
    %v1770 = vpow.pop %v1769
    %v1771 = vmul.f32 %v1759, 1.442695
    %v1772 = vpow.pop %v1771
    %v1773 = vmul.f32 %v1760, 1.442695
    %v1774 = vpow.pop %v1773
    %v1775 = vmul.f32 %v1761, 1.442695
    %v1776 = vpow.pop %v1775
    %v1777 = vmul.f32 %v1762, 1.442695
    %v1778 = vpow.pop %v1777
    %v1779 = vsel %vm1362, %v1764, 0.0
    %1780 = vadd.xlane.f32.xlu0 %v1779
    %v1781 = vpop.xlane.xlu0 %1780
    %v1782 = vsel %vm1362, %v1766, 0.0
    %1783 = vadd.xlane.f32.xlu0 %v1782
    %v1784 = vpop.xlane.xlu0 %1783
    %v1785 = vsel %vm1362, %v1768, 0.0
    %1786 = vadd.xlane.f32.xlu0 %v1785
    %v1787 = vpop.xlane.xlu0 %1786
    %v1788 = vsel %vm1362, %v1770, 0.0
    %1789 = vadd.xlane.f32.xlu0 %v1788
    %v1790 = vpop.xlane.xlu0 %1789
    %v1791 = vsel %vm1362, %v1772, 0.0
    %1792 = vadd.xlane.f32.xlu0 %v1791
    %v1793 = vpop.xlane.xlu0 %1792
    %v1794 = vsel %vm1362, %v1774, 0.0
    %1795 = vadd.xlane.f32.xlu0 %v1794
    %v1796 = vpop.xlane.xlu0 %1795
    %v1797 = vsel %vm1362, %v1776, 0.0
    %1798 = vadd.xlane.f32.xlu0 %v1797
    %v1799 = vpop.xlane.xlu0 %1798
    %v1800 = vsel %vm1362, %v1778, 0.0
    %1801 = vadd.xlane.f32.xlu0 %v1800
    %v1802 = vpop.xlane.xlu0 %1801
    %v1803 = vrcp.pop %v1781
    %v1804 = vrcp.pop %v1784
    %v1805 = vrcp.pop %v1787
    %v1806 = vrcp.pop %v1790
    %v1807 = vrcp.pop %v1793
    %v1808 = vrcp.pop %v1796
    %v1809 = vrcp.pop %v1799
    %v1810 = vrcp.pop %v1802
    %v1811 = vmul.f32 %v1764, %v1803
    %v1812 = vmul.f32 %v1766, %v1804
    %v1813 = vmul.f32 %v1768, %v1805
    %v1814 = vmul.f32 %v1770, %v1806
    %v1815 = vmul.f32 %v1772, %v1807
    %v1816 = vmul.f32 %v1774, %v1808
    %v1817 = vmul.f32 %v1776, %v1809
    %v1818 = vmul.f32 %v1778, %v1810
    %v1819 = vpack.c.bf16 %v1811, %v1811
    %v1820 = vpack.c.bf16 %v1812, %v1812
    %v1821 = vpack.c.bf16 %v1813, %v1813
    %v1822 = vpack.c.bf16 %v1814, %v1814
    %v1823 = vpack.c.bf16 %v1815, %v1815
    %v1824 = vpack.c.bf16 %v1816, %v1816
    %v1825 = vpack.c.bf16 %v1817, %v1817
    %v1826 = vpack.c.bf16 %v1818, %v1818
    %v1828 = vsel %vm1362, %v1819, 0
    %vm1830 = vcmask 1043456
    %v1832 = vsel %vm1830, %v1354, 0
    %1834 = vmatprep.subr.bf16.mxu0 0
    %1835 = vmatpush1.bf16.msra.mxu0 %v1832
    %1836 = vmatprep.subr.bf16.mxu0 0
    %1837 = vmatpush1.bf16.msra.mxu0 0
    %1838 = vmatprep.subr.bf16.mxu0 0
    %1839 = vmatpush1.bf16.msra.mxu0 0
    %1840 = vmatprep.subr.bf16.mxu0 0
    %1841 = vmatpush1.bf16.msra.mxu0 0
    %1842 = vmatprep.subr.bf16.mxu0 0
    %1843 = vmatpush1.bf16.msra.mxu0 0
    %1844 = vmatprep.subr.bf16.mxu0 0
    %1845 = vmatpush1.bf16.msra.mxu0 0
    %1846 = vmatprep.subr.bf16.mxu0 0
    %1847 = vmatpush1.bf16.msra.mxu0 0
    %1848 = vmatprep.subr.bf16.mxu0 0
    %1849 = vmatpush1.bf16.msra.mxu0 0
    %1850 = vmatprep.subr.bf16.mxu0 0
    %1851 = vmatpush1.bf16.msra.mxu0 0
    %1852 = vmatprep.subr.bf16.mxu0 0
    %1853 = vmatpush1.bf16.msra.mxu0 0
    %1854 = vmatprep.subr.bf16.mxu0 0
    %1855 = vmatpush1.bf16.msra.mxu0 0
    %1856 = vmatprep.subr.bf16.mxu0 0
    %1857 = vmatpush1.bf16.msra.mxu0 0
    %1858 = vmatprep.subr.bf16.mxu0 0
    %1859 = vmatpush1.bf16.msra.mxu0 0
    %1860 = vmatprep.subr.bf16.mxu0 0
    %1861 = vmatpush1.bf16.msra.mxu0 0
    %1862 = vmatprep.subr.bf16.mxu0 0
    %1863 = vmatpush1.bf16.msra.mxu0 0
    %1864 = vmatprep.subr.bf16.mxu0 0
    %1865 = vmatpush1.bf16.msra.mxu0 0
    %1866 = vmatprep.mubr.bf16.mxu0 0
    %1867 = vmatmul.mubr.bf16.gmra.mrb[0].mxu0 %v1828
    %v1868 = vpop.f32.mrb[0].mxu0
    %v1869 = vadd.f32 0.0, %v1868
    %v1870 = vpop.f32.mrb[0].mxu0
    %v1871 = vpop.f32.mrb[0].mxu0
    %v1872 = vpop.f32.mrb[0].mxu0
    %1873 = vdwg.mxu0
    %v1875 = vsel %vm1362, %v1820, 0
    %v1878 = vsel %vm1830, %v1355, 0
    %1880 = vmatprep.subr.bf16.mxu0 0
    %1881 = vmatpush1.bf16.msra.mxu0 %v1878
    %1882 = vmatprep.subr.bf16.mxu0 0
    %1883 = vmatpush1.bf16.msra.mxu0 0
    %1884 = vmatprep.subr.bf16.mxu0 0
    %1885 = vmatpush1.bf16.msra.mxu0 0
    %1886 = vmatprep.subr.bf16.mxu0 0
    %1887 = vmatpush1.bf16.msra.mxu0 0
    %1888 = vmatprep.subr.bf16.mxu0 0
    %1889 = vmatpush1.bf16.msra.mxu0 0
    %1890 = vmatprep.subr.bf16.mxu0 0
    %1891 = vmatpush1.bf16.msra.mxu0 0
    %1892 = vmatprep.subr.bf16.mxu0 0
    %1893 = vmatpush1.bf16.msra.mxu0 0
    %1894 = vmatprep.subr.bf16.mxu0 0
    %1895 = vmatpush1.bf16.msra.mxu0 0
    %1896 = vmatprep.subr.bf16.mxu0 0
    %1897 = vmatpush1.bf16.msra.mxu0 0
    %1898 = vmatprep.subr.bf16.mxu0 0
    %1899 = vmatpush1.bf16.msra.mxu0 0
    %1900 = vmatprep.subr.bf16.mxu0 0
    %1901 = vmatpush1.bf16.msra.mxu0 0
    %1902 = vmatprep.subr.bf16.mxu0 0
    %1903 = vmatpush1.bf16.msra.mxu0 0
    %1904 = vmatprep.subr.bf16.mxu0 0
    %1905 = vmatpush1.bf16.msra.mxu0 0
    %1906 = vmatprep.subr.bf16.mxu0 0
    %1907 = vmatpush1.bf16.msra.mxu0 0
    %1908 = vmatprep.subr.bf16.mxu0 0
    %1909 = vmatpush1.bf16.msra.mxu0 0
    %1910 = vmatprep.subr.bf16.mxu0 0
    %1911 = vmatpush1.bf16.msra.mxu0 0
    %1912 = vmatprep.mubr.bf16.mxu0 0
    %1913 = vmatmul.mubr.bf16.gmra.mrb[0].mxu0 %v1875
    %v1914 = vpop.f32.mrb[0].mxu0
    %v1915 = vadd.f32 0.0, %v1914
    %v1916 = vpop.f32.mrb[0].mxu0
    %v1917 = vpop.f32.mrb[0].mxu0
    %v1918 = vpop.f32.mrb[0].mxu0
    %1919 = vdwg.mxu0
    %v1921 = vsel %vm1362, %v1821, 0
    %v1924 = vsel %vm1830, %v1356, 0
    %1926 = vmatprep.subr.bf16.mxu0 0
    %1927 = vmatpush1.bf16.msra.mxu0 %v1924
    %1928 = vmatprep.subr.bf16.mxu0 0
    %1929 = vmatpush1.bf16.msra.mxu0 0
    %1930 = vmatprep.subr.bf16.mxu0 0
    %1931 = vmatpush1.bf16.msra.mxu0 0
    %1932 = vmatprep.subr.bf16.mxu0 0
    %1933 = vmatpush1.bf16.msra.mxu0 0
    %1934 = vmatprep.subr.bf16.mxu0 0
    %1935 = vmatpush1.bf16.msra.mxu0 0
    %1936 = vmatprep.subr.bf16.mxu0 0
    %1937 = vmatpush1.bf16.msra.mxu0 0
    %1938 = vmatprep.subr.bf16.mxu0 0
    %1939 = vmatpush1.bf16.msra.mxu0 0
    %1940 = vmatprep.subr.bf16.mxu0 0
    %1941 = vmatpush1.bf16.msra.mxu0 0
    %1942 = vmatprep.subr.bf16.mxu0 0
    %1943 = vmatpush1.bf16.msra.mxu0 0
    %1944 = vmatprep.subr.bf16.mxu0 0
    %1945 = vmatpush1.bf16.msra.mxu0 0
    %1946 = vmatprep.subr.bf16.mxu0 0
    %1947 = vmatpush1.bf16.msra.mxu0 0
    %1948 = vmatprep.subr.bf16.mxu0 0
    %1949 = vmatpush1.bf16.msra.mxu0 0
    %1950 = vmatprep.subr.bf16.mxu0 0
    %1951 = vmatpush1.bf16.msra.mxu0 0
    %1952 = vmatprep.subr.bf16.mxu0 0
    %1953 = vmatpush1.bf16.msra.mxu0 0
    %1954 = vmatprep.subr.bf16.mxu0 0
    %1955 = vmatpush1.bf16.msra.mxu0 0
    %1956 = vmatprep.subr.bf16.mxu0 0
    %1957 = vmatpush1.bf16.msra.mxu0 0
    %1958 = vmatprep.mubr.bf16.mxu0 0
    %1959 = vmatmul.mubr.bf16.gmra.mrb[0].mxu0 %v1921
    %v1960 = vpop.f32.mrb[0].mxu0
    %v1961 = vadd.f32 0.0, %v1960
    %v1962 = vpop.f32.mrb[0].mxu0
    %v1963 = vpop.f32.mrb[0].mxu0
    %v1964 = vpop.f32.mrb[0].mxu0
    %1965 = vdwg.mxu0
    %v1967 = vsel %vm1362, %v1822, 0
    %v1970 = vsel %vm1830, %v1357, 0
    %1972 = vmatprep.subr.bf16.mxu0 0
    %1973 = vmatpush1.bf16.msra.mxu0 %v1970
    %1974 = vmatprep.subr.bf16.mxu0 0
    %1975 = vmatpush1.bf16.msra.mxu0 0
    %1976 = vmatprep.subr.bf16.mxu0 0
    %1977 = vmatpush1.bf16.msra.mxu0 0
    %1978 = vmatprep.subr.bf16.mxu0 0
    %1979 = vmatpush1.bf16.msra.mxu0 0
    %1980 = vmatprep.subr.bf16.mxu0 0
    %1981 = vmatpush1.bf16.msra.mxu0 0
    %1982 = vmatprep.subr.bf16.mxu0 0
    %1983 = vmatpush1.bf16.msra.mxu0 0
    %1984 = vmatprep.subr.bf16.mxu0 0
    %1985 = vmatpush1.bf16.msra.mxu0 0
    %1986 = vmatprep.subr.bf16.mxu0 0
    %1987 = vmatpush1.bf16.msra.mxu0 0
    %1988 = vmatprep.subr.bf16.mxu0 0
    %1989 = vmatpush1.bf16.msra.mxu0 0
    %1990 = vmatprep.subr.bf16.mxu0 0
    %1991 = vmatpush1.bf16.msra.mxu0 0
    %1992 = vmatprep.subr.bf16.mxu0 0
    %1993 = vmatpush1.bf16.msra.mxu0 0
    %1994 = vmatprep.subr.bf16.mxu0 0
    %1995 = vmatpush1.bf16.msra.mxu0 0
    %1996 = vmatprep.subr.bf16.mxu0 0
    %1997 = vmatpush1.bf16.msra.mxu0 0
    %1998 = vmatprep.subr.bf16.mxu0 0
    %1999 = vmatpush1.bf16.msra.mxu0 0
    %2000 = vmatprep.subr.bf16.mxu0 0
    %2001 = vmatpush1.bf16.msra.mxu0 0
    %2002 = vmatprep.subr.bf16.mxu0 0
    %2003 = vmatpush1.bf16.msra.mxu0 0
    %2004 = vmatprep.mubr.bf16.mxu0 0
    %2005 = vmatmul.mubr.bf16.gmra.mrb[0].mxu0 %v1967
    %v2006 = vpop.f32.mrb[0].mxu0
    %v2007 = vadd.f32 0.0, %v2006
    %v2008 = vpop.f32.mrb[0].mxu0
    %v2009 = vpop.f32.mrb[0].mxu0
    %v2010 = vpop.f32.mrb[0].mxu0
    %2011 = vdwg.mxu0
    %v2013 = vsel %vm1362, %v1823, 0
    %v2016 = vsel %vm1830, %v1358, 0
    %2018 = vmatprep.subr.bf16.mxu0 0
    %2019 = vmatpush1.bf16.msra.mxu0 %v2016
    %2020 = vmatprep.subr.bf16.mxu0 0
    %2021 = vmatpush1.bf16.msra.mxu0 0
    %2022 = vmatprep.subr.bf16.mxu0 0
    %2023 = vmatpush1.bf16.msra.mxu0 0
    %2024 = vmatprep.subr.bf16.mxu0 0
    %2025 = vmatpush1.bf16.msra.mxu0 0
    %2026 = vmatprep.subr.bf16.mxu0 0
    %2027 = vmatpush1.bf16.msra.mxu0 0
    %2028 = vmatprep.subr.bf16.mxu0 0
    %2029 = vmatpush1.bf16.msra.mxu0 0
    %2030 = vmatprep.subr.bf16.mxu0 0
    %2031 = vmatpush1.bf16.msra.mxu0 0
    %2032 = vmatprep.subr.bf16.mxu0 0
    %2033 = vmatpush1.bf16.msra.mxu0 0
    %2034 = vmatprep.subr.bf16.mxu0 0
    %2035 = vmatpush1.bf16.msra.mxu0 0
    %2036 = vmatprep.subr.bf16.mxu0 0
    %2037 = vmatpush1.bf16.msra.mxu0 0
    %2038 = vmatprep.subr.bf16.mxu0 0
    %2039 = vmatpush1.bf16.msra.mxu0 0
    %2040 = vmatprep.subr.bf16.mxu0 0
    %2041 = vmatpush1.bf16.msra.mxu0 0
    %2042 = vmatprep.subr.bf16.mxu0 0
    %2043 = vmatpush1.bf16.msra.mxu0 0
    %2044 = vmatprep.subr.bf16.mxu0 0
    %2045 = vmatpush1.bf16.msra.mxu0 0
    %2046 = vmatprep.subr.bf16.mxu0 0
    %2047 = vmatpush1.bf16.msra.mxu0 0
    %2048 = vmatprep.subr.bf16.mxu0 0
    %2049 = vmatpush1.bf16.msra.mxu0 0
    %2050 = vmatprep.mubr.bf16.mxu0 0
    %2051 = vmatmul.mubr.bf16.gmra.mrb[0].mxu0 %v2013
    %v2052 = vpop.f32.mrb[0].mxu0
    %v2053 = vadd.f32 0.0, %v2052
    %v2054 = vpop.f32.mrb[0].mxu0
    %v2055 = vpop.f32.mrb[0].mxu0
    %v2056 = vpop.f32.mrb[0].mxu0
    %2057 = vdwg.mxu0
    %v2059 = vsel %vm1362, %v1824, 0
    %v2062 = vsel %vm1830, %v1359, 0
    %2064 = vmatprep.subr.bf16.mxu0 0
    %2065 = vmatpush1.bf16.msra.mxu0 %v2062
    %2066 = vmatprep.subr.bf16.mxu0 0
    %2067 = vmatpush1.bf16.msra.mxu0 0
    %2068 = vmatprep.subr.bf16.mxu0 0
    %2069 = vmatpush1.bf16.msra.mxu0 0
    %2070 = vmatprep.subr.bf16.mxu0 0
    %2071 = vmatpush1.bf16.msra.mxu0 0
    %2072 = vmatprep.subr.bf16.mxu0 0
    %2073 = vmatpush1.bf16.msra.mxu0 0
    %2074 = vmatprep.subr.bf16.mxu0 0
    %2075 = vmatpush1.bf16.msra.mxu0 0
    %2076 = vmatprep.subr.bf16.mxu0 0
    %2077 = vmatpush1.bf16.msra.mxu0 0
    %2078 = vmatprep.subr.bf16.mxu0 0
    %2079 = vmatpush1.bf16.msra.mxu0 0
    %2080 = vmatprep.subr.bf16.mxu0 0
    %2081 = vmatpush1.bf16.msra.mxu0 0
    %2082 = vmatprep.subr.bf16.mxu0 0
    %2083 = vmatpush1.bf16.msra.mxu0 0
    %2084 = vmatprep.subr.bf16.mxu0 0
    %2085 = vmatpush1.bf16.msra.mxu0 0
    %2086 = vmatprep.subr.bf16.mxu0 0
    %2087 = vmatpush1.bf16.msra.mxu0 0
    %2088 = vmatprep.subr.bf16.mxu0 0
    %2089 = vmatpush1.bf16.msra.mxu0 0
    %2090 = vmatprep.subr.bf16.mxu0 0
    %2091 = vmatpush1.bf16.msra.mxu0 0
    %2092 = vmatprep.subr.bf16.mxu0 0
    %2093 = vmatpush1.bf16.msra.mxu0 0
    %2094 = vmatprep.subr.bf16.mxu0 0
    %2095 = vmatpush1.bf16.msra.mxu0 0
    %2096 = vmatprep.mubr.bf16.mxu0 0
    %2097 = vmatmul.mubr.bf16.gmra.mrb[0].mxu0 %v2059
    %v2098 = vpop.f32.mrb[0].mxu0
    %v2099 = vadd.f32 0.0, %v2098
    %v2100 = vpop.f32.mrb[0].mxu0
    %v2101 = vpop.f32.mrb[0].mxu0
    %v2102 = vpop.f32.mrb[0].mxu0
    %2103 = vdwg.mxu0
    %v2105 = vsel %vm1362, %v1825, 0
    %v2108 = vsel %vm1830, %v1360, 0
    %2110 = vmatprep.subr.bf16.mxu0 0
    %2111 = vmatpush1.bf16.msra.mxu0 %v2108
    %2112 = vmatprep.subr.bf16.mxu0 0
    %2113 = vmatpush1.bf16.msra.mxu0 0
    %2114 = vmatprep.subr.bf16.mxu0 0
    %2115 = vmatpush1.bf16.msra.mxu0 0
    %2116 = vmatprep.subr.bf16.mxu0 0
    %2117 = vmatpush1.bf16.msra.mxu0 0
    %2118 = vmatprep.subr.bf16.mxu0 0
    %2119 = vmatpush1.bf16.msra.mxu0 0
    %2120 = vmatprep.subr.bf16.mxu0 0
    %2121 = vmatpush1.bf16.msra.mxu0 0
    %2122 = vmatprep.subr.bf16.mxu0 0
    %2123 = vmatpush1.bf16.msra.mxu0 0
    %2124 = vmatprep.subr.bf16.mxu0 0
    %2125 = vmatpush1.bf16.msra.mxu0 0
    %2126 = vmatprep.subr.bf16.mxu0 0
    %2127 = vmatpush1.bf16.msra.mxu0 0
    %2128 = vmatprep.subr.bf16.mxu0 0
    %2129 = vmatpush1.bf16.msra.mxu0 0
    %2130 = vmatprep.subr.bf16.mxu0 0
    %2131 = vmatpush1.bf16.msra.mxu0 0
    %2132 = vmatprep.subr.bf16.mxu0 0
    %2133 = vmatpush1.bf16.msra.mxu0 0
    %2134 = vmatprep.subr.bf16.mxu0 0
    %2135 = vmatpush1.bf16.msra.mxu0 0
    %2136 = vmatprep.subr.bf16.mxu0 0
    %2137 = vmatpush1.bf16.msra.mxu0 0
    %2138 = vmatprep.subr.bf16.mxu0 0
    %2139 = vmatpush1.bf16.msra.mxu0 0
    %2140 = vmatprep.subr.bf16.mxu0 0
    %2141 = vmatpush1.bf16.msra.mxu0 0
    %2142 = vmatprep.mubr.bf16.mxu0 0
    %2143 = vmatmul.mubr.bf16.gmra.mrb[0].mxu0 %v2105
    %v2144 = vpop.f32.mrb[0].mxu0
    %v2145 = vadd.f32 0.0, %v2144
    %v2146 = vpop.f32.mrb[0].mxu0
    %v2147 = vpop.f32.mrb[0].mxu0
    %v2148 = vpop.f32.mrb[0].mxu0
    %2149 = vdwg.mxu0
    %v2151 = vsel %vm1362, %v1826, 0
    %v2154 = vsel %vm1830, %v1361, 0
    %2156 = vmatprep.subr.bf16.mxu0 0
    %2157 = vmatpush1.bf16.msra.mxu0 %v2154
    %2158 = vmatprep.subr.bf16.mxu0 0
    %2159 = vmatpush1.bf16.msra.mxu0 0
    %2160 = vmatprep.subr.bf16.mxu0 0
    %2161 = vmatpush1.bf16.msra.mxu0 0
    %2162 = vmatprep.subr.bf16.mxu0 0
    %2163 = vmatpush1.bf16.msra.mxu0 0
    %2164 = vmatprep.subr.bf16.mxu0 0
    %2165 = vmatpush1.bf16.msra.mxu0 0
    %2166 = vmatprep.subr.bf16.mxu0 0
    %2167 = vmatpush1.bf16.msra.mxu0 0
    %2168 = vmatprep.subr.bf16.mxu0 0
    %2169 = vmatpush1.bf16.msra.mxu0 0
    %2170 = vmatprep.subr.bf16.mxu0 0
    %2171 = vmatpush1.bf16.msra.mxu0 0
    %2172 = vmatprep.subr.bf16.mxu0 0
    %2173 = vmatpush1.bf16.msra.mxu0 0
    %2174 = vmatprep.subr.bf16.mxu0 0
    %2175 = vmatpush1.bf16.msra.mxu0 0
    %2176 = vmatprep.subr.bf16.mxu0 0
    %2177 = vmatpush1.bf16.msra.mxu0 0
    %2178 = vmatprep.subr.bf16.mxu0 0
    %2179 = vmatpush1.bf16.msra.mxu0 0
    %2180 = vmatprep.subr.bf16.mxu0 0
    %2181 = vmatpush1.bf16.msra.mxu0 0
    %2182 = vmatprep.subr.bf16.mxu0 0
    %2183 = vmatpush1.bf16.msra.mxu0 0
    %2184 = vmatprep.subr.bf16.mxu0 0
    %2185 = vmatpush1.bf16.msra.mxu0 0
    %2186 = vmatprep.subr.bf16.mxu0 0
    %2187 = vmatpush1.bf16.msra.mxu0 0
    %2188 = vmatprep.mubr.bf16.mxu0 0
    %2189 = vmatmul.mubr.bf16.gmra.mrb[0].mxu0 %v2151
    %v2190 = vpop.f32.mrb[0].mxu0
    %v2191 = vadd.f32 0.0, %v2190
    %v2192 = vpop.f32.mrb[0].mxu0
    %v2193 = vpop.f32.mrb[0].mxu0
    %v2194 = vpop.f32.mrb[0].mxu0
    %2195 = vdwg.mxu0
    %v2196 = vcombine.low %v1869, %v1961
    %v2197 = vcombine.high %v1869, %v1961
    %v2199 = vunpack.c.l.s4 1983009808
    %v2200 = vunpack.c.0.s8 %v2199
    %v2201 = vlaneseq
    %v2202 = vshrl.u32 %v2201, 7
    %v2203 = vsub.s32 %v2200, %v2202
    %v2204 = vrot.slane %v2196, %v2203
    %v2206 = vunpack.c.l.s4 1983009808
    %v2207 = vunpack.c.0.s8 %v2206
    %v2208 = vlaneseq
    %v2209 = vshrl.u32 %v2208, 7
    %v2210 = vsub.s32 %v2207, %v2209
    %v2211 = vrot.slane %v2197, %v2210
    %v2212 = vcombine.low %v1915, %v2007
    %v2213 = vcombine.high %v1915, %v2007
    %v2215 = vunpack.c.l.s4 1983009808
    %v2216 = vunpack.c.0.s8 %v2215
    %v2217 = vlaneseq
    %v2218 = vshrl.u32 %v2217, 7
    %v2219 = vsub.s32 %v2216, %v2218
    %v2220 = vrot.slane %v2212, %v2219
    %v2222 = vunpack.c.l.s4 1983009808
    %v2223 = vunpack.c.0.s8 %v2222
    %v2224 = vlaneseq
    %v2225 = vshrl.u32 %v2224, 7
    %v2226 = vsub.s32 %v2223, %v2225
    %v2227 = vrot.slane %v2213, %v2226
    %v2228 = vcombine.low %v2204, %v2220
    %v2229 = vcombine.high %v2204, %v2220
    %v2231 = vunpack.c.l.s4 1934713408
    %v2232 = vunpack.c.0.s8 %v2231
    %v2233 = vlaneseq
    %v2234 = vshrl.u32 %v2233, 7
    %v2235 = vsub.s32 %v2232, %v2234
    %v2236 = vrot.slane %v2228, %v2235
    %v2238 = vunpack.c.l.s4 1934713408
    %v2239 = vunpack.c.0.s8 %v2238
    %v2240 = vlaneseq
    %v2241 = vshrl.u32 %v2240, 7
    %v2242 = vsub.s32 %v2239, %v2241
    %v2243 = vrot.slane %v2229, %v2242
    %v2244 = vcombine.low %v2211, %v2227
    %v2245 = vcombine.high %v2211, %v2227
    %v2247 = vunpack.c.l.s4 1934713408
    %v2248 = vunpack.c.0.s8 %v2247
    %v2249 = vlaneseq
    %v2250 = vshrl.u32 %v2249, 7
    %v2251 = vsub.s32 %v2248, %v2250
    %v2252 = vrot.slane %v2244, %v2251
    %v2254 = vunpack.c.l.s4 1934713408
    %v2255 = vunpack.c.0.s8 %v2254
    %v2256 = vlaneseq
    %v2257 = vshrl.u32 %v2256, 7
    %v2258 = vsub.s32 %v2255, %v2257
    %v2259 = vrot.slane %v2245, %v2258
    %v2260 = vcombine.high %v2236, 0.0
    %v2261 = vcombine.high %v2243, 0.0
    %v2262 = vcombine.high %v2252, 0.0
    %v2263 = vcombine.high %v2259, 0.0
    %v2264 = vcombine.low %v2053, %v2145
    %v2265 = vcombine.high %v2053, %v2145
    %v2267 = vunpack.c.l.s4 1983009808
    %v2268 = vunpack.c.0.s8 %v2267
    %v2269 = vlaneseq
    %v2270 = vshrl.u32 %v2269, 7
    %v2271 = vsub.s32 %v2268, %v2270
    %v2272 = vrot.slane %v2264, %v2271
    %v2274 = vunpack.c.l.s4 1983009808
    %v2275 = vunpack.c.0.s8 %v2274
    %v2276 = vlaneseq
    %v2277 = vshrl.u32 %v2276, 7
    %v2278 = vsub.s32 %v2275, %v2277
    %v2279 = vrot.slane %v2265, %v2278
    %v2280 = vcombine.low %v2099, %v2191
    %v2281 = vcombine.high %v2099, %v2191
    %v2283 = vunpack.c.l.s4 1983009808
    %v2284 = vunpack.c.0.s8 %v2283
    %v2285 = vlaneseq
    %v2286 = vshrl.u32 %v2285, 7
    %v2287 = vsub.s32 %v2284, %v2286
    %v2288 = vrot.slane %v2280, %v2287
    %v2290 = vunpack.c.l.s4 1983009808
    %v2291 = vunpack.c.0.s8 %v2290
    %v2292 = vlaneseq
    %v2293 = vshrl.u32 %v2292, 7
    %v2294 = vsub.s32 %v2291, %v2293
    %v2295 = vrot.slane %v2281, %v2294
    %v2296 = vcombine.low %v2272, %v2288
    %v2297 = vcombine.high %v2272, %v2288
    %v2299 = vunpack.c.l.s4 1934713408
    %v2300 = vunpack.c.0.s8 %v2299
    %v2301 = vlaneseq
    %v2302 = vshrl.u32 %v2301, 7
    %v2303 = vsub.s32 %v2300, %v2302
    %v2304 = vrot.slane %v2296, %v2303
    %v2306 = vunpack.c.l.s4 1934713408
    %v2307 = vunpack.c.0.s8 %v2306
    %v2308 = vlaneseq
    %v2309 = vshrl.u32 %v2308, 7
    %v2310 = vsub.s32 %v2307, %v2309
    %v2311 = vrot.slane %v2297, %v2310
    %v2312 = vcombine.low %v2279, %v2295
    %v2313 = vcombine.high %v2279, %v2295
    %v2315 = vunpack.c.l.s4 1934713408
    %v2316 = vunpack.c.0.s8 %v2315
    %v2317 = vlaneseq
    %v2318 = vshrl.u32 %v2317, 7
    %v2319 = vsub.s32 %v2316, %v2318
    %v2320 = vrot.slane %v2312, %v2319
    %v2322 = vunpack.c.l.s4 1934713408
    %v2323 = vunpack.c.0.s8 %v2322
    %v2324 = vlaneseq
    %v2325 = vshrl.u32 %v2324, 7
    %v2326 = vsub.s32 %v2323, %v2325
    %v2327 = vrot.slane %v2313, %v2326
    %v2328 = vcombine.high %v2304, 0.0
    %v2329 = vcombine.high %v2311, 0.0
    %v2330 = vcombine.high %v2320, 0.0
    %v2331 = vcombine.high %v2327, 0.0
    %v2332 = vcombine.low %v2236, %v2243
    %v2334 = vunpack.c.l.s4 1983009808
    %v2335 = vunpack.c.0.s8 %v2334
    %v2336 = vlaneseq
    %v2337 = vshrl.u32 %v2336, 7
    %v2338 = vsub.s32 %v2335, %v2337
    %v2339 = vrot.slane %v2332, %v2338
    %v2340 = vcombine.low %v2260, %v2261
    %v2342 = vunpack.c.l.s4 1983009808
    %v2343 = vunpack.c.0.s8 %v2342
    %v2344 = vlaneseq
    %v2345 = vshrl.u32 %v2344, 7
    %v2346 = vsub.s32 %v2343, %v2345
    %v2347 = vrot.slane %v2340, %v2346
    %v2348 = vcombine.low %v2252, %v2259
    %v2350 = vunpack.c.l.s4 1983009808
    %v2351 = vunpack.c.0.s8 %v2350
    %v2352 = vlaneseq
    %v2353 = vshrl.u32 %v2352, 7
    %v2354 = vsub.s32 %v2351, %v2353
    %v2355 = vrot.slane %v2348, %v2354
    %v2356 = vcombine.low %v2262, %v2263
    %v2358 = vunpack.c.l.s4 1983009808
    %v2359 = vunpack.c.0.s8 %v2358
    %v2360 = vlaneseq
    %v2361 = vshrl.u32 %v2360, 7
    %v2362 = vsub.s32 %v2359, %v2361
    %v2363 = vrot.slane %v2356, %v2362
    %v2364 = vcombine.low %v2339, %v2347
    %v2365 = vcombine.high %v2339, %v2347
    %v2367 = vunpack.c.l.s4 1934713408
    %v2368 = vunpack.c.0.s8 %v2367
    %v2369 = vlaneseq
    %v2370 = vshrl.u32 %v2369, 7
    %v2371 = vsub.s32 %v2368, %v2370
    %v2372 = vrot.slane %v2364, %v2371
    %v2374 = vunpack.c.l.s4 1934713408
    %v2375 = vunpack.c.0.s8 %v2374
    %v2376 = vlaneseq
    %v2377 = vshrl.u32 %v2376, 7
    %v2378 = vsub.s32 %v2375, %v2377
    %v2379 = vrot.slane %v2365, %v2378
    %v2380 = vcombine.low %v2355, %v2363
    %v2381 = vcombine.high %v2355, %v2363
    %v2383 = vunpack.c.l.s4 1934713408
    %v2384 = vunpack.c.0.s8 %v2383
    %v2385 = vlaneseq
    %v2386 = vshrl.u32 %v2385, 7
    %v2387 = vsub.s32 %v2384, %v2386
    %v2388 = vrot.slane %v2380, %v2387
    %v2390 = vunpack.c.l.s4 1934713408
    %v2391 = vunpack.c.0.s8 %v2390
    %v2392 = vlaneseq
    %v2393 = vshrl.u32 %v2392, 7
    %v2394 = vsub.s32 %v2391, %v2393
    %v2395 = vrot.slane %v2381, %v2394
    %v2396 = vcombine.low %v2372, %v2388
    %v2397 = vcombine.high %v2372, %v2388
    %v2398 = vcombine.low %v2379, %v2395
    %v2399 = vcombine.high %v2379, %v2395
    %v2400 = vcombine.low %v2304, %v2311
    %v2402 = vunpack.c.l.s4 1983009808
    %v2403 = vunpack.c.0.s8 %v2402
    %v2404 = vlaneseq
    %v2405 = vshrl.u32 %v2404, 7
    %v2406 = vsub.s32 %v2403, %v2405
    %v2407 = vrot.slane %v2400, %v2406
    %v2408 = vcombine.low %v2328, %v2329
    %v2410 = vunpack.c.l.s4 1983009808
    %v2411 = vunpack.c.0.s8 %v2410
    %v2412 = vlaneseq
    %v2413 = vshrl.u32 %v2412, 7
    %v2414 = vsub.s32 %v2411, %v2413
    %v2415 = vrot.slane %v2408, %v2414
    %v2416 = vcombine.low %v2320, %v2327
    %v2418 = vunpack.c.l.s4 1983009808
    %v2419 = vunpack.c.0.s8 %v2418
    %v2420 = vlaneseq
    %v2421 = vshrl.u32 %v2420, 7
    %v2422 = vsub.s32 %v2419, %v2421
    %v2423 = vrot.slane %v2416, %v2422
    %v2424 = vcombine.low %v2330, %v2331
    %v2426 = vunpack.c.l.s4 1983009808
    %v2427 = vunpack.c.0.s8 %v2426
    %v2428 = vlaneseq
    %v2429 = vshrl.u32 %v2428, 7
    %v2430 = vsub.s32 %v2427, %v2429
    %v2431 = vrot.slane %v2424, %v2430
    %v2432 = vcombine.low %v2407, %v2415
    %v2433 = vcombine.high %v2407, %v2415
    %v2435 = vunpack.c.l.s4 1934713408
    %v2436 = vunpack.c.0.s8 %v2435
    %v2437 = vlaneseq
    %v2438 = vshrl.u32 %v2437, 7
    %v2439 = vsub.s32 %v2436, %v2438
    %v2440 = vrot.slane %v2432, %v2439
    %v2442 = vunpack.c.l.s4 1934713408
    %v2443 = vunpack.c.0.s8 %v2442
    %v2444 = vlaneseq
    %v2445 = vshrl.u32 %v2444, 7
    %v2446 = vsub.s32 %v2443, %v2445
    %v2447 = vrot.slane %v2433, %v2446
    %v2448 = vcombine.low %v2423, %v2431
    %v2449 = vcombine.high %v2423, %v2431
    %v2451 = vunpack.c.l.s4 1934713408
    %v2452 = vunpack.c.0.s8 %v2451
    %v2453 = vlaneseq
    %v2454 = vshrl.u32 %v2453, 7
    %v2455 = vsub.s32 %v2452, %v2454
    %v2456 = vrot.slane %v2448, %v2455
    %v2458 = vunpack.c.l.s4 1934713408
    %v2459 = vunpack.c.0.s8 %v2458
    %v2460 = vlaneseq
    %v2461 = vshrl.u32 %v2460, 7
    %v2462 = vsub.s32 %v2459, %v2461
    %v2463 = vrot.slane %v2449, %v2462
    %v2464 = vcombine.low %v2440, %v2456
    %v2465 = vcombine.high %v2440, %v2456
    %v2466 = vcombine.low %v2447, %v2463
    %v2467 = vcombine.high %v2447, %v2463
    %2470 = vrot.lane.b32.xlu0 %v2397, 8
    %v2471 = vpop.permute.xlu0 %2470
    %2472 = vrot.lane.b32.xlu0 %v2465, 8
    %v2473 = vpop.permute.xlu0 %2472
    %2478 = vrot.lane.b32.xlu0 %v2398, 16
    %v2479 = vpop.permute.xlu0 %2478
    %2480 = vrot.lane.b32.xlu0 %v2466, 16
    %v2481 = vpop.permute.xlu0 %2480
    %2486 = vrot.lane.b32.xlu0 %v2399, 24
    %v2487 = vpop.permute.xlu0 %2486
    %2488 = vrot.lane.b32.xlu0 %v2467, 24
    %v2489 = vpop.permute.xlu0 %2488
    %v2492 = vsel %vm1362, %v2396, %v2471
    %v2493 = vsel %vm1362, %v2464, %v2473
    %vm2494 = vcmask 130048
    %v2495 = vsel %vm2494, %v2492, %v2479
    %v2496 = vsel %vm2494, %v2493, %v2481
    %vm2497 = vcmask 195584
    %v2498 = vsel %vm2497, %v2495, %v2487
    %v2499 = vsel %vm2497, %v2496, %v2489
    %v2500 = vpack.c.bf16 %v2499, %v2498
    %v2501 = vld [vmem:[#allocation8] sm:$0xf]
    %v2502 = vld [vmem:[#allocation8 + $0x4] sm:$0xf]
    %v2503 = vld [vmem:[#allocation8 + $0x8] sm:$0xf]
    %v2504 = vld [vmem:[#allocation8 + $0xc] sm:$0xf]
    %v2509 = vunpack.c.l.b16 %v2501
    %v2510 = vunpack.c.l.b16 %v2502
    %v2511 = vunpack.c.l.b16 %v2503
    %v2512 = vunpack.c.l.b16 %v2504
    %v2513 = vpack.c.b16 %v2510, %v2509
    %v2514 = vpack.c.b16 %v2512, %v2511
    %vm2517 = vcmask 261120
    %v2519 = vsel %vm2517, %v2500, 0
    %2521 = vmatprep.subr.bf16.mxu0 0
    %2522 = vmatpush1.bf16.msra.mxu0 %v2513
    %2523 = vmatprep.subr.bf16.mxu0 0
    %2524 = vmatpush1.bf16.msra.mxu0 %v2514
    %2525 = vmatprep.subr.bf16.mxu0 0
    %2526 = vmatpush1.bf16.msra.mxu0 0
    %2527 = vmatprep.subr.bf16.mxu0 0
    %2528 = vmatpush1.bf16.msra.mxu0 0
    %2529 = vmatprep.subr.bf16.mxu0 0
    %2530 = vmatpush1.bf16.msra.mxu0 0
    %2531 = vmatprep.subr.bf16.mxu0 0
    %2532 = vmatpush1.bf16.msra.mxu0 0
    %2533 = vmatprep.subr.bf16.mxu0 0
    %2534 = vmatpush1.bf16.msra.mxu0 0
    %2535 = vmatprep.subr.bf16.mxu0 0
    %2536 = vmatpush1.bf16.msra.mxu0 0
    %2537 = vmatprep.subr.bf16.mxu0 0
    %2538 = vmatpush1.bf16.msra.mxu0 0
    %2539 = vmatprep.subr.bf16.mxu0 0
    %2540 = vmatpush1.bf16.msra.mxu0 0
    %2541 = vmatprep.subr.bf16.mxu0 0
    %2542 = vmatpush1.bf16.msra.mxu0 0
    %2543 = vmatprep.subr.bf16.mxu0 0
    %2544 = vmatpush1.bf16.msra.mxu0 0
    %2545 = vmatprep.subr.bf16.mxu0 0
    %2546 = vmatpush1.bf16.msra.mxu0 0
    %2547 = vmatprep.subr.bf16.mxu0 0
    %2548 = vmatpush1.bf16.msra.mxu0 0
    %2549 = vmatprep.subr.bf16.mxu0 0
    %2550 = vmatpush1.bf16.msra.mxu0 0
    %2551 = vmatprep.subr.bf16.mxu0 0
    %2552 = vmatpush1.bf16.msra.mxu0 0
    %2553 = vmatprep.mubr.bf16.mxu0 0
    %2554 = vmatmul.mubr.bf16.gmra.mrb[0].mxu0 %v2519
    %v2555 = vpop.f32.mrb[0].mxu0
    %v2556 = vadd.f32 0.0, %v2555
    %v2557 = vpop.f32.mrb[0].mxu0
    %v2558 = vpop.f32.mrb[0].mxu0
    %v2559 = vadd.f32 0.0, %v2558
    %v2560 = vpop.f32.mrb[0].mxu0
    %2561 = vdwg.mxu0
    %v2562 = vadd.f32 %v173, %v2556
    %v2563 = vadd.f32 %v174, %v2559
    %v2564 = vld [vmem:[%s7] sm:$0x1]
    %v2565 = vld [vmem:[%s8] sm:$0x1]
    %2566 = vadd.xlane.f32.xlu0 %v2562
    %v2567 = vpop.xlane.xlu0 %2566
    %2568 = vadd.xlane.f32.xlu0 %v2563
    %v2569 = vpop.xlane.xlu0 %2568
    %v2570 = vmul.f32 %v2567, 0.03125
    %v2571 = vmul.f32 %v2569, 0.03125
    %v2572 = vsub.f32 %v2562, %v2570
    %v2573 = vsub.f32 %v2563, %v2571
    %v2574 = vsel %vm142, %v2572, 0.0
    %v2575 = vsel %vm142, %v2573, 0.0
    %v2576 = vmul.f32 %v2574, %v2574
    %v2577 = vmul.f32 %v2575, %v2575
    %2578 = vadd.xlane.f32.xlu0 %v2576
    %v2579 = vpop.xlane.xlu0 %2578
    %2580 = vadd.xlane.f32.xlu0 %v2577
    %v2581 = vpop.xlane.xlu0 %2580
    %v2582 = vmul.f32 %v2579, 0.03125
    %v2583 = vmul.f32 %v2581, 0.03125
    %v2584 = vadd.f32 %v2582, 1e-05
    %v2585 = vadd.f32 %v2583, 1e-05
    %v2586 = vrsqrt.pop %v2584
    %v2587 = vrsqrt.pop %v2585
    %v2588 = vmul.f32 %v2574, %v2586
    %v2589 = vmul.f32 %v2575, %v2587
    %v2591 = vlaneseq
    %v2592 = vshrl.u32 %v2591, 7
    %v2593 = vsub.s32 0, %v2592
    %v2594 = vrot.slane %v2564, %v2593
    %v2596 = vmul.f32 %v2588, %v2594
    %v2597 = vmul.f32 %v2589, %v2594
    %v2599 = vlaneseq
    %v2600 = vshrl.u32 %v2599, 7
    %v2601 = vsub.s32 0, %v2600
    %v2602 = vrot.slane %v2565, %v2601
    %v2604 = vadd.f32 %v2596, %v2602
    %v2605 = vadd.f32 %v2597, %v2602
    %v2606 = vpack.c.bf16 %v2605, %v2604
    %v2607 = vld [vmem:[#allocation10] sm:$0xf]
    %v2608 = vld [vmem:[#allocation10 + $0x4] sm:$0xf]
    %v2609 = vld [vmem:[#allocation10 + $0x8] sm:$0xf]
    %v2610 = vld [vmem:[#allocation10 + $0xc] sm:$0xf]
    %v2611 = vld [vmem:[#allocation10 + $0x10] sm:$0xf]
    %v2612 = vld [vmem:[#allocation10 + $0x14] sm:$0xf]
    %v2613 = vld [vmem:[#allocation10 + $0x18] sm:$0xf]
    %v2614 = vld [vmem:[#allocation10 + $0x1c] sm:$0xf]
    %v2615 = vld [vmem:[#allocation10 + $0x20] sm:$0xf]
    %v2616 = vld [vmem:[#allocation10 + $0x24] sm:$0xf]
    %v2617 = vld [vmem:[#allocation10 + $0x28] sm:$0xf]
    %v2618 = vld [vmem:[#allocation10 + $0x2c] sm:$0xf]
    %v2619 = vld [vmem:[#allocation10 + $0x30] sm:$0xf]
    %v2620 = vld [vmem:[#allocation10 + $0x34] sm:$0xf]
    %v2621 = vld [vmem:[#allocation10 + $0x38] sm:$0xf]
    %v2622 = vld [vmem:[#allocation10 + $0x3c] sm:$0xf]
    %v2623 = vld [vmem:[%s10] sm:$0x1]
    %v2625 = vlaneseq
    %v2626 = vshrl.u32 %v2625, 7
    %v2627 = vsub.s32 0, %v2626
    %v2628 = vrot.slane %v2623, %v2627
    %v2646 = vunpack.c.l.b16 %v2607
    %v2647 = vunpack.c.l.b16 %v2608
    %v2648 = vunpack.c.l.b16 %v2609
    %v2649 = vunpack.c.l.b16 %v2610
    %v2650 = vunpack.c.l.b16 %v2611
    %v2651 = vunpack.c.l.b16 %v2612
    %v2652 = vunpack.c.l.b16 %v2613
    %v2653 = vunpack.c.l.b16 %v2614
    %v2654 = vunpack.c.l.b16 %v2615
    %v2655 = vunpack.c.l.b16 %v2616
    %v2656 = vunpack.c.l.b16 %v2617
    %v2657 = vunpack.c.l.b16 %v2618
    %v2658 = vunpack.c.l.b16 %v2619
    %v2659 = vunpack.c.l.b16 %v2620
    %v2660 = vunpack.c.l.b16 %v2621
    %v2661 = vunpack.c.l.b16 %v2622
    %v2662 = vpack.c.b16 %v2647, %v2646
    %v2663 = vpack.c.b16 %v2649, %v2648
    %v2664 = vpack.c.b16 %v2651, %v2650
    %v2665 = vpack.c.b16 %v2653, %v2652
    %v2666 = vpack.c.b16 %v2655, %v2654
    %v2667 = vpack.c.b16 %v2657, %v2656
    %v2668 = vpack.c.b16 %v2659, %v2658
    %v2669 = vpack.c.b16 %v2661, %v2660
    %2678 = vmatprep.subr.bf16.mxu0 0
    %2679 = vmatpush1.bf16.msra.mxu0 %v2662
    %2680 = vmatprep.subr.bf16.mxu0 0
    %2681 = vmatpush1.bf16.msra.mxu0 %v2663
    %2682 = vmatprep.subr.bf16.mxu0 0
    %2683 = vmatpush1.bf16.msra.mxu0 %v2664
    %2684 = vmatprep.subr.bf16.mxu0 0
    %2685 = vmatpush1.bf16.msra.mxu0 %v2665
    %2686 = vmatprep.subr.bf16.mxu0 0
    %2687 = vmatpush1.bf16.msra.mxu0 %v2666
    %2688 = vmatprep.subr.bf16.mxu0 0
    %2689 = vmatpush1.bf16.msra.mxu0 %v2667
    %2690 = vmatprep.subr.bf16.mxu0 0
    %2691 = vmatpush1.bf16.msra.mxu0 %v2668
    %2692 = vmatprep.subr.bf16.mxu0 0
    %2693 = vmatpush1.bf16.msra.mxu0 %v2669
    %2694 = vmatprep.subr.bf16.mxu0 0
    %2695 = vmatpush1.bf16.msra.mxu0 0
    %2696 = vmatprep.subr.bf16.mxu0 0
    %2697 = vmatpush1.bf16.msra.mxu0 0
    %2698 = vmatprep.subr.bf16.mxu0 0
    %2699 = vmatpush1.bf16.msra.mxu0 0
    %2700 = vmatprep.subr.bf16.mxu0 0
    %2701 = vmatpush1.bf16.msra.mxu0 0
    %2702 = vmatprep.subr.bf16.mxu0 0
    %2703 = vmatpush1.bf16.msra.mxu0 0
    %2704 = vmatprep.subr.bf16.mxu0 0
    %2705 = vmatpush1.bf16.msra.mxu0 0
    %2706 = vmatprep.subr.bf16.mxu0 0
    %2707 = vmatpush1.bf16.msra.mxu0 0
    %2708 = vmatprep.subr.bf16.mxu0 0
    %2709 = vmatpush1.bf16.msra.mxu0 0
    %2710 = vmatprep.mubr.bf16.mxu0 0
    %2711 = vmatmul.mubr.bf16.gmra.mrb[0].mxu0 %v2606
    %v2712 = vpop.f32.mrb[0].mxu0
    %v2713 = vadd.f32 %v2628, %v2712
    %v2714 = vpop.f32.mrb[0].mxu0
    %v2715 = vpop.f32.mrb[0].mxu0
    %v2716 = vadd.f32 %v2628, %v2715
    %v2717 = vpop.f32.mrb[0].mxu0
    %2718 = vdwg.mxu0
    %v2719 = vmax.f32 %v2713, 0.0
    %v2720 = vmax.f32 %v2716, 0.0
    %v2721 = vpack.c.bf16 %v2720, %v2719
    %v2722 = vld [vmem:[#allocation11] sm:$0xf]
    %v2723 = vld [vmem:[#allocation11 + $0x4] sm:$0xf]
    %v2724 = vld [vmem:[#allocation11 + $0x8] sm:$0xf]
    %v2725 = vld [vmem:[#allocation11 + $0xc] sm:$0xf]
    %v2726 = vld [vmem:[#allocation11 + $0x10] sm:$0xf]
    %v2727 = vld [vmem:[#allocation11 + $0x14] sm:$0xf]
    %v2728 = vld [vmem:[#allocation11 + $0x18] sm:$0xf]
    %v2729 = vld [vmem:[#allocation11 + $0x1c] sm:$0xf]
    %v2730 = vld [vmem:[#allocation11 + $0x20] sm:$0xf]
    %v2731 = vld [vmem:[#allocation11 + $0x24] sm:$0xf]
    %v2732 = vld [vmem:[#allocation11 + $0x28] sm:$0xf]
    %v2733 = vld [vmem:[#allocation11 + $0x2c] sm:$0xf]
    %v2734 = vld [vmem:[#allocation11 + $0x30] sm:$0xf]
    %v2735 = vld [vmem:[#allocation11 + $0x34] sm:$0xf]
    %v2736 = vld [vmem:[#allocation11 + $0x38] sm:$0xf]
    %v2737 = vld [vmem:[#allocation11 + $0x3c] sm:$0xf]
    %v2738 = vld [vmem:[%s12] sm:$0x1]
    %v2740 = vlaneseq
    %v2741 = vshrl.u32 %v2740, 7
    %v2742 = vsub.s32 0, %v2741
    %v2743 = vrot.slane %v2738, %v2742
    %v2761 = vunpack.c.l.b16 %v2722
    %v2762 = vunpack.c.l.b16 %v2723
    %v2763 = vunpack.c.l.b16 %v2724
    %v2764 = vunpack.c.l.b16 %v2725
    %v2765 = vunpack.c.l.b16 %v2726
    %v2766 = vunpack.c.l.b16 %v2727
    %v2767 = vunpack.c.l.b16 %v2728
    %v2768 = vunpack.c.l.b16 %v2729
    %v2769 = vunpack.c.l.b16 %v2730
    %v2770 = vunpack.c.l.b16 %v2731
    %v2771 = vunpack.c.l.b16 %v2732
    %v2772 = vunpack.c.l.b16 %v2733
    %v2773 = vunpack.c.l.b16 %v2734
    %v2774 = vunpack.c.l.b16 %v2735
    %v2775 = vunpack.c.l.b16 %v2736
    %v2776 = vunpack.c.l.b16 %v2737
    %v2777 = vpack.c.b16 %v2762, %v2761
    %v2778 = vpack.c.b16 %v2764, %v2763
    %v2779 = vpack.c.b16 %v2766, %v2765
    %v2780 = vpack.c.b16 %v2768, %v2767
    %v2781 = vpack.c.b16 %v2770, %v2769
    %v2782 = vpack.c.b16 %v2772, %v2771
    %v2783 = vpack.c.b16 %v2774, %v2773
    %v2784 = vpack.c.b16 %v2776, %v2775
    %2793 = vmatprep.subr.bf16.mxu0 0
    %2794 = vmatpush1.bf16.msra.mxu0 %v2777
    %2795 = vmatprep.subr.bf16.mxu0 0
    %2796 = vmatpush1.bf16.msra.mxu0 %v2778
    %2797 = vmatprep.subr.bf16.mxu0 0
    %2798 = vmatpush1.bf16.msra.mxu0 %v2779
    %2799 = vmatprep.subr.bf16.mxu0 0
    %2800 = vmatpush1.bf16.msra.mxu0 %v2780
    %2801 = vmatprep.subr.bf16.mxu0 0
    %2802 = vmatpush1.bf16.msra.mxu0 %v2781
    %2803 = vmatprep.subr.bf16.mxu0 0
    %2804 = vmatpush1.bf16.msra.mxu0 %v2782
    %2805 = vmatprep.subr.bf16.mxu0 0
    %2806 = vmatpush1.bf16.msra.mxu0 %v2783
    %2807 = vmatprep.subr.bf16.mxu0 0
    %2808 = vmatpush1.bf16.msra.mxu0 %v2784
    %2809 = vmatprep.subr.bf16.mxu0 0
    %2810 = vmatpush1.bf16.msra.mxu0 0
    %2811 = vmatprep.subr.bf16.mxu0 0
    %2812 = vmatpush1.bf16.msra.mxu0 0
    %2813 = vmatprep.subr.bf16.mxu0 0
    %2814 = vmatpush1.bf16.msra.mxu0 0
    %2815 = vmatprep.subr.bf16.mxu0 0
    %2816 = vmatpush1.bf16.msra.mxu0 0
    %2817 = vmatprep.subr.bf16.mxu0 0
    %2818 = vmatpush1.bf16.msra.mxu0 0
    %2819 = vmatprep.subr.bf16.mxu0 0
    %2820 = vmatpush1.bf16.msra.mxu0 0
    %2821 = vmatprep.subr.bf16.mxu0 0
    %2822 = vmatpush1.bf16.msra.mxu0 0
    %2823 = vmatprep.subr.bf16.mxu0 0
    %2824 = vmatpush1.bf16.msra.mxu0 0
    %2825 = vmatprep.mubr.bf16.mxu0 0
    %2826 = vmatmul.mubr.bf16.gmra.mrb[0].mxu0 %v2721
    %v2827 = vpop.f32.mrb[0].mxu0
    %v2828 = vadd.f32 %v2743, %v2827
    %v2829 = vpop.f32.mrb[0].mxu0
    %v2830 = vpop.f32.mrb[0].mxu0
    %v2831 = vadd.f32 %v2743, %v2830
    %v2832 = vpop.f32.mrb[0].mxu0
    %2833 = vdwg.mxu0
    %v2834 = vadd.f32 %v2562, %v2828
    %v2835 = vadd.f32 %v2563, %v2831
    %s2836 = scalar_lea.vmem %s3, 1
    %v2837 = vld [vmem:[%s2836] sm:$0x1]
    %s2838 = scalar_lea.vmem %s4, 1
    %v2839 = vld [vmem:[%s2838] sm:$0x1]
    %2840 = vadd.xlane.f32.xlu0 %v2834
    %v2841 = vpop.xlane.xlu0 %2840
    %2842 = vadd.xlane.f32.xlu0 %v2835
    %v2843 = vpop.xlane.xlu0 %2842
    %v2844 = vmul.f32 %v2841, 0.03125
    %v2845 = vmul.f32 %v2843, 0.03125
    %v2846 = vsub.f32 %v2834, %v2844
    %v2847 = vsub.f32 %v2835, %v2845
    %v2848 = vsel %vm142, %v2846, 0.0
    %v2849 = vsel %vm142, %v2847, 0.0
    %v2850 = vmul.f32 %v2848, %v2848
    %v2851 = vmul.f32 %v2849, %v2849
    %2852 = vadd.xlane.f32.xlu0 %v2850
    %v2853 = vpop.xlane.xlu0 %2852
    %2854 = vadd.xlane.f32.xlu0 %v2851
    %v2855 = vpop.xlane.xlu0 %2854
    %v2856 = vmul.f32 %v2853, 0.03125
    %v2857 = vmul.f32 %v2855, 0.03125
    %v2858 = vadd.f32 %v2856, 1e-05
    %v2859 = vadd.f32 %v2857, 1e-05
    %v2860 = vrsqrt.pop %v2858
    %v2861 = vrsqrt.pop %v2859
    %v2862 = vmul.f32 %v2848, %v2860
    %v2863 = vmul.f32 %v2849, %v2861
    %v2865 = vlaneseq
    %v2866 = vshrl.u32 %v2865, 7
    %v2867 = vsub.s32 0, %v2866
    %v2868 = vrot.slane %v2837, %v2867
    %v2870 = vmul.f32 %v2862, %v2868
    %v2871 = vmul.f32 %v2863, %v2868
    %v2873 = vlaneseq
    %v2874 = vshrl.u32 %v2873, 7
    %v2875 = vsub.s32 0, %v2874
    %v2876 = vrot.slane %v2839, %v2875
    %v2878 = vadd.f32 %v2870, %v2876
    %v2879 = vadd.f32 %v2871, %v2876
    %v2880 = vpack.c.bf16 %v2879, %v2878
    %s2881 = scalar_lea.vmem [#allocation7], 192
    %v2882 = vld [vmem:[%s2881] sm:$0xff]
    %v2883 = vld [vmem:[%s2881 + $0x8] sm:$0xf]
    %v2884 = vld [vmem:[%s2881 + $0xc] sm:$0xff]
    %v2885 = vld [vmem:[%s2881 + $0x14] sm:$0xf]
    %v2886 = vld [vmem:[%s2881 + $0x18] sm:$0xff]
    %v2887 = vld [vmem:[%s2881 + $0x20] sm:$0xf]
    %v2888 = vld [vmem:[%s2881 + $0x24] sm:$0xff]
    %v2889 = vld [vmem:[%s2881 + $0x2c] sm:$0xf]
    %v2890 = vld [vmem:[%s2881 + $0x30] sm:$0xff]
    %v2891 = vld [vmem:[%s2881 + $0x38] sm:$0xf]
    %v2892 = vld [vmem:[%s2881 + $0x3c] sm:$0xff]
    %v2893 = vld [vmem:[%s2881 + $0x44] sm:$0xf]
    %v2894 = vld [vmem:[%s2881 + $0x48] sm:$0xff]
    %v2895 = vld [vmem:[%s2881 + $0x50] sm:$0xf]
    %v2896 = vld [vmem:[%s2881 + $0x54] sm:$0xff]
    %v2897 = vld [vmem:[%s2881 + $0x5c] sm:$0xf]
    %v2898 = vld [vmem:[%s2881 + $0x60] sm:$0xff]
    %v2899 = vld [vmem:[%s2881 + $0x68] sm:$0xf]
    %v2900 = vld [vmem:[%s2881 + $0x6c] sm:$0xff]
    %v2901 = vld [vmem:[%s2881 + $0x74] sm:$0xf]
    %v2902 = vld [vmem:[%s2881 + $0x78] sm:$0xff]
    %v2903 = vld [vmem:[%s2881 + $0x80] sm:$0xf]
    %v2904 = vld [vmem:[%s2881 + $0x84] sm:$0xff]
    %v2905 = vld [vmem:[%s2881 + $0x8c] sm:$0xf]
    %v2906 = vld [vmem:[%s2881 + $0x90] sm:$0xff]
    %v2907 = vld [vmem:[%s2881 + $0x98] sm:$0xf]
    %v2908 = vld [vmem:[%s2881 + $0x9c] sm:$0xff]
    %v2909 = vld [vmem:[%s2881 + $0xa4] sm:$0xf]
    %v2910 = vld [vmem:[%s2881 + $0xa8] sm:$0xff]
    %v2911 = vld [vmem:[%s2881 + $0xb0] sm:$0xf]
    %v2912 = vld [vmem:[%s2881 + $0xb4] sm:$0xff]
    %v2913 = vld [vmem:[%s2881 + $0xbc] sm:$0xf]
    %v2946 = vunpack.c.l.b16 %v2882
    %v2947 = vunpack.c.h.b16 %v2882
    %v2948 = vunpack.c.l.b16 %v2883
    %v2949 = vunpack.c.l.b16 %v2884
    %v2950 = vunpack.c.h.b16 %v2884
    %v2951 = vunpack.c.l.b16 %v2885
    %v2952 = vunpack.c.l.b16 %v2886
    %v2953 = vunpack.c.h.b16 %v2886
    %v2954 = vunpack.c.l.b16 %v2887
    %v2955 = vunpack.c.l.b16 %v2888
    %v2956 = vunpack.c.h.b16 %v2888
    %v2957 = vunpack.c.l.b16 %v2889
    %v2958 = vunpack.c.l.b16 %v2890
    %v2959 = vunpack.c.h.b16 %v2890
    %v2960 = vunpack.c.l.b16 %v2891
    %v2961 = vunpack.c.l.b16 %v2892
    %v2962 = vunpack.c.h.b16 %v2892
    %v2963 = vunpack.c.l.b16 %v2893
    %v2964 = vunpack.c.l.b16 %v2894
    %v2965 = vunpack.c.h.b16 %v2894
    %v2966 = vunpack.c.l.b16 %v2895
    %v2967 = vunpack.c.l.b16 %v2896
    %v2968 = vunpack.c.h.b16 %v2896
    %v2969 = vunpack.c.l.b16 %v2897
    %v2970 = vunpack.c.l.b16 %v2898
    %v2971 = vunpack.c.h.b16 %v2898
    %v2972 = vunpack.c.l.b16 %v2899
    %v2973 = vunpack.c.l.b16 %v2900
    %v2974 = vunpack.c.h.b16 %v2900
    %v2975 = vunpack.c.l.b16 %v2901
    %v2976 = vunpack.c.l.b16 %v2902
    %v2977 = vunpack.c.h.b16 %v2902
    %v2978 = vunpack.c.l.b16 %v2903
    %v2979 = vunpack.c.l.b16 %v2904
    %v2980 = vunpack.c.h.b16 %v2904
    %v2981 = vunpack.c.l.b16 %v2905
    %v2982 = vunpack.c.l.b16 %v2906
    %v2983 = vunpack.c.h.b16 %v2906
    %v2984 = vunpack.c.l.b16 %v2907
    %v2985 = vunpack.c.l.b16 %v2908
    %v2986 = vunpack.c.h.b16 %v2908
    %v2987 = vunpack.c.l.b16 %v2909
    %v2988 = vunpack.c.l.b16 %v2910
    %v2989 = vunpack.c.h.b16 %v2910
    %v2990 = vunpack.c.l.b16 %v2911
    %v2991 = vunpack.c.l.b16 %v2912
    %v2992 = vunpack.c.h.b16 %v2912
    %v2993 = vunpack.c.l.b16 %v2913
    %v2994 = vpack.c.b16 %v2949, %v2946
    %v2995 = vpack.c.b16 %v2950, %v2947
    %v2996 = vpack.c.b16 %v2951, %v2948
    %v2997 = vpack.c.b16 %v2955, %v2952
    %v2998 = vpack.c.b16 %v2956, %v2953
    %v2999 = vpack.c.b16 %v2957, %v2954
    %v3000 = vpack.c.b16 %v2961, %v2958
    %v3001 = vpack.c.b16 %v2962, %v2959
    %v3002 = vpack.c.b16 %v2963, %v2960
    %v3003 = vpack.c.b16 %v2967, %v2964
    %v3004 = vpack.c.b16 %v2968, %v2965
    %v3005 = vpack.c.b16 %v2969, %v2966
    %v3006 = vpack.c.b16 %v2973, %v2970
    %v3007 = vpack.c.b16 %v2974, %v2971
    %v3008 = vpack.c.b16 %v2975, %v2972
    %v3009 = vpack.c.b16 %v2979, %v2976
    %v3010 = vpack.c.b16 %v2980, %v2977
    %v3011 = vpack.c.b16 %v2981, %v2978
    %v3012 = vpack.c.b16 %v2985, %v2982
    %v3013 = vpack.c.b16 %v2986, %v2983
    %v3014 = vpack.c.b16 %v2987, %v2984
    %v3015 = vpack.c.b16 %v2991, %v2988
    %v3016 = vpack.c.b16 %v2992, %v2989
    %v3017 = vpack.c.b16 %v2993, %v2990
    %3042 = vmatprep.subr.bf16.mxu0 %v2995
    %3043 = vmatpush1.bf16.msra.mxu0 %v2994
    %3044 = vmatprep.subr.bf16.mxu0 %v2998
    %3045 = vmatpush1.bf16.msra.mxu0 %v2997
    %3046 = vmatprep.subr.bf16.mxu0 %v3001
    %3047 = vmatpush1.bf16.msra.mxu0 %v3000
    %3048 = vmatprep.subr.bf16.mxu0 %v3004
    %3049 = vmatpush1.bf16.msra.mxu0 %v3003
    %3050 = vmatprep.subr.bf16.mxu0 %v3007
    %3051 = vmatpush1.bf16.msra.mxu0 %v3006
    %3052 = vmatprep.subr.bf16.mxu0 %v3010
    %3053 = vmatpush1.bf16.msra.mxu0 %v3009
    %3054 = vmatprep.subr.bf16.mxu0 %v3013
    %3055 = vmatpush1.bf16.msra.mxu0 %v3012
    %3056 = vmatprep.subr.bf16.mxu0 %v3016
    %3057 = vmatpush1.bf16.msra.mxu0 %v3015
    %3058 = vmatprep.subr.bf16.mxu0 0
    %3059 = vmatpush1.bf16.msra.mxu0 0
    %3060 = vmatprep.subr.bf16.mxu0 0
    %3061 = vmatpush1.bf16.msra.mxu0 0
    %3062 = vmatprep.subr.bf16.mxu0 0
    %3063 = vmatpush1.bf16.msra.mxu0 0
    %3064 = vmatprep.subr.bf16.mxu0 0
    %3065 = vmatpush1.bf16.msra.mxu0 0
    %3066 = vmatprep.subr.bf16.mxu0 0
    %3067 = vmatpush1.bf16.msra.mxu0 0
    %3068 = vmatprep.subr.bf16.mxu0 0
    %3069 = vmatpush1.bf16.msra.mxu0 0
    %3070 = vmatprep.subr.bf16.mxu0 0
    %3071 = vmatpush1.bf16.msra.mxu0 0
    %3072 = vmatprep.subr.bf16.mxu0 0
    %3073 = vmatpush1.bf16.msra.mxu0 0
    %3074 = vmatprep.mubr.bf16.mxu0 0
    %3075 = vmatmul.mubr.bf16.gmra.mrb[0].mxu0 %v2880
    %v3076 = vpop.f32.mrb[0].mxu0
    %v3077 = vadd.f32 0.0, %v3076
    %v3078 = vpop.f32.mrb[0].mxu0
    %v3079 = vadd.f32 0.0, %v3078
    %v3080 = vpop.f32.mrb[0].mxu0
    %v3081 = vadd.f32 0.0, %v3080
    %v3082 = vpop.f32.mrb[0].mxu0
    %v3083 = vadd.f32 0.0, %v3082
    %3084 = vdwg.mxu0
    %3085 = vmatprep.subr.bf16.mxu0 0
    %3086 = vmatpush1.bf16.msra.mxu0 %v2996
    %3087 = vmatprep.subr.bf16.mxu0 0
    %3088 = vmatpush1.bf16.msra.mxu0 %v2999
    %3089 = vmatprep.subr.bf16.mxu0 0
    %3090 = vmatpush1.bf16.msra.mxu0 %v3002
    %3091 = vmatprep.subr.bf16.mxu0 0
    %3092 = vmatpush1.bf16.msra.mxu0 %v3005
    %3093 = vmatprep.subr.bf16.mxu0 0
    %3094 = vmatpush1.bf16.msra.mxu0 %v3008
    %3095 = vmatprep.subr.bf16.mxu0 0
    %3096 = vmatpush1.bf16.msra.mxu0 %v3011
    %3097 = vmatprep.subr.bf16.mxu0 0
    %3098 = vmatpush1.bf16.msra.mxu0 %v3014
    %3099 = vmatprep.subr.bf16.mxu0 0
    %3100 = vmatpush1.bf16.msra.mxu0 %v3017
    %3101 = vmatprep.subr.bf16.mxu0 0
    %3102 = vmatpush1.bf16.msra.mxu0 0
    %3103 = vmatprep.subr.bf16.mxu0 0
    %3104 = vmatpush1.bf16.msra.mxu0 0
    %3105 = vmatprep.subr.bf16.mxu0 0
    %3106 = vmatpush1.bf16.msra.mxu0 0
    %3107 = vmatprep.subr.bf16.mxu0 0
    %3108 = vmatpush1.bf16.msra.mxu0 0
    %3109 = vmatprep.subr.bf16.mxu0 0
    %3110 = vmatpush1.bf16.msra.mxu0 0
    %3111 = vmatprep.subr.bf16.mxu0 0
    %3112 = vmatpush1.bf16.msra.mxu0 0
    %3113 = vmatprep.subr.bf16.mxu0 0
    %3114 = vmatpush1.bf16.msra.mxu0 0
    %3115 = vmatprep.subr.bf16.mxu0 0
    %3116 = vmatpush1.bf16.msra.mxu0 0
    %3117 = vmatprep.mubr.bf16.mxu0 0
    %3118 = vmatmul.mubr.bf16.gmra.mrb[0].mxu0 %v2880
    %v3119 = vpop.f32.mrb[0].mxu0
    %v3120 = vadd.f32 0.0, %v3119
    %v3121 = vpop.f32.mrb[0].mxu0
    %v3122 = vpop.f32.mrb[0].mxu0
    %v3123 = vadd.f32 0.0, %v3122
    %v3124 = vpop.f32.mrb[0].mxu0
    %3125 = vdwg.mxu0
    %3128 = vrot.lane.b32.xlu0 %v3077, 120
    %v3129 = vpop.permute.xlu0 %3128
    %3130 = vrot.lane.b32.xlu0 %v3081, 120
    %v3131 = vpop.permute.xlu0 %3130
    %3134 = vrot.lane.b32.xlu0 %v3077, 112
    %v3135 = vpop.permute.xlu0 %3134
    %3136 = vrot.lane.b32.xlu0 %v3081, 112
    %v3137 = vpop.permute.xlu0 %3136
    %3140 = vrot.lane.b32.xlu0 %v3077, 104
    %v3141 = vpop.permute.xlu0 %3140
    %3142 = vrot.lane.b32.xlu0 %v3081, 104
    %v3143 = vpop.permute.xlu0 %3142
    %v3146 = vcombine.low %v3077, %v3135
    %v3147 = vcombine.high %v3077, %v3135
    %v3149 = vunpack.c.l.s4 1983009808
    %v3150 = vunpack.c.0.s8 %v3149
    %v3151 = vlaneseq
    %v3152 = vshrl.u32 %v3151, 7
    %v3153 = vsub.s32 %v3150, %v3152
    %v3154 = vrot.slane %v3146, %v3153
    %v3156 = vunpack.c.l.s4 1983009808
    %v3157 = vunpack.c.0.s8 %v3156
    %v3158 = vlaneseq
    %v3159 = vshrl.u32 %v3158, 7
    %v3160 = vsub.s32 %v3157, %v3159
    %v3161 = vrot.slane %v3147, %v3160
    %v3162 = vcombine.low %v3129, %v3141
    %v3163 = vcombine.high %v3129, %v3141
    %v3165 = vunpack.c.l.s4 1983009808
    %v3166 = vunpack.c.0.s8 %v3165
    %v3167 = vlaneseq
    %v3168 = vshrl.u32 %v3167, 7
    %v3169 = vsub.s32 %v3166, %v3168
    %v3170 = vrot.slane %v3162, %v3169
    %v3172 = vunpack.c.l.s4 1983009808
    %v3173 = vunpack.c.0.s8 %v3172
    %v3174 = vlaneseq
    %v3175 = vshrl.u32 %v3174, 7
    %v3176 = vsub.s32 %v3173, %v3175
    %v3177 = vrot.slane %v3163, %v3176
    %v3178 = vcombine.low %v3154, %v3170
    %v3179 = vcombine.high %v3154, %v3170
    %v3181 = vunpack.c.l.s4 1934713408
    %v3182 = vunpack.c.0.s8 %v3181
    %v3183 = vlaneseq
    %v3184 = vshrl.u32 %v3183, 7
    %v3185 = vsub.s32 %v3182, %v3184
    %v3186 = vrot.slane %v3178, %v3185
    %v3188 = vunpack.c.l.s4 1934713408
    %v3189 = vunpack.c.0.s8 %v3188
    %v3190 = vlaneseq
    %v3191 = vshrl.u32 %v3190, 7
    %v3192 = vsub.s32 %v3189, %v3191
    %v3193 = vrot.slane %v3179, %v3192
    %v3194 = vcombine.low %v3161, %v3177
    %v3195 = vcombine.high %v3161, %v3177
    %v3197 = vunpack.c.l.s4 1934713408
    %v3198 = vunpack.c.0.s8 %v3197
    %v3199 = vlaneseq
    %v3200 = vshrl.u32 %v3199, 7
    %v3201 = vsub.s32 %v3198, %v3200
    %v3202 = vrot.slane %v3194, %v3201
    %v3204 = vunpack.c.l.s4 1934713408
    %v3205 = vunpack.c.0.s8 %v3204
    %v3206 = vlaneseq
    %v3207 = vshrl.u32 %v3206, 7
    %v3208 = vsub.s32 %v3205, %v3207
    %v3209 = vrot.slane %v3195, %v3208
    %v3210 = vcombine.high %v3186, 0.0
    %v3211 = vcombine.high %v3193, 0.0
    %v3212 = vcombine.high %v3202, 0.0
    %v3213 = vcombine.high %v3209, 0.0
    %v3214 = vcombine.low %v3081, %v3137
    %v3215 = vcombine.high %v3081, %v3137
    %v3217 = vunpack.c.l.s4 1983009808
    %v3218 = vunpack.c.0.s8 %v3217
    %v3219 = vlaneseq
    %v3220 = vshrl.u32 %v3219, 7
    %v3221 = vsub.s32 %v3218, %v3220
    %v3222 = vrot.slane %v3214, %v3221
    %v3224 = vunpack.c.l.s4 1983009808
    %v3225 = vunpack.c.0.s8 %v3224
    %v3226 = vlaneseq
    %v3227 = vshrl.u32 %v3226, 7
    %v3228 = vsub.s32 %v3225, %v3227
    %v3229 = vrot.slane %v3215, %v3228
    %v3230 = vcombine.low %v3131, %v3143
    %v3231 = vcombine.high %v3131, %v3143
    %v3233 = vunpack.c.l.s4 1983009808
    %v3234 = vunpack.c.0.s8 %v3233
    %v3235 = vlaneseq
    %v3236 = vshrl.u32 %v3235, 7
    %v3237 = vsub.s32 %v3234, %v3236
    %v3238 = vrot.slane %v3230, %v3237
    %v3240 = vunpack.c.l.s4 1983009808
    %v3241 = vunpack.c.0.s8 %v3240
    %v3242 = vlaneseq
    %v3243 = vshrl.u32 %v3242, 7
    %v3244 = vsub.s32 %v3241, %v3243
    %v3245 = vrot.slane %v3231, %v3244
    %v3246 = vcombine.low %v3222, %v3238
    %v3247 = vcombine.high %v3222, %v3238
    %v3249 = vunpack.c.l.s4 1934713408
    %v3250 = vunpack.c.0.s8 %v3249
    %v3251 = vlaneseq
    %v3252 = vshrl.u32 %v3251, 7
    %v3253 = vsub.s32 %v3250, %v3252
    %v3254 = vrot.slane %v3246, %v3253
    %v3256 = vunpack.c.l.s4 1934713408
    %v3257 = vunpack.c.0.s8 %v3256
    %v3258 = vlaneseq
    %v3259 = vshrl.u32 %v3258, 7
    %v3260 = vsub.s32 %v3257, %v3259
    %v3261 = vrot.slane %v3247, %v3260
    %v3262 = vcombine.low %v3229, %v3245
    %v3263 = vcombine.high %v3229, %v3245
    %v3265 = vunpack.c.l.s4 1934713408
    %v3266 = vunpack.c.0.s8 %v3265
    %v3267 = vlaneseq
    %v3268 = vshrl.u32 %v3267, 7
    %v3269 = vsub.s32 %v3266, %v3268
    %v3270 = vrot.slane %v3262, %v3269
    %v3272 = vunpack.c.l.s4 1934713408
    %v3273 = vunpack.c.0.s8 %v3272
    %v3274 = vlaneseq
    %v3275 = vshrl.u32 %v3274, 7
    %v3276 = vsub.s32 %v3273, %v3275
    %v3277 = vrot.slane %v3263, %v3276
    %v3278 = vcombine.high %v3254, 0.0
    %v3279 = vcombine.high %v3261, 0.0
    %v3280 = vcombine.high %v3270, 0.0
    %v3281 = vcombine.high %v3277, 0.0
    %v3282 = vcombine.low %v3186, %v3193
    %v3284 = vunpack.c.l.s4 1983009808
    %v3285 = vunpack.c.0.s8 %v3284
    %v3286 = vlaneseq
    %v3287 = vshrl.u32 %v3286, 7
    %v3288 = vsub.s32 %v3285, %v3287
    %v3289 = vrot.slane %v3282, %v3288
    %v3290 = vcombine.low %v3210, %v3211
    %v3292 = vunpack.c.l.s4 1983009808
    %v3293 = vunpack.c.0.s8 %v3292
    %v3294 = vlaneseq
    %v3295 = vshrl.u32 %v3294, 7
    %v3296 = vsub.s32 %v3293, %v3295
    %v3297 = vrot.slane %v3290, %v3296
    %v3298 = vcombine.low %v3202, %v3209
    %v3300 = vunpack.c.l.s4 1983009808
    %v3301 = vunpack.c.0.s8 %v3300
    %v3302 = vlaneseq
    %v3303 = vshrl.u32 %v3302, 7
    %v3304 = vsub.s32 %v3301, %v3303
    %v3305 = vrot.slane %v3298, %v3304
    %v3306 = vcombine.low %v3212, %v3213
    %v3308 = vunpack.c.l.s4 1983009808
    %v3309 = vunpack.c.0.s8 %v3308
    %v3310 = vlaneseq
    %v3311 = vshrl.u32 %v3310, 7
    %v3312 = vsub.s32 %v3309, %v3311
    %v3313 = vrot.slane %v3306, %v3312
    %v3314 = vcombine.low %v3289, %v3297
    %v3315 = vcombine.high %v3289, %v3297
    %v3317 = vunpack.c.l.s4 1934713408
    %v3318 = vunpack.c.0.s8 %v3317
    %v3319 = vlaneseq
    %v3320 = vshrl.u32 %v3319, 7
    %v3321 = vsub.s32 %v3318, %v3320
    %v3322 = vrot.slane %v3314, %v3321
    %v3324 = vunpack.c.l.s4 1934713408
    %v3325 = vunpack.c.0.s8 %v3324
    %v3326 = vlaneseq
    %v3327 = vshrl.u32 %v3326, 7
    %v3328 = vsub.s32 %v3325, %v3327
    %v3329 = vrot.slane %v3315, %v3328
    %v3330 = vcombine.low %v3305, %v3313
    %v3331 = vcombine.high %v3305, %v3313
    %v3333 = vunpack.c.l.s4 1934713408
    %v3334 = vunpack.c.0.s8 %v3333
    %v3335 = vlaneseq
    %v3336 = vshrl.u32 %v3335, 7
    %v3337 = vsub.s32 %v3334, %v3336
    %v3338 = vrot.slane %v3330, %v3337
    %v3340 = vunpack.c.l.s4 1934713408
    %v3341 = vunpack.c.0.s8 %v3340
    %v3342 = vlaneseq
    %v3343 = vshrl.u32 %v3342, 7
    %v3344 = vsub.s32 %v3341, %v3343
    %v3345 = vrot.slane %v3331, %v3344
    %v3346 = vcombine.low %v3322, %v3338
    %v3347 = vcombine.high %v3322, %v3338
    %v3348 = vcombine.low %v3329, %v3345
    %v3349 = vcombine.high %v3329, %v3345
    %v3350 = vcombine.low %v3254, %v3261
    %v3352 = vunpack.c.l.s4 1983009808
    %v3353 = vunpack.c.0.s8 %v3352
    %v3354 = vlaneseq
    %v3355 = vshrl.u32 %v3354, 7
    %v3356 = vsub.s32 %v3353, %v3355
    %v3357 = vrot.slane %v3350, %v3356
    %v3358 = vcombine.low %v3278, %v3279
    %v3360 = vunpack.c.l.s4 1983009808
    %v3361 = vunpack.c.0.s8 %v3360
    %v3362 = vlaneseq
    %v3363 = vshrl.u32 %v3362, 7
    %v3364 = vsub.s32 %v3361, %v3363
    %v3365 = vrot.slane %v3358, %v3364
    %v3366 = vcombine.low %v3270, %v3277
    %v3368 = vunpack.c.l.s4 1983009808
    %v3369 = vunpack.c.0.s8 %v3368
    %v3370 = vlaneseq
    %v3371 = vshrl.u32 %v3370, 7
    %v3372 = vsub.s32 %v3369, %v3371
    %v3373 = vrot.slane %v3366, %v3372
    %v3374 = vcombine.low %v3280, %v3281
    %v3376 = vunpack.c.l.s4 1983009808
    %v3377 = vunpack.c.0.s8 %v3376
    %v3378 = vlaneseq
    %v3379 = vshrl.u32 %v3378, 7
    %v3380 = vsub.s32 %v3377, %v3379
    %v3381 = vrot.slane %v3374, %v3380
    %v3382 = vcombine.low %v3357, %v3365
    %v3383 = vcombine.high %v3357, %v3365
    %v3385 = vunpack.c.l.s4 1934713408
    %v3386 = vunpack.c.0.s8 %v3385
    %v3387 = vlaneseq
    %v3388 = vshrl.u32 %v3387, 7
    %v3389 = vsub.s32 %v3386, %v3388
    %v3390 = vrot.slane %v3382, %v3389
    %v3392 = vunpack.c.l.s4 1934713408
    %v3393 = vunpack.c.0.s8 %v3392
    %v3394 = vlaneseq
    %v3395 = vshrl.u32 %v3394, 7
    %v3396 = vsub.s32 %v3393, %v3395
    %v3397 = vrot.slane %v3383, %v3396
    %v3398 = vcombine.low %v3373, %v3381
    %v3399 = vcombine.high %v3373, %v3381
    %v3401 = vunpack.c.l.s4 1934713408
    %v3402 = vunpack.c.0.s8 %v3401
    %v3403 = vlaneseq
    %v3404 = vshrl.u32 %v3403, 7
    %v3405 = vsub.s32 %v3402, %v3404
    %v3406 = vrot.slane %v3398, %v3405
    %v3408 = vunpack.c.l.s4 1934713408
    %v3409 = vunpack.c.0.s8 %v3408
    %v3410 = vlaneseq
    %v3411 = vshrl.u32 %v3410, 7
    %v3412 = vsub.s32 %v3409, %v3411
    %v3413 = vrot.slane %v3399, %v3412
    %v3414 = vcombine.low %v3390, %v3406
    %v3415 = vcombine.high %v3390, %v3406
    %v3416 = vcombine.low %v3397, %v3413
    %v3417 = vcombine.high %v3397, %v3413
    %v3418 = vpack.c.bf16 %v3346, %v3346
    %v3419 = vpack.c.bf16 %v3347, %v3347
    %v3420 = vpack.c.bf16 %v3348, %v3348
    %v3421 = vpack.c.bf16 %v3349, %v3349
    %v3422 = vpack.c.bf16 %v3414, %v3414
    %v3423 = vpack.c.bf16 %v3415, %v3415
    %v3424 = vpack.c.bf16 %v3416, %v3416
    %v3425 = vpack.c.bf16 %v3417, %v3417
    %3428 = vrot.lane.b32.xlu0 %v3079, 120
    %v3429 = vpop.permute.xlu0 %3428
    %3430 = vrot.lane.b32.xlu0 %v3083, 120
    %v3431 = vpop.permute.xlu0 %3430
    %3434 = vrot.lane.b32.xlu0 %v3079, 112
    %v3435 = vpop.permute.xlu0 %3434
    %3436 = vrot.lane.b32.xlu0 %v3083, 112
    %v3437 = vpop.permute.xlu0 %3436
    %3440 = vrot.lane.b32.xlu0 %v3079, 104
    %v3441 = vpop.permute.xlu0 %3440
    %3442 = vrot.lane.b32.xlu0 %v3083, 104
    %v3443 = vpop.permute.xlu0 %3442
    %v3446 = vcombine.low %v3079, %v3435
    %v3447 = vcombine.high %v3079, %v3435
    %v3449 = vunpack.c.l.s4 1983009808
    %v3450 = vunpack.c.0.s8 %v3449
    %v3451 = vlaneseq
    %v3452 = vshrl.u32 %v3451, 7
    %v3453 = vsub.s32 %v3450, %v3452
    %v3454 = vrot.slane %v3446, %v3453
    %v3456 = vunpack.c.l.s4 1983009808
    %v3457 = vunpack.c.0.s8 %v3456
    %v3458 = vlaneseq
    %v3459 = vshrl.u32 %v3458, 7
    %v3460 = vsub.s32 %v3457, %v3459
    %v3461 = vrot.slane %v3447, %v3460
    %v3462 = vcombine.low %v3429, %v3441
    %v3463 = vcombine.high %v3429, %v3441
    %v3465 = vunpack.c.l.s4 1983009808
    %v3466 = vunpack.c.0.s8 %v3465
    %v3467 = vlaneseq
    %v3468 = vshrl.u32 %v3467, 7
    %v3469 = vsub.s32 %v3466, %v3468
    %v3470 = vrot.slane %v3462, %v3469
    %v3472 = vunpack.c.l.s4 1983009808
    %v3473 = vunpack.c.0.s8 %v3472
    %v3474 = vlaneseq
    %v3475 = vshrl.u32 %v3474, 7
    %v3476 = vsub.s32 %v3473, %v3475
    %v3477 = vrot.slane %v3463, %v3476
    %v3478 = vcombine.low %v3454, %v3470
    %v3479 = vcombine.high %v3454, %v3470
    %v3481 = vunpack.c.l.s4 1934713408
    %v3482 = vunpack.c.0.s8 %v3481
    %v3483 = vlaneseq
    %v3484 = vshrl.u32 %v3483, 7
    %v3485 = vsub.s32 %v3482, %v3484
    %v3486 = vrot.slane %v3478, %v3485
    %v3488 = vunpack.c.l.s4 1934713408
    %v3489 = vunpack.c.0.s8 %v3488
    %v3490 = vlaneseq
    %v3491 = vshrl.u32 %v3490, 7
    %v3492 = vsub.s32 %v3489, %v3491
    %v3493 = vrot.slane %v3479, %v3492
    %v3494 = vcombine.low %v3461, %v3477
    %v3495 = vcombine.high %v3461, %v3477
    %v3497 = vunpack.c.l.s4 1934713408
    %v3498 = vunpack.c.0.s8 %v3497
    %v3499 = vlaneseq
    %v3500 = vshrl.u32 %v3499, 7
    %v3501 = vsub.s32 %v3498, %v3500
    %v3502 = vrot.slane %v3494, %v3501
    %v3504 = vunpack.c.l.s4 1934713408
    %v3505 = vunpack.c.0.s8 %v3504
    %v3506 = vlaneseq
    %v3507 = vshrl.u32 %v3506, 7
    %v3508 = vsub.s32 %v3505, %v3507
    %v3509 = vrot.slane %v3495, %v3508
    %v3510 = vcombine.high %v3486, 0.0
    %v3511 = vcombine.high %v3493, 0.0
    %v3512 = vcombine.high %v3502, 0.0
    %v3513 = vcombine.high %v3509, 0.0
    %v3514 = vcombine.low %v3083, %v3437
    %v3515 = vcombine.high %v3083, %v3437
    %v3517 = vunpack.c.l.s4 1983009808
    %v3518 = vunpack.c.0.s8 %v3517
    %v3519 = vlaneseq
    %v3520 = vshrl.u32 %v3519, 7
    %v3521 = vsub.s32 %v3518, %v3520
    %v3522 = vrot.slane %v3514, %v3521
    %v3524 = vunpack.c.l.s4 1983009808
    %v3525 = vunpack.c.0.s8 %v3524
    %v3526 = vlaneseq
    %v3527 = vshrl.u32 %v3526, 7
    %v3528 = vsub.s32 %v3525, %v3527
    %v3529 = vrot.slane %v3515, %v3528
    %v3530 = vcombine.low %v3431, %v3443
    %v3531 = vcombine.high %v3431, %v3443
    %v3533 = vunpack.c.l.s4 1983009808
    %v3534 = vunpack.c.0.s8 %v3533
    %v3535 = vlaneseq
    %v3536 = vshrl.u32 %v3535, 7
    %v3537 = vsub.s32 %v3534, %v3536
    %v3538 = vrot.slane %v3530, %v3537
    %v3540 = vunpack.c.l.s4 1983009808
    %v3541 = vunpack.c.0.s8 %v3540
    %v3542 = vlaneseq
    %v3543 = vshrl.u32 %v3542, 7
    %v3544 = vsub.s32 %v3541, %v3543
    %v3545 = vrot.slane %v3531, %v3544
    %v3546 = vcombine.low %v3522, %v3538
    %v3547 = vcombine.high %v3522, %v3538
    %v3549 = vunpack.c.l.s4 1934713408
    %v3550 = vunpack.c.0.s8 %v3549
    %v3551 = vlaneseq
    %v3552 = vshrl.u32 %v3551, 7
    %v3553 = vsub.s32 %v3550, %v3552
    %v3554 = vrot.slane %v3546, %v3553
    %v3556 = vunpack.c.l.s4 1934713408
    %v3557 = vunpack.c.0.s8 %v3556
    %v3558 = vlaneseq
    %v3559 = vshrl.u32 %v3558, 7
    %v3560 = vsub.s32 %v3557, %v3559
    %v3561 = vrot.slane %v3547, %v3560
    %v3562 = vcombine.low %v3529, %v3545
    %v3563 = vcombine.high %v3529, %v3545
    %v3565 = vunpack.c.l.s4 1934713408
    %v3566 = vunpack.c.0.s8 %v3565
    %v3567 = vlaneseq
    %v3568 = vshrl.u32 %v3567, 7
    %v3569 = vsub.s32 %v3566, %v3568
    %v3570 = vrot.slane %v3562, %v3569
    %v3572 = vunpack.c.l.s4 1934713408
    %v3573 = vunpack.c.0.s8 %v3572
    %v3574 = vlaneseq
    %v3575 = vshrl.u32 %v3574, 7
    %v3576 = vsub.s32 %v3573, %v3575
    %v3577 = vrot.slane %v3563, %v3576
    %v3578 = vcombine.high %v3554, 0.0
    %v3579 = vcombine.high %v3561, 0.0
    %v3580 = vcombine.high %v3570, 0.0
    %v3581 = vcombine.high %v3577, 0.0
    %v3582 = vcombine.low %v3486, %v3493
    %v3584 = vunpack.c.l.s4 1983009808
    %v3585 = vunpack.c.0.s8 %v3584
    %v3586 = vlaneseq
    %v3587 = vshrl.u32 %v3586, 7
    %v3588 = vsub.s32 %v3585, %v3587
    %v3589 = vrot.slane %v3582, %v3588
    %v3590 = vcombine.low %v3510, %v3511
    %v3592 = vunpack.c.l.s4 1983009808
    %v3593 = vunpack.c.0.s8 %v3592
    %v3594 = vlaneseq
    %v3595 = vshrl.u32 %v3594, 7
    %v3596 = vsub.s32 %v3593, %v3595
    %v3597 = vrot.slane %v3590, %v3596
    %v3598 = vcombine.low %v3502, %v3509
    %v3600 = vunpack.c.l.s4 1983009808
    %v3601 = vunpack.c.0.s8 %v3600
    %v3602 = vlaneseq
    %v3603 = vshrl.u32 %v3602, 7
    %v3604 = vsub.s32 %v3601, %v3603
    %v3605 = vrot.slane %v3598, %v3604
    %v3606 = vcombine.low %v3512, %v3513
    %v3608 = vunpack.c.l.s4 1983009808
    %v3609 = vunpack.c.0.s8 %v3608
    %v3610 = vlaneseq
    %v3611 = vshrl.u32 %v3610, 7
    %v3612 = vsub.s32 %v3609, %v3611
    %v3613 = vrot.slane %v3606, %v3612
    %v3614 = vcombine.low %v3589, %v3597
    %v3615 = vcombine.high %v3589, %v3597
    %v3617 = vunpack.c.l.s4 1934713408
    %v3618 = vunpack.c.0.s8 %v3617
    %v3619 = vlaneseq
    %v3620 = vshrl.u32 %v3619, 7
    %v3621 = vsub.s32 %v3618, %v3620
    %v3622 = vrot.slane %v3614, %v3621
    %v3624 = vunpack.c.l.s4 1934713408
    %v3625 = vunpack.c.0.s8 %v3624
    %v3626 = vlaneseq
    %v3627 = vshrl.u32 %v3626, 7
    %v3628 = vsub.s32 %v3625, %v3627
    %v3629 = vrot.slane %v3615, %v3628
    %v3630 = vcombine.low %v3605, %v3613
    %v3631 = vcombine.high %v3605, %v3613
    %v3633 = vunpack.c.l.s4 1934713408
    %v3634 = vunpack.c.0.s8 %v3633
    %v3635 = vlaneseq
    %v3636 = vshrl.u32 %v3635, 7
    %v3637 = vsub.s32 %v3634, %v3636
    %v3638 = vrot.slane %v3630, %v3637
    %v3640 = vunpack.c.l.s4 1934713408
    %v3641 = vunpack.c.0.s8 %v3640
    %v3642 = vlaneseq
    %v3643 = vshrl.u32 %v3642, 7
    %v3644 = vsub.s32 %v3641, %v3643
    %v3645 = vrot.slane %v3631, %v3644
    %v3646 = vcombine.low %v3622, %v3638
    %v3647 = vcombine.high %v3622, %v3638
    %v3648 = vcombine.low %v3629, %v3645
    %v3649 = vcombine.high %v3629, %v3645
    %v3650 = vcombine.low %v3554, %v3561
    %v3652 = vunpack.c.l.s4 1983009808
    %v3653 = vunpack.c.0.s8 %v3652
    %v3654 = vlaneseq
    %v3655 = vshrl.u32 %v3654, 7
    %v3656 = vsub.s32 %v3653, %v3655
    %v3657 = vrot.slane %v3650, %v3656
    %v3658 = vcombine.low %v3578, %v3579
    %v3660 = vunpack.c.l.s4 1983009808
    %v3661 = vunpack.c.0.s8 %v3660
    %v3662 = vlaneseq
    %v3663 = vshrl.u32 %v3662, 7
    %v3664 = vsub.s32 %v3661, %v3663
    %v3665 = vrot.slane %v3658, %v3664
    %v3666 = vcombine.low %v3570, %v3577
    %v3668 = vunpack.c.l.s4 1983009808
    %v3669 = vunpack.c.0.s8 %v3668
    %v3670 = vlaneseq
    %v3671 = vshrl.u32 %v3670, 7
    %v3672 = vsub.s32 %v3669, %v3671
    %v3673 = vrot.slane %v3666, %v3672
    %v3674 = vcombine.low %v3580, %v3581
    %v3676 = vunpack.c.l.s4 1983009808
    %v3677 = vunpack.c.0.s8 %v3676
    %v3678 = vlaneseq
    %v3679 = vshrl.u32 %v3678, 7
    %v3680 = vsub.s32 %v3677, %v3679
    %v3681 = vrot.slane %v3674, %v3680
    %v3682 = vcombine.low %v3657, %v3665
    %v3683 = vcombine.high %v3657, %v3665
    %v3685 = vunpack.c.l.s4 1934713408
    %v3686 = vunpack.c.0.s8 %v3685
    %v3687 = vlaneseq
    %v3688 = vshrl.u32 %v3687, 7
    %v3689 = vsub.s32 %v3686, %v3688
    %v3690 = vrot.slane %v3682, %v3689
    %v3692 = vunpack.c.l.s4 1934713408
    %v3693 = vunpack.c.0.s8 %v3692
    %v3694 = vlaneseq
    %v3695 = vshrl.u32 %v3694, 7
    %v3696 = vsub.s32 %v3693, %v3695
    %v3697 = vrot.slane %v3683, %v3696
    %v3698 = vcombine.low %v3673, %v3681
    %v3699 = vcombine.high %v3673, %v3681
    %v3701 = vunpack.c.l.s4 1934713408
    %v3702 = vunpack.c.0.s8 %v3701
    %v3703 = vlaneseq
    %v3704 = vshrl.u32 %v3703, 7
    %v3705 = vsub.s32 %v3702, %v3704
    %v3706 = vrot.slane %v3698, %v3705
    %v3708 = vunpack.c.l.s4 1934713408
    %v3709 = vunpack.c.0.s8 %v3708
    %v3710 = vlaneseq
    %v3711 = vshrl.u32 %v3710, 7
    %v3712 = vsub.s32 %v3709, %v3711
    %v3713 = vrot.slane %v3699, %v3712
    %v3714 = vcombine.low %v3690, %v3706
    %v3715 = vcombine.high %v3690, %v3706
    %v3716 = vcombine.low %v3697, %v3713
    %v3717 = vcombine.high %v3697, %v3713
    %v3718 = vpack.c.bf16 %v3646, %v3646
    %v3719 = vpack.c.bf16 %v3647, %v3647
    %v3720 = vpack.c.bf16 %v3648, %v3648
    %v3721 = vpack.c.bf16 %v3649, %v3649
    %v3722 = vpack.c.bf16 %v3714, %v3714
    %v3723 = vpack.c.bf16 %v3715, %v3715
    %v3724 = vpack.c.bf16 %v3716, %v3716
    %v3725 = vpack.c.bf16 %v3717, %v3717
    %3728 = vrot.lane.b32.xlu0 %v3120, 120
    %v3729 = vpop.permute.xlu0 %3728
    %3730 = vrot.lane.b32.xlu0 %v3123, 120
    %v3731 = vpop.permute.xlu0 %3730
    %3734 = vrot.lane.b32.xlu0 %v3120, 112
    %v3735 = vpop.permute.xlu0 %3734
    %3736 = vrot.lane.b32.xlu0 %v3123, 112
    %v3737 = vpop.permute.xlu0 %3736
    %3740 = vrot.lane.b32.xlu0 %v3120, 104
    %v3741 = vpop.permute.xlu0 %3740
    %3742 = vrot.lane.b32.xlu0 %v3123, 104
    %v3743 = vpop.permute.xlu0 %3742
    %v3746 = vcombine.low %v3120, %v3735
    %v3747 = vcombine.high %v3120, %v3735
    %v3749 = vunpack.c.l.s4 1983009808
    %v3750 = vunpack.c.0.s8 %v3749
    %v3751 = vlaneseq
    %v3752 = vshrl.u32 %v3751, 7
    %v3753 = vsub.s32 %v3750, %v3752
    %v3754 = vrot.slane %v3746, %v3753
    %v3756 = vunpack.c.l.s4 1983009808
    %v3757 = vunpack.c.0.s8 %v3756
    %v3758 = vlaneseq
    %v3759 = vshrl.u32 %v3758, 7
    %v3760 = vsub.s32 %v3757, %v3759
    %v3761 = vrot.slane %v3747, %v3760
    %v3762 = vcombine.low %v3729, %v3741
    %v3763 = vcombine.high %v3729, %v3741
    %v3765 = vunpack.c.l.s4 1983009808
    %v3766 = vunpack.c.0.s8 %v3765
    %v3767 = vlaneseq
    %v3768 = vshrl.u32 %v3767, 7
    %v3769 = vsub.s32 %v3766, %v3768
    %v3770 = vrot.slane %v3762, %v3769
    %v3772 = vunpack.c.l.s4 1983009808
    %v3773 = vunpack.c.0.s8 %v3772
    %v3774 = vlaneseq
    %v3775 = vshrl.u32 %v3774, 7
    %v3776 = vsub.s32 %v3773, %v3775
    %v3777 = vrot.slane %v3763, %v3776
    %v3778 = vcombine.low %v3754, %v3770
    %v3779 = vcombine.high %v3754, %v3770
    %v3781 = vunpack.c.l.s4 1934713408
    %v3782 = vunpack.c.0.s8 %v3781
    %v3783 = vlaneseq
    %v3784 = vshrl.u32 %v3783, 7
    %v3785 = vsub.s32 %v3782, %v3784
    %v3786 = vrot.slane %v3778, %v3785
    %v3788 = vunpack.c.l.s4 1934713408
    %v3789 = vunpack.c.0.s8 %v3788
    %v3790 = vlaneseq
    %v3791 = vshrl.u32 %v3790, 7
    %v3792 = vsub.s32 %v3789, %v3791
    %v3793 = vrot.slane %v3779, %v3792
    %v3794 = vcombine.low %v3761, %v3777
    %v3795 = vcombine.high %v3761, %v3777
    %v3797 = vunpack.c.l.s4 1934713408
    %v3798 = vunpack.c.0.s8 %v3797
    %v3799 = vlaneseq
    %v3800 = vshrl.u32 %v3799, 7
    %v3801 = vsub.s32 %v3798, %v3800
    %v3802 = vrot.slane %v3794, %v3801
    %v3804 = vunpack.c.l.s4 1934713408
    %v3805 = vunpack.c.0.s8 %v3804
    %v3806 = vlaneseq
    %v3807 = vshrl.u32 %v3806, 7
    %v3808 = vsub.s32 %v3805, %v3807
    %v3809 = vrot.slane %v3795, %v3808
    %v3810 = vcombine.high %v3786, 0.0
    %v3811 = vcombine.high %v3793, 0.0
    %v3812 = vcombine.high %v3802, 0.0
    %v3813 = vcombine.high %v3809, 0.0
    %v3814 = vcombine.low %v3123, %v3737
    %v3815 = vcombine.high %v3123, %v3737
    %v3817 = vunpack.c.l.s4 1983009808
    %v3818 = vunpack.c.0.s8 %v3817
    %v3819 = vlaneseq
    %v3820 = vshrl.u32 %v3819, 7
    %v3821 = vsub.s32 %v3818, %v3820
    %v3822 = vrot.slane %v3814, %v3821
    %v3824 = vunpack.c.l.s4 1983009808
    %v3825 = vunpack.c.0.s8 %v3824
    %v3826 = vlaneseq
    %v3827 = vshrl.u32 %v3826, 7
    %v3828 = vsub.s32 %v3825, %v3827
    %v3829 = vrot.slane %v3815, %v3828
    %v3830 = vcombine.low %v3731, %v3743
    %v3831 = vcombine.high %v3731, %v3743
    %v3833 = vunpack.c.l.s4 1983009808
    %v3834 = vunpack.c.0.s8 %v3833
    %v3835 = vlaneseq
    %v3836 = vshrl.u32 %v3835, 7
    %v3837 = vsub.s32 %v3834, %v3836
    %v3838 = vrot.slane %v3830, %v3837
    %v3840 = vunpack.c.l.s4 1983009808
    %v3841 = vunpack.c.0.s8 %v3840
    %v3842 = vlaneseq
    %v3843 = vshrl.u32 %v3842, 7
    %v3844 = vsub.s32 %v3841, %v3843
    %v3845 = vrot.slane %v3831, %v3844
    %v3846 = vcombine.low %v3822, %v3838
    %v3847 = vcombine.high %v3822, %v3838
    %v3849 = vunpack.c.l.s4 1934713408
    %v3850 = vunpack.c.0.s8 %v3849
    %v3851 = vlaneseq
    %v3852 = vshrl.u32 %v3851, 7
    %v3853 = vsub.s32 %v3850, %v3852
    %v3854 = vrot.slane %v3846, %v3853
    %v3856 = vunpack.c.l.s4 1934713408
    %v3857 = vunpack.c.0.s8 %v3856
    %v3858 = vlaneseq
    %v3859 = vshrl.u32 %v3858, 7
    %v3860 = vsub.s32 %v3857, %v3859
    %v3861 = vrot.slane %v3847, %v3860
    %v3862 = vcombine.low %v3829, %v3845
    %v3863 = vcombine.high %v3829, %v3845
    %v3865 = vunpack.c.l.s4 1934713408
    %v3866 = vunpack.c.0.s8 %v3865
    %v3867 = vlaneseq
    %v3868 = vshrl.u32 %v3867, 7
    %v3869 = vsub.s32 %v3866, %v3868
    %v3870 = vrot.slane %v3862, %v3869
    %v3872 = vunpack.c.l.s4 1934713408
    %v3873 = vunpack.c.0.s8 %v3872
    %v3874 = vlaneseq
    %v3875 = vshrl.u32 %v3874, 7
    %v3876 = vsub.s32 %v3873, %v3875
    %v3877 = vrot.slane %v3863, %v3876
    %v3878 = vcombine.high %v3854, 0.0
    %v3879 = vcombine.high %v3861, 0.0
    %v3880 = vcombine.high %v3870, 0.0
    %v3881 = vcombine.high %v3877, 0.0
    %v3882 = vcombine.low %v3786, %v3793
    %v3884 = vunpack.c.l.s4 1983009808
    %v3885 = vunpack.c.0.s8 %v3884
    %v3886 = vlaneseq
    %v3887 = vshrl.u32 %v3886, 7
    %v3888 = vsub.s32 %v3885, %v3887
    %v3889 = vrot.slane %v3882, %v3888
    %v3890 = vcombine.low %v3810, %v3811
    %v3892 = vunpack.c.l.s4 1983009808
    %v3893 = vunpack.c.0.s8 %v3892
    %v3894 = vlaneseq
    %v3895 = vshrl.u32 %v3894, 7
    %v3896 = vsub.s32 %v3893, %v3895
    %v3897 = vrot.slane %v3890, %v3896
    %v3898 = vcombine.low %v3802, %v3809
    %v3900 = vunpack.c.l.s4 1983009808
    %v3901 = vunpack.c.0.s8 %v3900
    %v3902 = vlaneseq
    %v3903 = vshrl.u32 %v3902, 7
    %v3904 = vsub.s32 %v3901, %v3903
    %v3905 = vrot.slane %v3898, %v3904
    %v3906 = vcombine.low %v3812, %v3813
    %v3908 = vunpack.c.l.s4 1983009808
    %v3909 = vunpack.c.0.s8 %v3908
    %v3910 = vlaneseq
    %v3911 = vshrl.u32 %v3910, 7
    %v3912 = vsub.s32 %v3909, %v3911
    %v3913 = vrot.slane %v3906, %v3912
    %v3914 = vcombine.low %v3889, %v3897
    %v3915 = vcombine.high %v3889, %v3897
    %v3917 = vunpack.c.l.s4 1934713408
    %v3918 = vunpack.c.0.s8 %v3917
    %v3919 = vlaneseq
    %v3920 = vshrl.u32 %v3919, 7
    %v3921 = vsub.s32 %v3918, %v3920
    %v3922 = vrot.slane %v3914, %v3921
    %v3924 = vunpack.c.l.s4 1934713408
    %v3925 = vunpack.c.0.s8 %v3924
    %v3926 = vlaneseq
    %v3927 = vshrl.u32 %v3926, 7
    %v3928 = vsub.s32 %v3925, %v3927
    %v3929 = vrot.slane %v3915, %v3928
    %v3930 = vcombine.low %v3905, %v3913
    %v3931 = vcombine.high %v3905, %v3913
    %v3933 = vunpack.c.l.s4 1934713408
    %v3934 = vunpack.c.0.s8 %v3933
    %v3935 = vlaneseq
    %v3936 = vshrl.u32 %v3935, 7
    %v3937 = vsub.s32 %v3934, %v3936
    %v3938 = vrot.slane %v3930, %v3937
    %v3940 = vunpack.c.l.s4 1934713408
    %v3941 = vunpack.c.0.s8 %v3940
    %v3942 = vlaneseq
    %v3943 = vshrl.u32 %v3942, 7
    %v3944 = vsub.s32 %v3941, %v3943
    %v3945 = vrot.slane %v3931, %v3944
    %v3946 = vcombine.low %v3922, %v3938
    %v3947 = vcombine.high %v3922, %v3938
    %v3948 = vcombine.low %v3929, %v3945
    %v3949 = vcombine.high %v3929, %v3945
    %v3950 = vcombine.low %v3854, %v3861
    %v3952 = vunpack.c.l.s4 1983009808
    %v3953 = vunpack.c.0.s8 %v3952
    %v3954 = vlaneseq
    %v3955 = vshrl.u32 %v3954, 7
    %v3956 = vsub.s32 %v3953, %v3955
    %v3957 = vrot.slane %v3950, %v3956
    %v3958 = vcombine.low %v3878, %v3879
    %v3960 = vunpack.c.l.s4 1983009808
    %v3961 = vunpack.c.0.s8 %v3960
    %v3962 = vlaneseq
    %v3963 = vshrl.u32 %v3962, 7
    %v3964 = vsub.s32 %v3961, %v3963
    %v3965 = vrot.slane %v3958, %v3964
    %v3966 = vcombine.low %v3870, %v3877
    %v3968 = vunpack.c.l.s4 1983009808
    %v3969 = vunpack.c.0.s8 %v3968
    %v3970 = vlaneseq
    %v3971 = vshrl.u32 %v3970, 7
    %v3972 = vsub.s32 %v3969, %v3971
    %v3973 = vrot.slane %v3966, %v3972
    %v3974 = vcombine.low %v3880, %v3881
    %v3976 = vunpack.c.l.s4 1983009808
    %v3977 = vunpack.c.0.s8 %v3976
    %v3978 = vlaneseq
    %v3979 = vshrl.u32 %v3978, 7
    %v3980 = vsub.s32 %v3977, %v3979
    %v3981 = vrot.slane %v3974, %v3980
    %v3982 = vcombine.low %v3957, %v3965
    %v3983 = vcombine.high %v3957, %v3965
    %v3985 = vunpack.c.l.s4 1934713408
    %v3986 = vunpack.c.0.s8 %v3985
    %v3987 = vlaneseq
    %v3988 = vshrl.u32 %v3987, 7
    %v3989 = vsub.s32 %v3986, %v3988
    %v3990 = vrot.slane %v3982, %v3989
    %v3992 = vunpack.c.l.s4 1934713408
    %v3993 = vunpack.c.0.s8 %v3992
    %v3994 = vlaneseq
    %v3995 = vshrl.u32 %v3994, 7
    %v3996 = vsub.s32 %v3993, %v3995
    %v3997 = vrot.slane %v3983, %v3996
    %v3998 = vcombine.low %v3973, %v3981
    %v3999 = vcombine.high %v3973, %v3981
    %v4001 = vunpack.c.l.s4 1934713408
    %v4002 = vunpack.c.0.s8 %v4001
    %v4003 = vlaneseq
    %v4004 = vshrl.u32 %v4003, 7
    %v4005 = vsub.s32 %v4002, %v4004
    %v4006 = vrot.slane %v3998, %v4005
    %v4008 = vunpack.c.l.s4 1934713408
    %v4009 = vunpack.c.0.s8 %v4008
    %v4010 = vlaneseq
    %v4011 = vshrl.u32 %v4010, 7
    %v4012 = vsub.s32 %v4009, %v4011
    %v4013 = vrot.slane %v3999, %v4012
    %v4014 = vcombine.low %v3990, %v4006
    %v4015 = vcombine.high %v3990, %v4006
    %v4016 = vcombine.low %v3997, %v4013
    %v4017 = vcombine.high %v3997, %v4013
    %v4018 = vpack.c.bf16 %v3946, %v3946
    %v4019 = vpack.c.bf16 %v3947, %v3947
    %v4020 = vpack.c.bf16 %v3948, %v3948
    %v4021 = vpack.c.bf16 %v3949, %v3949
    %v4022 = vpack.c.bf16 %v4014, %v4014
    %v4023 = vpack.c.bf16 %v4015, %v4015
    %v4024 = vpack.c.bf16 %v4016, %v4016
    %v4025 = vpack.c.bf16 %v4017, %v4017
    %v4027 = vsel %vm1362, %v3418, 0
    %v4030 = vsel %vm1362, %v3718, 0
    %4032 = vmatprep.subr.bf16.mxu0 0
    %4033 = vmatpush1.bf16.xpose.msra.mxu0 %v4030
    %4034 = vmatprep.subr.bf16.mxu0 0
    %4035 = vmatpush1.bf16.xpose.msra.mxu0 0
    %4036 = vmatprep.subr.bf16.mxu0 0
    %4037 = vmatpush1.bf16.xpose.msra.mxu0 0
    %4038 = vmatprep.subr.bf16.mxu0 0
    %4039 = vmatpush1.bf16.xpose.msra.mxu0 0
    %4040 = vmatprep.subr.bf16.mxu0 0
    %4041 = vmatpush1.bf16.xpose.msra.mxu0 0
    %4042 = vmatprep.subr.bf16.mxu0 0
    %4043 = vmatpush1.bf16.xpose.msra.mxu0 0
    %4044 = vmatprep.subr.bf16.mxu0 0
    %4045 = vmatpush1.bf16.xpose.msra.mxu0 0
    %4046 = vmatprep.subr.bf16.mxu0 0
    %4047 = vmatpush1.bf16.xpose.msra.mxu0 0
    %4048 = vmatprep.subr.bf16.mxu0 0
    %4049 = vmatpush1.bf16.xpose.msra.mxu0 0
    %4050 = vmatprep.subr.bf16.mxu0 0
    %4051 = vmatpush1.bf16.xpose.msra.mxu0 0
    %4052 = vmatprep.subr.bf16.mxu0 0
    %4053 = vmatpush1.bf16.xpose.msra.mxu0 0
    %4054 = vmatprep.subr.bf16.mxu0 0
    %4055 = vmatpush1.bf16.xpose.msra.mxu0 0
    %4056 = vmatprep.subr.bf16.mxu0 0
    %4057 = vmatpush1.bf16.xpose.msra.mxu0 0
    %4058 = vmatprep.subr.bf16.mxu0 0
    %4059 = vmatpush1.bf16.xpose.msra.mxu0 0
    %4060 = vmatprep.subr.bf16.mxu0 0
    %4061 = vmatpush1.bf16.xpose.msra.mxu0 0
    %4062 = vmatprep.subr.bf16.mxu0 0
    %4063 = vmatpush1.bf16.xpose.msra.mxu0 0
    %4064 = vmatprep.mubr.bf16.mxu0 0
    %4065 = vmatmul.mubr.bf16.gmra.mrb[0].mxu0 %v4027
    %v4066 = vpop.f32.mrb[0].mxu0
    %v4067 = vadd.f32 0.0, %v4066
    %v4068 = vpop.f32.mrb[0].mxu0
    %v4069 = vpop.f32.mrb[0].mxu0
    %v4070 = vpop.f32.mrb[0].mxu0
    %4071 = vdwg.mxu0
    %v4073 = vsel %vm1362, %v3419, 0
    %v4076 = vsel %vm1362, %v3719, 0
    %4078 = vmatprep.subr.bf16.mxu0 0
    %4079 = vmatpush1.bf16.xpose.msra.mxu0 %v4076
    %4080 = vmatprep.subr.bf16.mxu0 0
    %4081 = vmatpush1.bf16.xpose.msra.mxu0 0
    %4082 = vmatprep.subr.bf16.mxu0 0
    %4083 = vmatpush1.bf16.xpose.msra.mxu0 0
    %4084 = vmatprep.subr.bf16.mxu0 0
    %4085 = vmatpush1.bf16.xpose.msra.mxu0 0
    %4086 = vmatprep.subr.bf16.mxu0 0
    %4087 = vmatpush1.bf16.xpose.msra.mxu0 0
    %4088 = vmatprep.subr.bf16.mxu0 0
    %4089 = vmatpush1.bf16.xpose.msra.mxu0 0
    %4090 = vmatprep.subr.bf16.mxu0 0
    %4091 = vmatpush1.bf16.xpose.msra.mxu0 0
    %4092 = vmatprep.subr.bf16.mxu0 0
    %4093 = vmatpush1.bf16.xpose.msra.mxu0 0
    %4094 = vmatprep.subr.bf16.mxu0 0
    %4095 = vmatpush1.bf16.xpose.msra.mxu0 0
    %4096 = vmatprep.subr.bf16.mxu0 0
    %4097 = vmatpush1.bf16.xpose.msra.mxu0 0
    %4098 = vmatprep.subr.bf16.mxu0 0
    %4099 = vmatpush1.bf16.xpose.msra.mxu0 0
    %4100 = vmatprep.subr.bf16.mxu0 0
    %4101 = vmatpush1.bf16.xpose.msra.mxu0 0
    %4102 = vmatprep.subr.bf16.mxu0 0
    %4103 = vmatpush1.bf16.xpose.msra.mxu0 0
    %4104 = vmatprep.subr.bf16.mxu0 0
    %4105 = vmatpush1.bf16.xpose.msra.mxu0 0
    %4106 = vmatprep.subr.bf16.mxu0 0
    %4107 = vmatpush1.bf16.xpose.msra.mxu0 0
    %4108 = vmatprep.subr.bf16.mxu0 0
    %4109 = vmatpush1.bf16.xpose.msra.mxu0 0
    %4110 = vmatprep.mubr.bf16.mxu0 0
    %4111 = vmatmul.mubr.bf16.gmra.mrb[0].mxu0 %v4073
    %v4112 = vpop.f32.mrb[0].mxu0
    %v4113 = vadd.f32 0.0, %v4112
    %v4114 = vpop.f32.mrb[0].mxu0
    %v4115 = vpop.f32.mrb[0].mxu0
    %v4116 = vpop.f32.mrb[0].mxu0
    %4117 = vdwg.mxu0
    %v4119 = vsel %vm1362, %v3420, 0
    %v4122 = vsel %vm1362, %v3720, 0
    %4124 = vmatprep.subr.bf16.mxu0 0
    %4125 = vmatpush1.bf16.xpose.msra.mxu0 %v4122
    %4126 = vmatprep.subr.bf16.mxu0 0
    %4127 = vmatpush1.bf16.xpose.msra.mxu0 0
    %4128 = vmatprep.subr.bf16.mxu0 0
    %4129 = vmatpush1.bf16.xpose.msra.mxu0 0
    %4130 = vmatprep.subr.bf16.mxu0 0
    %4131 = vmatpush1.bf16.xpose.msra.mxu0 0
    %4132 = vmatprep.subr.bf16.mxu0 0
    %4133 = vmatpush1.bf16.xpose.msra.mxu0 0
    %4134 = vmatprep.subr.bf16.mxu0 0
    %4135 = vmatpush1.bf16.xpose.msra.mxu0 0
    %4136 = vmatprep.subr.bf16.mxu0 0
    %4137 = vmatpush1.bf16.xpose.msra.mxu0 0
    %4138 = vmatprep.subr.bf16.mxu0 0
    %4139 = vmatpush1.bf16.xpose.msra.mxu0 0
    %4140 = vmatprep.subr.bf16.mxu0 0
    %4141 = vmatpush1.bf16.xpose.msra.mxu0 0
    %4142 = vmatprep.subr.bf16.mxu0 0
    %4143 = vmatpush1.bf16.xpose.msra.mxu0 0
    %4144 = vmatprep.subr.bf16.mxu0 0
    %4145 = vmatpush1.bf16.xpose.msra.mxu0 0
    %4146 = vmatprep.subr.bf16.mxu0 0
    %4147 = vmatpush1.bf16.xpose.msra.mxu0 0
    %4148 = vmatprep.subr.bf16.mxu0 0
    %4149 = vmatpush1.bf16.xpose.msra.mxu0 0
    %4150 = vmatprep.subr.bf16.mxu0 0
    %4151 = vmatpush1.bf16.xpose.msra.mxu0 0
    %4152 = vmatprep.subr.bf16.mxu0 0
    %4153 = vmatpush1.bf16.xpose.msra.mxu0 0
    %4154 = vmatprep.subr.bf16.mxu0 0
    %4155 = vmatpush1.bf16.xpose.msra.mxu0 0
    %4156 = vmatprep.mubr.bf16.mxu0 0
    %4157 = vmatmul.mubr.bf16.gmra.mrb[0].mxu0 %v4119
    %v4158 = vpop.f32.mrb[0].mxu0
    %v4159 = vadd.f32 0.0, %v4158
    %v4160 = vpop.f32.mrb[0].mxu0
    %v4161 = vpop.f32.mrb[0].mxu0
    %v4162 = vpop.f32.mrb[0].mxu0
    %4163 = vdwg.mxu0
    %v4165 = vsel %vm1362, %v3421, 0
    %v4168 = vsel %vm1362, %v3721, 0
    %4170 = vmatprep.subr.bf16.mxu0 0
    %4171 = vmatpush1.bf16.xpose.msra.mxu0 %v4168
    %4172 = vmatprep.subr.bf16.mxu0 0
    %4173 = vmatpush1.bf16.xpose.msra.mxu0 0
    %4174 = vmatprep.subr.bf16.mxu0 0
    %4175 = vmatpush1.bf16.xpose.msra.mxu0 0
    %4176 = vmatprep.subr.bf16.mxu0 0
    %4177 = vmatpush1.bf16.xpose.msra.mxu0 0
    %4178 = vmatprep.subr.bf16.mxu0 0
    %4179 = vmatpush1.bf16.xpose.msra.mxu0 0
    %4180 = vmatprep.subr.bf16.mxu0 0
    %4181 = vmatpush1.bf16.xpose.msra.mxu0 0
    %4182 = vmatprep.subr.bf16.mxu0 0
    %4183 = vmatpush1.bf16.xpose.msra.mxu0 0
    %4184 = vmatprep.subr.bf16.mxu0 0
    %4185 = vmatpush1.bf16.xpose.msra.mxu0 0
    %4186 = vmatprep.subr.bf16.mxu0 0
    %4187 = vmatpush1.bf16.xpose.msra.mxu0 0
    %4188 = vmatprep.subr.bf16.mxu0 0
    %4189 = vmatpush1.bf16.xpose.msra.mxu0 0
    %4190 = vmatprep.subr.bf16.mxu0 0
    %4191 = vmatpush1.bf16.xpose.msra.mxu0 0
    %4192 = vmatprep.subr.bf16.mxu0 0
    %4193 = vmatpush1.bf16.xpose.msra.mxu0 0
    %4194 = vmatprep.subr.bf16.mxu0 0
    %4195 = vmatpush1.bf16.xpose.msra.mxu0 0
    %4196 = vmatprep.subr.bf16.mxu0 0
    %4197 = vmatpush1.bf16.xpose.msra.mxu0 0
    %4198 = vmatprep.subr.bf16.mxu0 0
    %4199 = vmatpush1.bf16.xpose.msra.mxu0 0
    %4200 = vmatprep.subr.bf16.mxu0 0
    %4201 = vmatpush1.bf16.xpose.msra.mxu0 0
    %4202 = vmatprep.mubr.bf16.mxu0 0
    %4203 = vmatmul.mubr.bf16.gmra.mrb[0].mxu0 %v4165
    %v4204 = vpop.f32.mrb[0].mxu0
    %v4205 = vadd.f32 0.0, %v4204
    %v4206 = vpop.f32.mrb[0].mxu0
    %v4207 = vpop.f32.mrb[0].mxu0
    %v4208 = vpop.f32.mrb[0].mxu0
    %4209 = vdwg.mxu0
    %v4211 = vsel %vm1362, %v3422, 0
    %v4214 = vsel %vm1362, %v3722, 0
    %4216 = vmatprep.subr.bf16.mxu0 0
    %4217 = vmatpush1.bf16.xpose.msra.mxu0 %v4214
    %4218 = vmatprep.subr.bf16.mxu0 0
    %4219 = vmatpush1.bf16.xpose.msra.mxu0 0
    %4220 = vmatprep.subr.bf16.mxu0 0
    %4221 = vmatpush1.bf16.xpose.msra.mxu0 0
    %4222 = vmatprep.subr.bf16.mxu0 0
    %4223 = vmatpush1.bf16.xpose.msra.mxu0 0
    %4224 = vmatprep.subr.bf16.mxu0 0
    %4225 = vmatpush1.bf16.xpose.msra.mxu0 0
    %4226 = vmatprep.subr.bf16.mxu0 0
    %4227 = vmatpush1.bf16.xpose.msra.mxu0 0
    %4228 = vmatprep.subr.bf16.mxu0 0
    %4229 = vmatpush1.bf16.xpose.msra.mxu0 0
    %4230 = vmatprep.subr.bf16.mxu0 0
    %4231 = vmatpush1.bf16.xpose.msra.mxu0 0
    %4232 = vmatprep.subr.bf16.mxu0 0
    %4233 = vmatpush1.bf16.xpose.msra.mxu0 0
    %4234 = vmatprep.subr.bf16.mxu0 0
    %4235 = vmatpush1.bf16.xpose.msra.mxu0 0
    %4236 = vmatprep.subr.bf16.mxu0 0
    %4237 = vmatpush1.bf16.xpose.msra.mxu0 0
    %4238 = vmatprep.subr.bf16.mxu0 0
    %4239 = vmatpush1.bf16.xpose.msra.mxu0 0
    %4240 = vmatprep.subr.bf16.mxu0 0
    %4241 = vmatpush1.bf16.xpose.msra.mxu0 0
    %4242 = vmatprep.subr.bf16.mxu0 0
    %4243 = vmatpush1.bf16.xpose.msra.mxu0 0
    %4244 = vmatprep.subr.bf16.mxu0 0
    %4245 = vmatpush1.bf16.xpose.msra.mxu0 0
    %4246 = vmatprep.subr.bf16.mxu0 0
    %4247 = vmatpush1.bf16.xpose.msra.mxu0 0
    %4248 = vmatprep.mubr.bf16.mxu0 0
    %4249 = vmatmul.mubr.bf16.gmra.mrb[0].mxu0 %v4211
    %v4250 = vpop.f32.mrb[0].mxu0
    %v4251 = vadd.f32 0.0, %v4250
    %v4252 = vpop.f32.mrb[0].mxu0
    %v4253 = vpop.f32.mrb[0].mxu0
    %v4254 = vpop.f32.mrb[0].mxu0
    %4255 = vdwg.mxu0
    %v4257 = vsel %vm1362, %v3423, 0
    %v4260 = vsel %vm1362, %v3723, 0
    %4262 = vmatprep.subr.bf16.mxu0 0
    %4263 = vmatpush1.bf16.xpose.msra.mxu0 %v4260
    %4264 = vmatprep.subr.bf16.mxu0 0
    %4265 = vmatpush1.bf16.xpose.msra.mxu0 0
    %4266 = vmatprep.subr.bf16.mxu0 0
    %4267 = vmatpush1.bf16.xpose.msra.mxu0 0
    %4268 = vmatprep.subr.bf16.mxu0 0
    %4269 = vmatpush1.bf16.xpose.msra.mxu0 0
    %4270 = vmatprep.subr.bf16.mxu0 0
    %4271 = vmatpush1.bf16.xpose.msra.mxu0 0
    %4272 = vmatprep.subr.bf16.mxu0 0
    %4273 = vmatpush1.bf16.xpose.msra.mxu0 0
    %4274 = vmatprep.subr.bf16.mxu0 0
    %4275 = vmatpush1.bf16.xpose.msra.mxu0 0
    %4276 = vmatprep.subr.bf16.mxu0 0
    %4277 = vmatpush1.bf16.xpose.msra.mxu0 0
    %4278 = vmatprep.subr.bf16.mxu0 0
    %4279 = vmatpush1.bf16.xpose.msra.mxu0 0
    %4280 = vmatprep.subr.bf16.mxu0 0
    %4281 = vmatpush1.bf16.xpose.msra.mxu0 0
    %4282 = vmatprep.subr.bf16.mxu0 0
    %4283 = vmatpush1.bf16.xpose.msra.mxu0 0
    %4284 = vmatprep.subr.bf16.mxu0 0
    %4285 = vmatpush1.bf16.xpose.msra.mxu0 0
    %4286 = vmatprep.subr.bf16.mxu0 0
    %4287 = vmatpush1.bf16.xpose.msra.mxu0 0
    %4288 = vmatprep.subr.bf16.mxu0 0
    %4289 = vmatpush1.bf16.xpose.msra.mxu0 0
    %4290 = vmatprep.subr.bf16.mxu0 0
    %4291 = vmatpush1.bf16.xpose.msra.mxu0 0
    %4292 = vmatprep.subr.bf16.mxu0 0
    %4293 = vmatpush1.bf16.xpose.msra.mxu0 0
    %4294 = vmatprep.mubr.bf16.mxu0 0
    %4295 = vmatmul.mubr.bf16.gmra.mrb[0].mxu0 %v4257
    %v4296 = vpop.f32.mrb[0].mxu0
    %v4297 = vadd.f32 0.0, %v4296
    %v4298 = vpop.f32.mrb[0].mxu0
    %v4299 = vpop.f32.mrb[0].mxu0
    %v4300 = vpop.f32.mrb[0].mxu0
    %4301 = vdwg.mxu0
    %v4303 = vsel %vm1362, %v3424, 0
    %v4306 = vsel %vm1362, %v3724, 0
    %4308 = vmatprep.subr.bf16.mxu0 0
    %4309 = vmatpush1.bf16.xpose.msra.mxu0 %v4306
    %4310 = vmatprep.subr.bf16.mxu0 0
    %4311 = vmatpush1.bf16.xpose.msra.mxu0 0
    %4312 = vmatprep.subr.bf16.mxu0 0
    %4313 = vmatpush1.bf16.xpose.msra.mxu0 0
    %4314 = vmatprep.subr.bf16.mxu0 0
    %4315 = vmatpush1.bf16.xpose.msra.mxu0 0
    %4316 = vmatprep.subr.bf16.mxu0 0
    %4317 = vmatpush1.bf16.xpose.msra.mxu0 0
    %4318 = vmatprep.subr.bf16.mxu0 0
    %4319 = vmatpush1.bf16.xpose.msra.mxu0 0
    %4320 = vmatprep.subr.bf16.mxu0 0
    %4321 = vmatpush1.bf16.xpose.msra.mxu0 0
    %4322 = vmatprep.subr.bf16.mxu0 0
    %4323 = vmatpush1.bf16.xpose.msra.mxu0 0
    %4324 = vmatprep.subr.bf16.mxu0 0
    %4325 = vmatpush1.bf16.xpose.msra.mxu0 0
    %4326 = vmatprep.subr.bf16.mxu0 0
    %4327 = vmatpush1.bf16.xpose.msra.mxu0 0
    %4328 = vmatprep.subr.bf16.mxu0 0
    %4329 = vmatpush1.bf16.xpose.msra.mxu0 0
    %4330 = vmatprep.subr.bf16.mxu0 0
    %4331 = vmatpush1.bf16.xpose.msra.mxu0 0
    %4332 = vmatprep.subr.bf16.mxu0 0
    %4333 = vmatpush1.bf16.xpose.msra.mxu0 0
    %4334 = vmatprep.subr.bf16.mxu0 0
    %4335 = vmatpush1.bf16.xpose.msra.mxu0 0
    %4336 = vmatprep.subr.bf16.mxu0 0
    %4337 = vmatpush1.bf16.xpose.msra.mxu0 0
    %4338 = vmatprep.subr.bf16.mxu0 0
    %4339 = vmatpush1.bf16.xpose.msra.mxu0 0
    %4340 = vmatprep.mubr.bf16.mxu0 0
    %4341 = vmatmul.mubr.bf16.gmra.mrb[0].mxu0 %v4303
    %v4342 = vpop.f32.mrb[0].mxu0
    %v4343 = vadd.f32 0.0, %v4342
    %v4344 = vpop.f32.mrb[0].mxu0
    %v4345 = vpop.f32.mrb[0].mxu0
    %v4346 = vpop.f32.mrb[0].mxu0
    %4347 = vdwg.mxu0
    %v4349 = vsel %vm1362, %v3425, 0
    %v4352 = vsel %vm1362, %v3725, 0
    %4354 = vmatprep.subr.bf16.mxu0 0
    %4355 = vmatpush1.bf16.xpose.msra.mxu0 %v4352
    %4356 = vmatprep.subr.bf16.mxu0 0
    %4357 = vmatpush1.bf16.xpose.msra.mxu0 0
    %4358 = vmatprep.subr.bf16.mxu0 0
    %4359 = vmatpush1.bf16.xpose.msra.mxu0 0
    %4360 = vmatprep.subr.bf16.mxu0 0
    %4361 = vmatpush1.bf16.xpose.msra.mxu0 0
    %4362 = vmatprep.subr.bf16.mxu0 0
    %4363 = vmatpush1.bf16.xpose.msra.mxu0 0
    %4364 = vmatprep.subr.bf16.mxu0 0
    %4365 = vmatpush1.bf16.xpose.msra.mxu0 0
    %4366 = vmatprep.subr.bf16.mxu0 0
    %4367 = vmatpush1.bf16.xpose.msra.mxu0 0
    %4368 = vmatprep.subr.bf16.mxu0 0
    %4369 = vmatpush1.bf16.xpose.msra.mxu0 0
    %4370 = vmatprep.subr.bf16.mxu0 0
    %4371 = vmatpush1.bf16.xpose.msra.mxu0 0
    %4372 = vmatprep.subr.bf16.mxu0 0
    %4373 = vmatpush1.bf16.xpose.msra.mxu0 0
    %4374 = vmatprep.subr.bf16.mxu0 0
    %4375 = vmatpush1.bf16.xpose.msra.mxu0 0
    %4376 = vmatprep.subr.bf16.mxu0 0
    %4377 = vmatpush1.bf16.xpose.msra.mxu0 0
    %4378 = vmatprep.subr.bf16.mxu0 0
    %4379 = vmatpush1.bf16.xpose.msra.mxu0 0
    %4380 = vmatprep.subr.bf16.mxu0 0
    %4381 = vmatpush1.bf16.xpose.msra.mxu0 0
    %4382 = vmatprep.subr.bf16.mxu0 0
    %4383 = vmatpush1.bf16.xpose.msra.mxu0 0
    %4384 = vmatprep.subr.bf16.mxu0 0
    %4385 = vmatpush1.bf16.xpose.msra.mxu0 0
    %4386 = vmatprep.mubr.bf16.mxu0 0
    %4387 = vmatmul.mubr.bf16.gmra.mrb[0].mxu0 %v4349
    %v4388 = vpop.f32.mrb[0].mxu0
    %v4389 = vadd.f32 0.0, %v4388
    %v4390 = vpop.f32.mrb[0].mxu0
    %v4391 = vpop.f32.mrb[0].mxu0
    %v4392 = vpop.f32.mrb[0].mxu0
    %4393 = vdwg.mxu0
    %v4394 = vsel %vm1362, %v4067, -inf
    %4395 = vmax.xlane.f32.xlu0 %v4394
    %v4396 = vpop.xlane.xlu0 %4395
    %v4397 = vsel %vm1362, %v4113, -inf
    %4398 = vmax.xlane.f32.xlu0 %v4397
    %v4399 = vpop.xlane.xlu0 %4398
    %v4400 = vsel %vm1362, %v4159, -inf
    %4401 = vmax.xlane.f32.xlu0 %v4400
    %v4402 = vpop.xlane.xlu0 %4401
    %v4403 = vsel %vm1362, %v4205, -inf
    %4404 = vmax.xlane.f32.xlu0 %v4403
    %v4405 = vpop.xlane.xlu0 %4404
    %v4406 = vsel %vm1362, %v4251, -inf
    %4407 = vmax.xlane.f32.xlu0 %v4406
    %v4408 = vpop.xlane.xlu0 %4407
    %v4409 = vsel %vm1362, %v4297, -inf
    %4410 = vmax.xlane.f32.xlu0 %v4409
    %v4411 = vpop.xlane.xlu0 %4410
    %v4412 = vsel %vm1362, %v4343, -inf
    %4413 = vmax.xlane.f32.xlu0 %v4412
    %v4414 = vpop.xlane.xlu0 %4413
    %v4415 = vsel %vm1362, %v4389, -inf
    %4416 = vmax.xlane.f32.xlu0 %v4415
    %v4417 = vpop.xlane.xlu0 %4416
    %v4418 = vsub.f32 %v4067, %v4396
    %v4419 = vsub.f32 %v4113, %v4399
    %v4420 = vsub.f32 %v4159, %v4402
    %v4421 = vsub.f32 %v4205, %v4405
    %v4422 = vsub.f32 %v4251, %v4408
    %v4423 = vsub.f32 %v4297, %v4411
    %v4424 = vsub.f32 %v4343, %v4414
    %v4425 = vsub.f32 %v4389, %v4417
    %v4426 = vmul.f32 %v4418, 1.442695
    %v4427 = vpow.pop %v4426
    %v4428 = vmul.f32 %v4419, 1.442695
    %v4429 = vpow.pop %v4428
    %v4430 = vmul.f32 %v4420, 1.442695
    %v4431 = vpow.pop %v4430
    %v4432 = vmul.f32 %v4421, 1.442695
    %v4433 = vpow.pop %v4432
    %v4434 = vmul.f32 %v4422, 1.442695
    %v4435 = vpow.pop %v4434
    %v4436 = vmul.f32 %v4423, 1.442695
    %v4437 = vpow.pop %v4436
    %v4438 = vmul.f32 %v4424, 1.442695
    %v4439 = vpow.pop %v4438
    %v4440 = vmul.f32 %v4425, 1.442695
    %v4441 = vpow.pop %v4440
    %v4442 = vsel %vm1362, %v4427, 0.0
    %4443 = vadd.xlane.f32.xlu0 %v4442
    %v4444 = vpop.xlane.xlu0 %4443
    %v4445 = vsel %vm1362, %v4429, 0.0
    %4446 = vadd.xlane.f32.xlu0 %v4445
    %v4447 = vpop.xlane.xlu0 %4446
    %v4448 = vsel %vm1362, %v4431, 0.0
    %4449 = vadd.xlane.f32.xlu0 %v4448
    %v4450 = vpop.xlane.xlu0 %4449
    %v4451 = vsel %vm1362, %v4433, 0.0
    %4452 = vadd.xlane.f32.xlu0 %v4451
    %v4453 = vpop.xlane.xlu0 %4452
    %v4454 = vsel %vm1362, %v4435, 0.0
    %4455 = vadd.xlane.f32.xlu0 %v4454
    %v4456 = vpop.xlane.xlu0 %4455
    %v4457 = vsel %vm1362, %v4437, 0.0
    %4458 = vadd.xlane.f32.xlu0 %v4457
    %v4459 = vpop.xlane.xlu0 %4458
    %v4460 = vsel %vm1362, %v4439, 0.0
    %4461 = vadd.xlane.f32.xlu0 %v4460
    %v4462 = vpop.xlane.xlu0 %4461
    %v4463 = vsel %vm1362, %v4441, 0.0
    %4464 = vadd.xlane.f32.xlu0 %v4463
    %v4465 = vpop.xlane.xlu0 %4464
    %v4466 = vrcp.pop %v4444
    %v4467 = vrcp.pop %v4447
    %v4468 = vrcp.pop %v4450
    %v4469 = vrcp.pop %v4453
    %v4470 = vrcp.pop %v4456
    %v4471 = vrcp.pop %v4459
    %v4472 = vrcp.pop %v4462
    %v4473 = vrcp.pop %v4465
    %v4474 = vmul.f32 %v4427, %v4466
    %v4475 = vmul.f32 %v4429, %v4467
    %v4476 = vmul.f32 %v4431, %v4468
    %v4477 = vmul.f32 %v4433, %v4469
    %v4478 = vmul.f32 %v4435, %v4470
    %v4479 = vmul.f32 %v4437, %v4471
    %v4480 = vmul.f32 %v4439, %v4472
    %v4481 = vmul.f32 %v4441, %v4473
    %v4482 = vpack.c.bf16 %v4474, %v4474
    %v4483 = vpack.c.bf16 %v4475, %v4475
    %v4484 = vpack.c.bf16 %v4476, %v4476
    %v4485 = vpack.c.bf16 %v4477, %v4477
    %v4486 = vpack.c.bf16 %v4478, %v4478
    %v4487 = vpack.c.bf16 %v4479, %v4479
    %v4488 = vpack.c.bf16 %v4480, %v4480
    %v4489 = vpack.c.bf16 %v4481, %v4481
    %v4491 = vsel %vm1362, %v4482, 0
    %v4494 = vsel %vm1830, %v4018, 0
    %4496 = vmatprep.subr.bf16.mxu0 0
    %4497 = vmatpush1.bf16.msra.mxu0 %v4494
    %4498 = vmatprep.subr.bf16.mxu0 0
    %4499 = vmatpush1.bf16.msra.mxu0 0
    %4500 = vmatprep.subr.bf16.mxu0 0
    %4501 = vmatpush1.bf16.msra.mxu0 0
    %4502 = vmatprep.subr.bf16.mxu0 0
    %4503 = vmatpush1.bf16.msra.mxu0 0
    %4504 = vmatprep.subr.bf16.mxu0 0
    %4505 = vmatpush1.bf16.msra.mxu0 0
    %4506 = vmatprep.subr.bf16.mxu0 0
    %4507 = vmatpush1.bf16.msra.mxu0 0
    %4508 = vmatprep.subr.bf16.mxu0 0
    %4509 = vmatpush1.bf16.msra.mxu0 0
    %4510 = vmatprep.subr.bf16.mxu0 0
    %4511 = vmatpush1.bf16.msra.mxu0 0
    %4512 = vmatprep.subr.bf16.mxu0 0
    %4513 = vmatpush1.bf16.msra.mxu0 0
    %4514 = vmatprep.subr.bf16.mxu0 0
    %4515 = vmatpush1.bf16.msra.mxu0 0
    %4516 = vmatprep.subr.bf16.mxu0 0
    %4517 = vmatpush1.bf16.msra.mxu0 0
    %4518 = vmatprep.subr.bf16.mxu0 0
    %4519 = vmatpush1.bf16.msra.mxu0 0
    %4520 = vmatprep.subr.bf16.mxu0 0
    %4521 = vmatpush1.bf16.msra.mxu0 0
    %4522 = vmatprep.subr.bf16.mxu0 0
    %4523 = vmatpush1.bf16.msra.mxu0 0
    %4524 = vmatprep.subr.bf16.mxu0 0
    %4525 = vmatpush1.bf16.msra.mxu0 0
    %4526 = vmatprep.subr.bf16.mxu0 0
    %4527 = vmatpush1.bf16.msra.mxu0 0
    %4528 = vmatprep.mubr.bf16.mxu0 0
    %4529 = vmatmul.mubr.bf16.gmra.mrb[0].mxu0 %v4491
    %v4530 = vpop.f32.mrb[0].mxu0
    %v4531 = vadd.f32 0.0, %v4530
    %v4532 = vpop.f32.mrb[0].mxu0
    %v4533 = vpop.f32.mrb[0].mxu0
    %v4534 = vpop.f32.mrb[0].mxu0
    %4535 = vdwg.mxu0
    %v4537 = vsel %vm1362, %v4483, 0
    %v4540 = vsel %vm1830, %v4019, 0
    %4542 = vmatprep.subr.bf16.mxu0 0
    %4543 = vmatpush1.bf16.msra.mxu0 %v4540
    %4544 = vmatprep.subr.bf16.mxu0 0
    %4545 = vmatpush1.bf16.msra.mxu0 0
    %4546 = vmatprep.subr.bf16.mxu0 0
    %4547 = vmatpush1.bf16.msra.mxu0 0
    %4548 = vmatprep.subr.bf16.mxu0 0
    %4549 = vmatpush1.bf16.msra.mxu0 0
    %4550 = vmatprep.subr.bf16.mxu0 0
    %4551 = vmatpush1.bf16.msra.mxu0 0
    %4552 = vmatprep.subr.bf16.mxu0 0
    %4553 = vmatpush1.bf16.msra.mxu0 0
    %4554 = vmatprep.subr.bf16.mxu0 0
    %4555 = vmatpush1.bf16.msra.mxu0 0
    %4556 = vmatprep.subr.bf16.mxu0 0
    %4557 = vmatpush1.bf16.msra.mxu0 0
    %4558 = vmatprep.subr.bf16.mxu0 0
    %4559 = vmatpush1.bf16.msra.mxu0 0
    %4560 = vmatprep.subr.bf16.mxu0 0
    %4561 = vmatpush1.bf16.msra.mxu0 0
    %4562 = vmatprep.subr.bf16.mxu0 0
    %4563 = vmatpush1.bf16.msra.mxu0 0
    %4564 = vmatprep.subr.bf16.mxu0 0
    %4565 = vmatpush1.bf16.msra.mxu0 0
    %4566 = vmatprep.subr.bf16.mxu0 0
    %4567 = vmatpush1.bf16.msra.mxu0 0
    %4568 = vmatprep.subr.bf16.mxu0 0
    %4569 = vmatpush1.bf16.msra.mxu0 0
    %4570 = vmatprep.subr.bf16.mxu0 0
    %4571 = vmatpush1.bf16.msra.mxu0 0
    %4572 = vmatprep.subr.bf16.mxu0 0
    %4573 = vmatpush1.bf16.msra.mxu0 0
    %4574 = vmatprep.mubr.bf16.mxu0 0
    %4575 = vmatmul.mubr.bf16.gmra.mrb[0].mxu0 %v4537
    %v4576 = vpop.f32.mrb[0].mxu0
    %v4577 = vadd.f32 0.0, %v4576
    %v4578 = vpop.f32.mrb[0].mxu0
    %v4579 = vpop.f32.mrb[0].mxu0
    %v4580 = vpop.f32.mrb[0].mxu0
    %4581 = vdwg.mxu0
    %v4583 = vsel %vm1362, %v4484, 0
    %v4586 = vsel %vm1830, %v4020, 0
    %4588 = vmatprep.subr.bf16.mxu0 0
    %4589 = vmatpush1.bf16.msra.mxu0 %v4586
    %4590 = vmatprep.subr.bf16.mxu0 0
    %4591 = vmatpush1.bf16.msra.mxu0 0
    %4592 = vmatprep.subr.bf16.mxu0 0
    %4593 = vmatpush1.bf16.msra.mxu0 0
    %4594 = vmatprep.subr.bf16.mxu0 0
    %4595 = vmatpush1.bf16.msra.mxu0 0
    %4596 = vmatprep.subr.bf16.mxu0 0
    %4597 = vmatpush1.bf16.msra.mxu0 0
    %4598 = vmatprep.subr.bf16.mxu0 0
    %4599 = vmatpush1.bf16.msra.mxu0 0
    %4600 = vmatprep.subr.bf16.mxu0 0
    %4601 = vmatpush1.bf16.msra.mxu0 0
    %4602 = vmatprep.subr.bf16.mxu0 0
    %4603 = vmatpush1.bf16.msra.mxu0 0
    %4604 = vmatprep.subr.bf16.mxu0 0
    %4605 = vmatpush1.bf16.msra.mxu0 0
    %4606 = vmatprep.subr.bf16.mxu0 0
    %4607 = vmatpush1.bf16.msra.mxu0 0
    %4608 = vmatprep.subr.bf16.mxu0 0
    %4609 = vmatpush1.bf16.msra.mxu0 0
    %4610 = vmatprep.subr.bf16.mxu0 0
    %4611 = vmatpush1.bf16.msra.mxu0 0
    %4612 = vmatprep.subr.bf16.mxu0 0
    %4613 = vmatpush1.bf16.msra.mxu0 0
    %4614 = vmatprep.subr.bf16.mxu0 0
    %4615 = vmatpush1.bf16.msra.mxu0 0
    %4616 = vmatprep.subr.bf16.mxu0 0
    %4617 = vmatpush1.bf16.msra.mxu0 0
    %4618 = vmatprep.subr.bf16.mxu0 0
    %4619 = vmatpush1.bf16.msra.mxu0 0
    %4620 = vmatprep.mubr.bf16.mxu0 0
    %4621 = vmatmul.mubr.bf16.gmra.mrb[0].mxu0 %v4583
    %v4622 = vpop.f32.mrb[0].mxu0
    %v4623 = vadd.f32 0.0, %v4622
    %v4624 = vpop.f32.mrb[0].mxu0
    %v4625 = vpop.f32.mrb[0].mxu0
    %v4626 = vpop.f32.mrb[0].mxu0
    %4627 = vdwg.mxu0
    %v4629 = vsel %vm1362, %v4485, 0
    %v4632 = vsel %vm1830, %v4021, 0
    %4634 = vmatprep.subr.bf16.mxu0 0
    %4635 = vmatpush1.bf16.msra.mxu0 %v4632
    %4636 = vmatprep.subr.bf16.mxu0 0
    %4637 = vmatpush1.bf16.msra.mxu0 0
    %4638 = vmatprep.subr.bf16.mxu0 0
    %4639 = vmatpush1.bf16.msra.mxu0 0
    %4640 = vmatprep.subr.bf16.mxu0 0
    %4641 = vmatpush1.bf16.msra.mxu0 0
    %4642 = vmatprep.subr.bf16.mxu0 0
    %4643 = vmatpush1.bf16.msra.mxu0 0
    %4644 = vmatprep.subr.bf16.mxu0 0
    %4645 = vmatpush1.bf16.msra.mxu0 0
    %4646 = vmatprep.subr.bf16.mxu0 0
    %4647 = vmatpush1.bf16.msra.mxu0 0
    %4648 = vmatprep.subr.bf16.mxu0 0
    %4649 = vmatpush1.bf16.msra.mxu0 0
    %4650 = vmatprep.subr.bf16.mxu0 0
    %4651 = vmatpush1.bf16.msra.mxu0 0
    %4652 = vmatprep.subr.bf16.mxu0 0
    %4653 = vmatpush1.bf16.msra.mxu0 0
    %4654 = vmatprep.subr.bf16.mxu0 0
    %4655 = vmatpush1.bf16.msra.mxu0 0
    %4656 = vmatprep.subr.bf16.mxu0 0
    %4657 = vmatpush1.bf16.msra.mxu0 0
    %4658 = vmatprep.subr.bf16.mxu0 0
    %4659 = vmatpush1.bf16.msra.mxu0 0
    %4660 = vmatprep.subr.bf16.mxu0 0
    %4661 = vmatpush1.bf16.msra.mxu0 0
    %4662 = vmatprep.subr.bf16.mxu0 0
    %4663 = vmatpush1.bf16.msra.mxu0 0
    %4664 = vmatprep.subr.bf16.mxu0 0
    %4665 = vmatpush1.bf16.msra.mxu0 0
    %4666 = vmatprep.mubr.bf16.mxu0 0
    %4667 = vmatmul.mubr.bf16.gmra.mrb[0].mxu0 %v4629
    %v4668 = vpop.f32.mrb[0].mxu0
    %v4669 = vadd.f32 0.0, %v4668
    %v4670 = vpop.f32.mrb[0].mxu0
    %v4671 = vpop.f32.mrb[0].mxu0
    %v4672 = vpop.f32.mrb[0].mxu0
    %4673 = vdwg.mxu0
    %v4675 = vsel %vm1362, %v4486, 0
    %v4678 = vsel %vm1830, %v4022, 0
    %4680 = vmatprep.subr.bf16.mxu0 0
    %4681 = vmatpush1.bf16.msra.mxu0 %v4678
    %4682 = vmatprep.subr.bf16.mxu0 0
    %4683 = vmatpush1.bf16.msra.mxu0 0
    %4684 = vmatprep.subr.bf16.mxu0 0
    %4685 = vmatpush1.bf16.msra.mxu0 0
    %4686 = vmatprep.subr.bf16.mxu0 0
    %4687 = vmatpush1.bf16.msra.mxu0 0
    %4688 = vmatprep.subr.bf16.mxu0 0
    %4689 = vmatpush1.bf16.msra.mxu0 0
    %4690 = vmatprep.subr.bf16.mxu0 0
    %4691 = vmatpush1.bf16.msra.mxu0 0
    %4692 = vmatprep.subr.bf16.mxu0 0
    %4693 = vmatpush1.bf16.msra.mxu0 0
    %4694 = vmatprep.subr.bf16.mxu0 0
    %4695 = vmatpush1.bf16.msra.mxu0 0
    %4696 = vmatprep.subr.bf16.mxu0 0
    %4697 = vmatpush1.bf16.msra.mxu0 0
    %4698 = vmatprep.subr.bf16.mxu0 0
    %4699 = vmatpush1.bf16.msra.mxu0 0
    %4700 = vmatprep.subr.bf16.mxu0 0
    %4701 = vmatpush1.bf16.msra.mxu0 0
    %4702 = vmatprep.subr.bf16.mxu0 0
    %4703 = vmatpush1.bf16.msra.mxu0 0
    %4704 = vmatprep.subr.bf16.mxu0 0
    %4705 = vmatpush1.bf16.msra.mxu0 0
    %4706 = vmatprep.subr.bf16.mxu0 0
    %4707 = vmatpush1.bf16.msra.mxu0 0
    %4708 = vmatprep.subr.bf16.mxu0 0
    %4709 = vmatpush1.bf16.msra.mxu0 0
    %4710 = vmatprep.subr.bf16.mxu0 0
    %4711 = vmatpush1.bf16.msra.mxu0 0
    %4712 = vmatprep.mubr.bf16.mxu0 0
    %4713 = vmatmul.mubr.bf16.gmra.mrb[0].mxu0 %v4675
    %v4714 = vpop.f32.mrb[0].mxu0
    %v4715 = vadd.f32 0.0, %v4714
    %v4716 = vpop.f32.mrb[0].mxu0
    %v4717 = vpop.f32.mrb[0].mxu0
    %v4718 = vpop.f32.mrb[0].mxu0
    %4719 = vdwg.mxu0
    %v4721 = vsel %vm1362, %v4487, 0
    %v4724 = vsel %vm1830, %v4023, 0
    %4726 = vmatprep.subr.bf16.mxu0 0
    %4727 = vmatpush1.bf16.msra.mxu0 %v4724
    %4728 = vmatprep.subr.bf16.mxu0 0
    %4729 = vmatpush1.bf16.msra.mxu0 0
    %4730 = vmatprep.subr.bf16.mxu0 0
    %4731 = vmatpush1.bf16.msra.mxu0 0
    %4732 = vmatprep.subr.bf16.mxu0 0
    %4733 = vmatpush1.bf16.msra.mxu0 0
    %4734 = vmatprep.subr.bf16.mxu0 0
    %4735 = vmatpush1.bf16.msra.mxu0 0
    %4736 = vmatprep.subr.bf16.mxu0 0
    %4737 = vmatpush1.bf16.msra.mxu0 0
    %4738 = vmatprep.subr.bf16.mxu0 0
    %4739 = vmatpush1.bf16.msra.mxu0 0
    %4740 = vmatprep.subr.bf16.mxu0 0
    %4741 = vmatpush1.bf16.msra.mxu0 0
    %4742 = vmatprep.subr.bf16.mxu0 0
    %4743 = vmatpush1.bf16.msra.mxu0 0
    %4744 = vmatprep.subr.bf16.mxu0 0
    %4745 = vmatpush1.bf16.msra.mxu0 0
    %4746 = vmatprep.subr.bf16.mxu0 0
    %4747 = vmatpush1.bf16.msra.mxu0 0
    %4748 = vmatprep.subr.bf16.mxu0 0
    %4749 = vmatpush1.bf16.msra.mxu0 0
    %4750 = vmatprep.subr.bf16.mxu0 0
    %4751 = vmatpush1.bf16.msra.mxu0 0
    %4752 = vmatprep.subr.bf16.mxu0 0
    %4753 = vmatpush1.bf16.msra.mxu0 0
    %4754 = vmatprep.subr.bf16.mxu0 0
    %4755 = vmatpush1.bf16.msra.mxu0 0
    %4756 = vmatprep.subr.bf16.mxu0 0
    %4757 = vmatpush1.bf16.msra.mxu0 0
    %4758 = vmatprep.mubr.bf16.mxu0 0
    %4759 = vmatmul.mubr.bf16.gmra.mrb[0].mxu0 %v4721
    %v4760 = vpop.f32.mrb[0].mxu0
    %v4761 = vadd.f32 0.0, %v4760
    %v4762 = vpop.f32.mrb[0].mxu0
    %v4763 = vpop.f32.mrb[0].mxu0
    %v4764 = vpop.f32.mrb[0].mxu0
    %4765 = vdwg.mxu0
    %v4767 = vsel %vm1362, %v4488, 0
    %v4770 = vsel %vm1830, %v4024, 0
    %4772 = vmatprep.subr.bf16.mxu0 0
    %4773 = vmatpush1.bf16.msra.mxu0 %v4770
    %4774 = vmatprep.subr.bf16.mxu0 0
    %4775 = vmatpush1.bf16.msra.mxu0 0
    %4776 = vmatprep.subr.bf16.mxu0 0
    %4777 = vmatpush1.bf16.msra.mxu0 0
    %4778 = vmatprep.subr.bf16.mxu0 0
    %4779 = vmatpush1.bf16.msra.mxu0 0
    %4780 = vmatprep.subr.bf16.mxu0 0
    %4781 = vmatpush1.bf16.msra.mxu0 0
    %4782 = vmatprep.subr.bf16.mxu0 0
    %4783 = vmatpush1.bf16.msra.mxu0 0
    %4784 = vmatprep.subr.bf16.mxu0 0
    %4785 = vmatpush1.bf16.msra.mxu0 0
    %4786 = vmatprep.subr.bf16.mxu0 0
    %4787 = vmatpush1.bf16.msra.mxu0 0
    %4788 = vmatprep.subr.bf16.mxu0 0
    %4789 = vmatpush1.bf16.msra.mxu0 0
    %4790 = vmatprep.subr.bf16.mxu0 0
    %4791 = vmatpush1.bf16.msra.mxu0 0
    %4792 = vmatprep.subr.bf16.mxu0 0
    %4793 = vmatpush1.bf16.msra.mxu0 0
    %4794 = vmatprep.subr.bf16.mxu0 0
    %4795 = vmatpush1.bf16.msra.mxu0 0
    %4796 = vmatprep.subr.bf16.mxu0 0
    %4797 = vmatpush1.bf16.msra.mxu0 0
    %4798 = vmatprep.subr.bf16.mxu0 0
    %4799 = vmatpush1.bf16.msra.mxu0 0
    %4800 = vmatprep.subr.bf16.mxu0 0
    %4801 = vmatpush1.bf16.msra.mxu0 0
    %4802 = vmatprep.subr.bf16.mxu0 0
    %4803 = vmatpush1.bf16.msra.mxu0 0
    %4804 = vmatprep.mubr.bf16.mxu0 0
    %4805 = vmatmul.mubr.bf16.gmra.mrb[0].mxu0 %v4767
    %v4806 = vpop.f32.mrb[0].mxu0
    %v4807 = vadd.f32 0.0, %v4806
    %v4808 = vpop.f32.mrb[0].mxu0
    %v4809 = vpop.f32.mrb[0].mxu0
    %v4810 = vpop.f32.mrb[0].mxu0
    %4811 = vdwg.mxu0
    %v4813 = vsel %vm1362, %v4489, 0
    %v4816 = vsel %vm1830, %v4025, 0
    %4818 = vmatprep.subr.bf16.mxu0 0
    %4819 = vmatpush1.bf16.msra.mxu0 %v4816
    %4820 = vmatprep.subr.bf16.mxu0 0
    %4821 = vmatpush1.bf16.msra.mxu0 0
    %4822 = vmatprep.subr.bf16.mxu0 0
    %4823 = vmatpush1.bf16.msra.mxu0 0
    %4824 = vmatprep.subr.bf16.mxu0 0
    %4825 = vmatpush1.bf16.msra.mxu0 0
    %4826 = vmatprep.subr.bf16.mxu0 0
    %4827 = vmatpush1.bf16.msra.mxu0 0
    %4828 = vmatprep.subr.bf16.mxu0 0
    %4829 = vmatpush1.bf16.msra.mxu0 0
    %4830 = vmatprep.subr.bf16.mxu0 0
    %4831 = vmatpush1.bf16.msra.mxu0 0
    %4832 = vmatprep.subr.bf16.mxu0 0
    %4833 = vmatpush1.bf16.msra.mxu0 0
    %4834 = vmatprep.subr.bf16.mxu0 0
    %4835 = vmatpush1.bf16.msra.mxu0 0
    %4836 = vmatprep.subr.bf16.mxu0 0
    %4837 = vmatpush1.bf16.msra.mxu0 0
    %4838 = vmatprep.subr.bf16.mxu0 0
    %4839 = vmatpush1.bf16.msra.mxu0 0
    %4840 = vmatprep.subr.bf16.mxu0 0
    %4841 = vmatpush1.bf16.msra.mxu0 0
    %4842 = vmatprep.subr.bf16.mxu0 0
    %4843 = vmatpush1.bf16.msra.mxu0 0
    %4844 = vmatprep.subr.bf16.mxu0 0
    %4845 = vmatpush1.bf16.msra.mxu0 0
    %4846 = vmatprep.subr.bf16.mxu0 0
    %4847 = vmatpush1.bf16.msra.mxu0 0
    %4848 = vmatprep.subr.bf16.mxu0 0
    %4849 = vmatpush1.bf16.msra.mxu0 0
    %4850 = vmatprep.mubr.bf16.mxu0 0
    %4851 = vmatmul.mubr.bf16.gmra.mrb[0].mxu0 %v4813
    %v4852 = vpop.f32.mrb[0].mxu0
    %v4853 = vadd.f32 0.0, %v4852
    %v4854 = vpop.f32.mrb[0].mxu0
    %v4855 = vpop.f32.mrb[0].mxu0
    %v4856 = vpop.f32.mrb[0].mxu0
    %4857 = vdwg.mxu0
    %v4858 = vcombine.low %v4531, %v4623
    %v4859 = vcombine.high %v4531, %v4623
    %v4861 = vunpack.c.l.s4 1983009808
    %v4862 = vunpack.c.0.s8 %v4861
    %v4863 = vlaneseq
    %v4864 = vshrl.u32 %v4863, 7
    %v4865 = vsub.s32 %v4862, %v4864
    %v4866 = vrot.slane %v4858, %v4865
    %v4868 = vunpack.c.l.s4 1983009808
    %v4869 = vunpack.c.0.s8 %v4868
    %v4870 = vlaneseq
    %v4871 = vshrl.u32 %v4870, 7
    %v4872 = vsub.s32 %v4869, %v4871
    %v4873 = vrot.slane %v4859, %v4872
    %v4874 = vcombine.low %v4577, %v4669
    %v4875 = vcombine.high %v4577, %v4669
    %v4877 = vunpack.c.l.s4 1983009808
    %v4878 = vunpack.c.0.s8 %v4877
    %v4879 = vlaneseq
    %v4880 = vshrl.u32 %v4879, 7
    %v4881 = vsub.s32 %v4878, %v4880
    %v4882 = vrot.slane %v4874, %v4881
    %v4884 = vunpack.c.l.s4 1983009808
    %v4885 = vunpack.c.0.s8 %v4884
    %v4886 = vlaneseq
    %v4887 = vshrl.u32 %v4886, 7
    %v4888 = vsub.s32 %v4885, %v4887
    %v4889 = vrot.slane %v4875, %v4888
    %v4890 = vcombine.low %v4866, %v4882
    %v4891 = vcombine.high %v4866, %v4882
    %v4893 = vunpack.c.l.s4 1934713408
    %v4894 = vunpack.c.0.s8 %v4893
    %v4895 = vlaneseq
    %v4896 = vshrl.u32 %v4895, 7
    %v4897 = vsub.s32 %v4894, %v4896
    %v4898 = vrot.slane %v4890, %v4897
    %v4900 = vunpack.c.l.s4 1934713408
    %v4901 = vunpack.c.0.s8 %v4900
    %v4902 = vlaneseq
    %v4903 = vshrl.u32 %v4902, 7
    %v4904 = vsub.s32 %v4901, %v4903
    %v4905 = vrot.slane %v4891, %v4904
    %v4906 = vcombine.low %v4873, %v4889
    %v4907 = vcombine.high %v4873, %v4889
    %v4909 = vunpack.c.l.s4 1934713408
    %v4910 = vunpack.c.0.s8 %v4909
    %v4911 = vlaneseq
    %v4912 = vshrl.u32 %v4911, 7
    %v4913 = vsub.s32 %v4910, %v4912
    %v4914 = vrot.slane %v4906, %v4913
    %v4916 = vunpack.c.l.s4 1934713408
    %v4917 = vunpack.c.0.s8 %v4916
    %v4918 = vlaneseq
    %v4919 = vshrl.u32 %v4918, 7
    %v4920 = vsub.s32 %v4917, %v4919
    %v4921 = vrot.slane %v4907, %v4920
    %v4922 = vcombine.high %v4898, 0.0
    %v4923 = vcombine.high %v4905, 0.0
    %v4924 = vcombine.high %v4914, 0.0
    %v4925 = vcombine.high %v4921, 0.0
    %v4926 = vcombine.low %v4715, %v4807
    %v4927 = vcombine.high %v4715, %v4807
    %v4929 = vunpack.c.l.s4 1983009808
    %v4930 = vunpack.c.0.s8 %v4929
    %v4931 = vlaneseq
    %v4932 = vshrl.u32 %v4931, 7
    %v4933 = vsub.s32 %v4930, %v4932
    %v4934 = vrot.slane %v4926, %v4933
    %v4936 = vunpack.c.l.s4 1983009808
    %v4937 = vunpack.c.0.s8 %v4936
    %v4938 = vlaneseq
    %v4939 = vshrl.u32 %v4938, 7
    %v4940 = vsub.s32 %v4937, %v4939
    %v4941 = vrot.slane %v4927, %v4940
    %v4942 = vcombine.low %v4761, %v4853
    %v4943 = vcombine.high %v4761, %v4853
    %v4945 = vunpack.c.l.s4 1983009808
    %v4946 = vunpack.c.0.s8 %v4945
    %v4947 = vlaneseq
    %v4948 = vshrl.u32 %v4947, 7
    %v4949 = vsub.s32 %v4946, %v4948
    %v4950 = vrot.slane %v4942, %v4949
    %v4952 = vunpack.c.l.s4 1983009808
    %v4953 = vunpack.c.0.s8 %v4952
    %v4954 = vlaneseq
    %v4955 = vshrl.u32 %v4954, 7
    %v4956 = vsub.s32 %v4953, %v4955
    %v4957 = vrot.slane %v4943, %v4956
    %v4958 = vcombine.low %v4934, %v4950
    %v4959 = vcombine.high %v4934, %v4950
    %v4961 = vunpack.c.l.s4 1934713408
    %v4962 = vunpack.c.0.s8 %v4961
    %v4963 = vlaneseq
    %v4964 = vshrl.u32 %v4963, 7
    %v4965 = vsub.s32 %v4962, %v4964
    %v4966 = vrot.slane %v4958, %v4965
    %v4968 = vunpack.c.l.s4 1934713408
    %v4969 = vunpack.c.0.s8 %v4968
    %v4970 = vlaneseq
    %v4971 = vshrl.u32 %v4970, 7
    %v4972 = vsub.s32 %v4969, %v4971
    %v4973 = vrot.slane %v4959, %v4972
    %v4974 = vcombine.low %v4941, %v4957
    %v4975 = vcombine.high %v4941, %v4957
    %v4977 = vunpack.c.l.s4 1934713408
    %v4978 = vunpack.c.0.s8 %v4977
    %v4979 = vlaneseq
    %v4980 = vshrl.u32 %v4979, 7
    %v4981 = vsub.s32 %v4978, %v4980
    %v4982 = vrot.slane %v4974, %v4981
    %v4984 = vunpack.c.l.s4 1934713408
    %v4985 = vunpack.c.0.s8 %v4984
    %v4986 = vlaneseq
    %v4987 = vshrl.u32 %v4986, 7
    %v4988 = vsub.s32 %v4985, %v4987
    %v4989 = vrot.slane %v4975, %v4988
    %v4990 = vcombine.high %v4966, 0.0
    %v4991 = vcombine.high %v4973, 0.0
    %v4992 = vcombine.high %v4982, 0.0
    %v4993 = vcombine.high %v4989, 0.0
    %v4994 = vcombine.low %v4898, %v4905
    %v4996 = vunpack.c.l.s4 1983009808
    %v4997 = vunpack.c.0.s8 %v4996
    %v4998 = vlaneseq
    %v4999 = vshrl.u32 %v4998, 7
    %v5000 = vsub.s32 %v4997, %v4999
    %v5001 = vrot.slane %v4994, %v5000
    %v5002 = vcombine.low %v4922, %v4923
    %v5004 = vunpack.c.l.s4 1983009808
    %v5005 = vunpack.c.0.s8 %v5004
    %v5006 = vlaneseq
    %v5007 = vshrl.u32 %v5006, 7
    %v5008 = vsub.s32 %v5005, %v5007
    %v5009 = vrot.slane %v5002, %v5008
    %v5010 = vcombine.low %v4914, %v4921
    %v5012 = vunpack.c.l.s4 1983009808
    %v5013 = vunpack.c.0.s8 %v5012
    %v5014 = vlaneseq
    %v5015 = vshrl.u32 %v5014, 7
    %v5016 = vsub.s32 %v5013, %v5015
    %v5017 = vrot.slane %v5010, %v5016
    %v5018 = vcombine.low %v4924, %v4925
    %v5020 = vunpack.c.l.s4 1983009808
    %v5021 = vunpack.c.0.s8 %v5020
    %v5022 = vlaneseq
    %v5023 = vshrl.u32 %v5022, 7
    %v5024 = vsub.s32 %v5021, %v5023
    %v5025 = vrot.slane %v5018, %v5024
    %v5026 = vcombine.low %v5001, %v5009
    %v5027 = vcombine.high %v5001, %v5009
    %v5029 = vunpack.c.l.s4 1934713408
    %v5030 = vunpack.c.0.s8 %v5029
    %v5031 = vlaneseq
    %v5032 = vshrl.u32 %v5031, 7
    %v5033 = vsub.s32 %v5030, %v5032
    %v5034 = vrot.slane %v5026, %v5033
    %v5036 = vunpack.c.l.s4 1934713408
    %v5037 = vunpack.c.0.s8 %v5036
    %v5038 = vlaneseq
    %v5039 = vshrl.u32 %v5038, 7
    %v5040 = vsub.s32 %v5037, %v5039
    %v5041 = vrot.slane %v5027, %v5040
    %v5042 = vcombine.low %v5017, %v5025
    %v5043 = vcombine.high %v5017, %v5025
    %v5045 = vunpack.c.l.s4 1934713408
    %v5046 = vunpack.c.0.s8 %v5045
    %v5047 = vlaneseq
    %v5048 = vshrl.u32 %v5047, 7
    %v5049 = vsub.s32 %v5046, %v5048
    %v5050 = vrot.slane %v5042, %v5049
    %v5052 = vunpack.c.l.s4 1934713408
    %v5053 = vunpack.c.0.s8 %v5052
    %v5054 = vlaneseq
    %v5055 = vshrl.u32 %v5054, 7
    %v5056 = vsub.s32 %v5053, %v5055
    %v5057 = vrot.slane %v5043, %v5056
    %v5058 = vcombine.low %v5034, %v5050
    %v5059 = vcombine.high %v5034, %v5050
    %v5060 = vcombine.low %v5041, %v5057
    %v5061 = vcombine.high %v5041, %v5057
    %v5062 = vcombine.low %v4966, %v4973
    %v5064 = vunpack.c.l.s4 1983009808
    %v5065 = vunpack.c.0.s8 %v5064
    %v5066 = vlaneseq
    %v5067 = vshrl.u32 %v5066, 7
    %v5068 = vsub.s32 %v5065, %v5067
    %v5069 = vrot.slane %v5062, %v5068
    %v5070 = vcombine.low %v4990, %v4991
    %v5072 = vunpack.c.l.s4 1983009808
    %v5073 = vunpack.c.0.s8 %v5072
    %v5074 = vlaneseq
    %v5075 = vshrl.u32 %v5074, 7
    %v5076 = vsub.s32 %v5073, %v5075
    %v5077 = vrot.slane %v5070, %v5076
    %v5078 = vcombine.low %v4982, %v4989
    %v5080 = vunpack.c.l.s4 1983009808
    %v5081 = vunpack.c.0.s8 %v5080
    %v5082 = vlaneseq
    %v5083 = vshrl.u32 %v5082, 7
    %v5084 = vsub.s32 %v5081, %v5083
    %v5085 = vrot.slane %v5078, %v5084
    %v5086 = vcombine.low %v4992, %v4993
    %v5088 = vunpack.c.l.s4 1983009808
    %v5089 = vunpack.c.0.s8 %v5088
    %v5090 = vlaneseq
    %v5091 = vshrl.u32 %v5090, 7
    %v5092 = vsub.s32 %v5089, %v5091
    %v5093 = vrot.slane %v5086, %v5092
    %v5094 = vcombine.low %v5069, %v5077
    %v5095 = vcombine.high %v5069, %v5077
    %v5097 = vunpack.c.l.s4 1934713408
    %v5098 = vunpack.c.0.s8 %v5097
    %v5099 = vlaneseq
    %v5100 = vshrl.u32 %v5099, 7
    %v5101 = vsub.s32 %v5098, %v5100
    %v5102 = vrot.slane %v5094, %v5101
    %v5104 = vunpack.c.l.s4 1934713408
    %v5105 = vunpack.c.0.s8 %v5104
    %v5106 = vlaneseq
    %v5107 = vshrl.u32 %v5106, 7
    %v5108 = vsub.s32 %v5105, %v5107
    %v5109 = vrot.slane %v5095, %v5108
    %v5110 = vcombine.low %v5085, %v5093
    %v5111 = vcombine.high %v5085, %v5093
    %v5113 = vunpack.c.l.s4 1934713408
    %v5114 = vunpack.c.0.s8 %v5113
    %v5115 = vlaneseq
    %v5116 = vshrl.u32 %v5115, 7
    %v5117 = vsub.s32 %v5114, %v5116
    %v5118 = vrot.slane %v5110, %v5117
    %v5120 = vunpack.c.l.s4 1934713408
    %v5121 = vunpack.c.0.s8 %v5120
    %v5122 = vlaneseq
    %v5123 = vshrl.u32 %v5122, 7
    %v5124 = vsub.s32 %v5121, %v5123
    %v5125 = vrot.slane %v5111, %v5124
    %v5126 = vcombine.low %v5102, %v5118
    %v5127 = vcombine.high %v5102, %v5118
    %v5128 = vcombine.low %v5109, %v5125
    %v5129 = vcombine.high %v5109, %v5125
    %5132 = vrot.lane.b32.xlu0 %v5059, 8
    %v5133 = vpop.permute.xlu0 %5132
    %5134 = vrot.lane.b32.xlu0 %v5127, 8
    %v5135 = vpop.permute.xlu0 %5134
    %5140 = vrot.lane.b32.xlu0 %v5060, 16
    %v5141 = vpop.permute.xlu0 %5140
    %5142 = vrot.lane.b32.xlu0 %v5128, 16
    %v5143 = vpop.permute.xlu0 %5142
    %5148 = vrot.lane.b32.xlu0 %v5061, 24
    %v5149 = vpop.permute.xlu0 %5148
    %5150 = vrot.lane.b32.xlu0 %v5129, 24
    %v5151 = vpop.permute.xlu0 %5150
    %v5154 = vsel %vm1362, %v5058, %v5133
    %v5155 = vsel %vm1362, %v5126, %v5135
    %v5156 = vsel %vm2494, %v5154, %v5141
    %v5157 = vsel %vm2494, %v5155, %v5143
    %v5158 = vsel %vm2497, %v5156, %v5149
    %v5159 = vsel %vm2497, %v5157, %v5151
    %v5160 = vpack.c.bf16 %v5159, %v5158
    %s5161 = scalar_lea.vmem [#allocation8], 16
    %v5162 = vld [vmem:[%s5161] sm:$0xf]
    %v5163 = vld [vmem:[%s5161 + $0x4] sm:$0xf]
    %v5164 = vld [vmem:[%s5161 + $0x8] sm:$0xf]
    %v5165 = vld [vmem:[%s5161 + $0xc] sm:$0xf]
    %v5170 = vunpack.c.l.b16 %v5162
    %v5171 = vunpack.c.l.b16 %v5163
    %v5172 = vunpack.c.l.b16 %v5164
    %v5173 = vunpack.c.l.b16 %v5165
    %v5174 = vpack.c.b16 %v5171, %v5170
    %v5175 = vpack.c.b16 %v5173, %v5172
    %v5179 = vsel %vm2517, %v5160, 0
    %5181 = vmatprep.subr.bf16.mxu0 0
    %5182 = vmatpush1.bf16.msra.mxu0 %v5174
    %5183 = vmatprep.subr.bf16.mxu0 0
    %5184 = vmatpush1.bf16.msra.mxu0 %v5175
    %5185 = vmatprep.subr.bf16.mxu0 0
    %5186 = vmatpush1.bf16.msra.mxu0 0
    %5187 = vmatprep.subr.bf16.mxu0 0
    %5188 = vmatpush1.bf16.msra.mxu0 0
    %5189 = vmatprep.subr.bf16.mxu0 0
    %5190 = vmatpush1.bf16.msra.mxu0 0
    %5191 = vmatprep.subr.bf16.mxu0 0
    %5192 = vmatpush1.bf16.msra.mxu0 0
    %5193 = vmatprep.subr.bf16.mxu0 0
    %5194 = vmatpush1.bf16.msra.mxu0 0
    %5195 = vmatprep.subr.bf16.mxu0 0
    %5196 = vmatpush1.bf16.msra.mxu0 0
    %5197 = vmatprep.subr.bf16.mxu0 0
    %5198 = vmatpush1.bf16.msra.mxu0 0
    %5199 = vmatprep.subr.bf16.mxu0 0
    %5200 = vmatpush1.bf16.msra.mxu0 0
    %5201 = vmatprep.subr.bf16.mxu0 0
    %5202 = vmatpush1.bf16.msra.mxu0 0
    %5203 = vmatprep.subr.bf16.mxu0 0
    %5204 = vmatpush1.bf16.msra.mxu0 0
    %5205 = vmatprep.subr.bf16.mxu0 0
    %5206 = vmatpush1.bf16.msra.mxu0 0
    %5207 = vmatprep.subr.bf16.mxu0 0
    %5208 = vmatpush1.bf16.msra.mxu0 0
    %5209 = vmatprep.subr.bf16.mxu0 0
    %5210 = vmatpush1.bf16.msra.mxu0 0
    %5211 = vmatprep.subr.bf16.mxu0 0
    %5212 = vmatpush1.bf16.msra.mxu0 0
    %5213 = vmatprep.mubr.bf16.mxu0 0
    %5214 = vmatmul.mubr.bf16.gmra.mrb[0].mxu0 %v5179
    %v5215 = vpop.f32.mrb[0].mxu0
    %v5216 = vadd.f32 0.0, %v5215
    %v5217 = vpop.f32.mrb[0].mxu0
    %v5218 = vpop.f32.mrb[0].mxu0
    %v5219 = vadd.f32 0.0, %v5218
    %v5220 = vpop.f32.mrb[0].mxu0
    %5221 = vdwg.mxu0
    %v5222 = vadd.f32 %v2834, %v5216
    %v5223 = vadd.f32 %v2835, %v5219
    %s5224 = scalar_lea.vmem %s7, 1
    %v5225 = vld [vmem:[%s5224] sm:$0x1]
    %s5226 = scalar_lea.vmem %s8, 1
    %v5227 = vld [vmem:[%s5226] sm:$0x1]
    %5228 = vadd.xlane.f32.xlu0 %v5222
    %v5229 = vpop.xlane.xlu0 %5228
    %5230 = vadd.xlane.f32.xlu0 %v5223
    %v5231 = vpop.xlane.xlu0 %5230
    %v5232 = vmul.f32 %v5229, 0.03125
    %v5233 = vmul.f32 %v5231, 0.03125
    %v5234 = vsub.f32 %v5222, %v5232
    %v5235 = vsub.f32 %v5223, %v5233
    %v5236 = vsel %vm142, %v5234, 0.0
    %v5237 = vsel %vm142, %v5235, 0.0
    %v5238 = vmul.f32 %v5236, %v5236
    %v5239 = vmul.f32 %v5237, %v5237
    %5240 = vadd.xlane.f32.xlu0 %v5238
    %v5241 = vpop.xlane.xlu0 %5240
    %5242 = vadd.xlane.f32.xlu0 %v5239
    %v5243 = vpop.xlane.xlu0 %5242
    %v5244 = vmul.f32 %v5241, 0.03125
    %v5245 = vmul.f32 %v5243, 0.03125
    %v5246 = vadd.f32 %v5244, 1e-05
    %v5247 = vadd.f32 %v5245, 1e-05
    %v5248 = vrsqrt.pop %v5246
    %v5249 = vrsqrt.pop %v5247
    %v5250 = vmul.f32 %v5236, %v5248
    %v5251 = vmul.f32 %v5237, %v5249
    %v5253 = vlaneseq
    %v5254 = vshrl.u32 %v5253, 7
    %v5255 = vsub.s32 0, %v5254
    %v5256 = vrot.slane %v5225, %v5255
    %v5258 = vmul.f32 %v5250, %v5256
    %v5259 = vmul.f32 %v5251, %v5256
    %v5261 = vlaneseq
    %v5262 = vshrl.u32 %v5261, 7
    %v5263 = vsub.s32 0, %v5262
    %v5264 = vrot.slane %v5227, %v5263
    %v5266 = vadd.f32 %v5258, %v5264
    %v5267 = vadd.f32 %v5259, %v5264
    %v5268 = vpack.c.bf16 %v5267, %v5266
    %s5269 = scalar_lea.vmem [#allocation10], 64
    %v5270 = vld [vmem:[%s5269] sm:$0xf]
    %v5271 = vld [vmem:[%s5269 + $0x4] sm:$0xf]
    %v5272 = vld [vmem:[%s5269 + $0x8] sm:$0xf]
    %v5273 = vld [vmem:[%s5269 + $0xc] sm:$0xf]
    %v5274 = vld [vmem:[%s5269 + $0x10] sm:$0xf]
    %v5275 = vld [vmem:[%s5269 + $0x14] sm:$0xf]
    %v5276 = vld [vmem:[%s5269 + $0x18] sm:$0xf]
    %v5277 = vld [vmem:[%s5269 + $0x1c] sm:$0xf]
    %v5278 = vld [vmem:[%s5269 + $0x20] sm:$0xf]
    %v5279 = vld [vmem:[%s5269 + $0x24] sm:$0xf]
    %v5280 = vld [vmem:[%s5269 + $0x28] sm:$0xf]
    %v5281 = vld [vmem:[%s5269 + $0x2c] sm:$0xf]
    %v5282 = vld [vmem:[%s5269 + $0x30] sm:$0xf]
    %v5283 = vld [vmem:[%s5269 + $0x34] sm:$0xf]
    %v5284 = vld [vmem:[%s5269 + $0x38] sm:$0xf]
    %v5285 = vld [vmem:[%s5269 + $0x3c] sm:$0xf]
    %s5286 = scalar_lea.vmem %s10, 1
    %v5287 = vld [vmem:[%s5286] sm:$0x1]
    %v5289 = vlaneseq
    %v5290 = vshrl.u32 %v5289, 7
    %v5291 = vsub.s32 0, %v5290
    %v5292 = vrot.slane %v5287, %v5291
    %v5310 = vunpack.c.l.b16 %v5270
    %v5311 = vunpack.c.l.b16 %v5271
    %v5312 = vunpack.c.l.b16 %v5272
    %v5313 = vunpack.c.l.b16 %v5273
    %v5314 = vunpack.c.l.b16 %v5274
    %v5315 = vunpack.c.l.b16 %v5275
    %v5316 = vunpack.c.l.b16 %v5276
    %v5317 = vunpack.c.l.b16 %v5277
    %v5318 = vunpack.c.l.b16 %v5278
    %v5319 = vunpack.c.l.b16 %v5279
    %v5320 = vunpack.c.l.b16 %v5280
    %v5321 = vunpack.c.l.b16 %v5281
    %v5322 = vunpack.c.l.b16 %v5282
    %v5323 = vunpack.c.l.b16 %v5283
    %v5324 = vunpack.c.l.b16 %v5284
    %v5325 = vunpack.c.l.b16 %v5285
    %v5326 = vpack.c.b16 %v5311, %v5310
    %v5327 = vpack.c.b16 %v5313, %v5312
    %v5328 = vpack.c.b16 %v5315, %v5314
    %v5329 = vpack.c.b16 %v5317, %v5316
    %v5330 = vpack.c.b16 %v5319, %v5318
    %v5331 = vpack.c.b16 %v5321, %v5320
    %v5332 = vpack.c.b16 %v5323, %v5322
    %v5333 = vpack.c.b16 %v5325, %v5324
    %5342 = vmatprep.subr.bf16.mxu0 0
    %5343 = vmatpush1.bf16.msra.mxu0 %v5326
    %5344 = vmatprep.subr.bf16.mxu0 0
    %5345 = vmatpush1.bf16.msra.mxu0 %v5327
    %5346 = vmatprep.subr.bf16.mxu0 0
    %5347 = vmatpush1.bf16.msra.mxu0 %v5328
    %5348 = vmatprep.subr.bf16.mxu0 0
    %5349 = vmatpush1.bf16.msra.mxu0 %v5329
    %5350 = vmatprep.subr.bf16.mxu0 0
    %5351 = vmatpush1.bf16.msra.mxu0 %v5330
    %5352 = vmatprep.subr.bf16.mxu0 0
    %5353 = vmatpush1.bf16.msra.mxu0 %v5331
    %5354 = vmatprep.subr.bf16.mxu0 0
    %5355 = vmatpush1.bf16.msra.mxu0 %v5332
    %5356 = vmatprep.subr.bf16.mxu0 0
    %5357 = vmatpush1.bf16.msra.mxu0 %v5333
    %5358 = vmatprep.subr.bf16.mxu0 0
    %5359 = vmatpush1.bf16.msra.mxu0 0
    %5360 = vmatprep.subr.bf16.mxu0 0
    %5361 = vmatpush1.bf16.msra.mxu0 0
    %5362 = vmatprep.subr.bf16.mxu0 0
    %5363 = vmatpush1.bf16.msra.mxu0 0
    %5364 = vmatprep.subr.bf16.mxu0 0
    %5365 = vmatpush1.bf16.msra.mxu0 0
    %5366 = vmatprep.subr.bf16.mxu0 0
    %5367 = vmatpush1.bf16.msra.mxu0 0
    %5368 = vmatprep.subr.bf16.mxu0 0
    %5369 = vmatpush1.bf16.msra.mxu0 0
    %5370 = vmatprep.subr.bf16.mxu0 0
    %5371 = vmatpush1.bf16.msra.mxu0 0
    %5372 = vmatprep.subr.bf16.mxu0 0
    %5373 = vmatpush1.bf16.msra.mxu0 0
    %5374 = vmatprep.mubr.bf16.mxu0 0
    %5375 = vmatmul.mubr.bf16.gmra.mrb[0].mxu0 %v5268
    %v5376 = vpop.f32.mrb[0].mxu0
    %v5377 = vadd.f32 %v5292, %v5376
    %v5378 = vpop.f32.mrb[0].mxu0
    %v5379 = vpop.f32.mrb[0].mxu0
    %v5380 = vadd.f32 %v5292, %v5379
    %v5381 = vpop.f32.mrb[0].mxu0
    %5382 = vdwg.mxu0
    %v5383 = vmax.f32 %v5377, 0.0
    %v5384 = vmax.f32 %v5380, 0.0
    %v5385 = vpack.c.bf16 %v5384, %v5383
    %s5386 = scalar_lea.vmem [#allocation11], 64
    %v5387 = vld [vmem:[%s5386] sm:$0xf]
    %v5388 = vld [vmem:[%s5386 + $0x4] sm:$0xf]
    %v5389 = vld [vmem:[%s5386 + $0x8] sm:$0xf]
    %v5390 = vld [vmem:[%s5386 + $0xc] sm:$0xf]
    %v5391 = vld [vmem:[%s5386 + $0x10] sm:$0xf]
    %v5392 = vld [vmem:[%s5386 + $0x14] sm:$0xf]
    %v5393 = vld [vmem:[%s5386 + $0x18] sm:$0xf]
    %v5394 = vld [vmem:[%s5386 + $0x1c] sm:$0xf]
    %v5395 = vld [vmem:[%s5386 + $0x20] sm:$0xf]
    %v5396 = vld [vmem:[%s5386 + $0x24] sm:$0xf]
    %v5397 = vld [vmem:[%s5386 + $0x28] sm:$0xf]
    %v5398 = vld [vmem:[%s5386 + $0x2c] sm:$0xf]
    %v5399 = vld [vmem:[%s5386 + $0x30] sm:$0xf]
    %v5400 = vld [vmem:[%s5386 + $0x34] sm:$0xf]
    %v5401 = vld [vmem:[%s5386 + $0x38] sm:$0xf]
    %v5402 = vld [vmem:[%s5386 + $0x3c] sm:$0xf]
    %s5403 = scalar_lea.vmem %s12, 1
    %v5404 = vld [vmem:[%s5403] sm:$0x1]
    %v5406 = vlaneseq
    %v5407 = vshrl.u32 %v5406, 7
    %v5408 = vsub.s32 0, %v5407
    %v5409 = vrot.slane %v5404, %v5408
    %v5427 = vunpack.c.l.b16 %v5387
    %v5428 = vunpack.c.l.b16 %v5388
    %v5429 = vunpack.c.l.b16 %v5389
    %v5430 = vunpack.c.l.b16 %v5390
    %v5431 = vunpack.c.l.b16 %v5391
    %v5432 = vunpack.c.l.b16 %v5392
    %v5433 = vunpack.c.l.b16 %v5393
    %v5434 = vunpack.c.l.b16 %v5394
    %v5435 = vunpack.c.l.b16 %v5395
    %v5436 = vunpack.c.l.b16 %v5396
    %v5437 = vunpack.c.l.b16 %v5397
    %v5438 = vunpack.c.l.b16 %v5398
    %v5439 = vunpack.c.l.b16 %v5399
    %v5440 = vunpack.c.l.b16 %v5400
    %v5441 = vunpack.c.l.b16 %v5401
    %v5442 = vunpack.c.l.b16 %v5402
    %v5443 = vpack.c.b16 %v5428, %v5427
    %v5444 = vpack.c.b16 %v5430, %v5429
    %v5445 = vpack.c.b16 %v5432, %v5431
    %v5446 = vpack.c.b16 %v5434, %v5433
    %v5447 = vpack.c.b16 %v5436, %v5435
    %v5448 = vpack.c.b16 %v5438, %v5437
    %v5449 = vpack.c.b16 %v5440, %v5439
    %v5450 = vpack.c.b16 %v5442, %v5441
    %5459 = vmatprep.subr.bf16.mxu0 0
    %5460 = vmatpush1.bf16.msra.mxu0 %v5443
    %5461 = vmatprep.subr.bf16.mxu0 0
    %5462 = vmatpush1.bf16.msra.mxu0 %v5444
    %5463 = vmatprep.subr.bf16.mxu0 0
    %5464 = vmatpush1.bf16.msra.mxu0 %v5445
    %5465 = vmatprep.subr.bf16.mxu0 0
    %5466 = vmatpush1.bf16.msra.mxu0 %v5446
    %5467 = vmatprep.subr.bf16.mxu0 0
    %5468 = vmatpush1.bf16.msra.mxu0 %v5447
    %5469 = vmatprep.subr.bf16.mxu0 0
    %5470 = vmatpush1.bf16.msra.mxu0 %v5448
    %5471 = vmatprep.subr.bf16.mxu0 0
    %5472 = vmatpush1.bf16.msra.mxu0 %v5449
    %5473 = vmatprep.subr.bf16.mxu0 0
    %5474 = vmatpush1.bf16.msra.mxu0 %v5450
    %5475 = vmatprep.subr.bf16.mxu0 0
    %5476 = vmatpush1.bf16.msra.mxu0 0
    %5477 = vmatprep.subr.bf16.mxu0 0
    %5478 = vmatpush1.bf16.msra.mxu0 0
    %5479 = vmatprep.subr.bf16.mxu0 0
    %5480 = vmatpush1.bf16.msra.mxu0 0
    %5481 = vmatprep.subr.bf16.mxu0 0
    %5482 = vmatpush1.bf16.msra.mxu0 0
    %5483 = vmatprep.subr.bf16.mxu0 0
    %5484 = vmatpush1.bf16.msra.mxu0 0
    %5485 = vmatprep.subr.bf16.mxu0 0
    %5486 = vmatpush1.bf16.msra.mxu0 0
    %5487 = vmatprep.subr.bf16.mxu0 0
    %5488 = vmatpush1.bf16.msra.mxu0 0
    %5489 = vmatprep.subr.bf16.mxu0 0
    %5490 = vmatpush1.bf16.msra.mxu0 0
    %5491 = vmatprep.mubr.bf16.mxu0 0
    %5492 = vmatmul.mubr.bf16.gmra.mrb[0].mxu0 %v5385
    %v5493 = vpop.f32.mrb[0].mxu0
    %v5494 = vadd.f32 %v5409, %v5493
    %v5495 = vpop.f32.mrb[0].mxu0
    %v5496 = vpop.f32.mrb[0].mxu0
    %v5497 = vadd.f32 %v5409, %v5496
    %v5498 = vpop.f32.mrb[0].mxu0
    %5499 = vdwg.mxu0
    %v5500 = vadd.f32 %v5222, %v5494
    %v5501 = vadd.f32 %v5223, %v5497
    %5502 = vst.msk [vmem:[#allocation13] sm:$0xff] %vm2517, %v5500
    %5503 = vst.msk [vmem:[#allocation13 + $0x8] sm:$0xff] %vm2517, %v5501
    // Predicated region
    $region78: #{tpu_custom_call.1} parent=1 // pred_check
      _
    $region79: #{tpu_custom_call.1} parent=1 // pred_check_branch
      %5505 = sbr.rel (0) target = $region81
    $region80: #{tpu_custom_call.1} parent=1 // pred_region
      %s5507 = ssub.s32 256, 256
      %5508 = vsyncadd [#allocation4], %s5507
      %s5509 = sshll.u32 [#allocation13], 4
      %s5510 = int_to_ptr.vmem [resolvable:$true] %s5509
      %5515 = dma.vmem_to_hbm [thread:$0]  %s5510, 256, %s13, [#allocation4], 128, 128, 8
    $region81: #{tpu_custom_call.1} parent=1 // pred_fallthru
      _
    // Predicated region
    $region82: #{tpu_custom_call.1} parent=1 // pred_check
      _
    $region83: #{tpu_custom_call.1} parent=1 // pred_check_branch
      %5517 = sbr.rel (0) target = $region85
    $region84: #{tpu_custom_call.1} parent=1 // pred_region
      %5518 = dma.done [#allocation4], 256
    $region85: #{tpu_custom_call.1} parent=1 // pred_fallthru
      _
    %5519 = vsyncpa [#allocation3], 1
    %5520 = vsyncpa [#allocation6], 1
    %5521 = vsyncpa [#allocation9], 1
    %5522 = vsyncpa [#allocation12], 1
    %5523 = vsyncpa [#allocation4], 1

</llo_original>
